<compile_context>
chip_gen: v7x
topology: tpu7x:2x2x1
jax: 0.10.0
libtpu: 0.0.40
codegen_flags: <defaults>
</compile_context>

<pallas_src>
import jax
import jax.numpy as jnp
import numpy as np
from jax.experimental import pallas as pl
from jax.experimental.pallas import tpu as pltpu

LRELU_SLOPE = 0.2
BN_EPS = 1e-5


def _lrelu(x):
    return jnp.where(x > 0.0, x, LRELU_SLOPE * x)


# ----------------------------- im2col glue (plain JAX, NHWC) -----------------------------
def im2col_nhwc(x, k, stride, pad):
    """x: (B, H, W, C) -> patches (B, Ho*Wo, k*k*C) with column order (kh, kw, C)."""
    B, H, W, C = x.shape
    xp = jnp.pad(x, ((0, 0), (pad, pad), (pad, pad), (0, 0)))
    Ho = (H + 2 * pad - k) // stride + 1
    Wo = (W + 2 * pad - k) // stride + 1
    cols = []
    for i in range(k):
        for j in range(k):
            cols.append(xp[:, i:i + stride * Ho:stride, j:j + stride * Wo:stride, :])
    p = jnp.stack(cols, axis=3)                       # (B, Ho, Wo, k*k, C), taps in (kh, kw) order
    return p.reshape(B, Ho * Wo, k * k * C), Ho, Wo   # minor-dim merges only, no transpose


def flatten_weight(w):
    """OIHW conv weight -> (kh*kw*Cin, Cout), matching the (kh, kw, C) patch column order."""
    cout = w.shape[0]
    return w.transpose(0, 2, 3, 1).reshape(cout, -1).T


# ----------------------------- Pallas kernels -----------------------------
def _conv1_lrelu_kernel(p_ref, w_ref, b_ref, o_ref):
    # per-image: (196, 128) bf16 @ (128, 128) bf16 -> f32, + bias, LeakyReLU, store bf16.
    y = jnp.dot(p_ref[0], w_ref[...], preferred_element_type=jnp.float32)
    y = y + b_ref[...]
    o_ref[0] = _lrelu(y).astype(o_ref.dtype)


def _conv2_stats_kernel(p_ref, w_ref, y_ref, s1_ref, s2_ref):
    # per-image: (49, 2048) bf16 @ (2048, 256) bf16 -> f32 conv output (bias dropped: the
    # BN mean subtraction cancels it exactly), plus per-image partial sum / sum-of-squares
    # so the global batch statistics can be formed without re-reading y2.
    y = jnp.dot(p_ref[0], w_ref[...], preferred_element_type=jnp.float32)
    y_ref[0] = y
    s1_ref[0] = jnp.sum(y, axis=0, keepdims=True)
    s2_ref[0] = jnp.sum(y * y, axis=0, keepdims=True)


def _bn_lrelu_head_kernel(y_ref, scale_ref, shift_ref, w3_ref, b3_ref, o_ref):
    # per-image: normalize with the *global* batch statistics (folded into scale/shift),
    # LeakyReLU, then the fused stage-3 7x7 conv (VPU multiply + full reduce) and sigmoid.
    z = y_ref[0] * scale_ref[...] + shift_ref[...]
    z = _lrelu(z)
    logit = jnp.sum(z * w3_ref[...]) + b3_ref[0]
    sig = 1.0 / (1.0 + jnp.exp(-logit))
    o_ref[...] = jnp.broadcast_to(sig, (1, 1, 128)).astype(o_ref.dtype)


# ----------------------------- pallas_call wrappers -----------------------------
def _stage1(p1, wt1, b1):
    B, M, K = p1.shape
    N = wt1.shape[1]
    return pl.pallas_call(
        _conv1_lrelu_kernel,
        out_shape=jax.ShapeDtypeStruct((B, M, N), jnp.bfloat16),
        grid=(B,),
        in_specs=[
            pl.BlockSpec((1, M, K), lambda b: (b, 0, 0)),
            pl.BlockSpec((K, N), lambda b: (0, 0)),
            pl.BlockSpec((1, N), lambda b: (0, 0)),
        ],
        out_specs=pl.BlockSpec((1, M, N), lambda b: (b, 0, 0)),
        compiler_params=pltpu.CompilerParams(dimension_semantics=("parallel",)),
    )(p1, wt1, b1)


def _stage2_conv_stats(p2, wt2):
    B, M, K = p2.shape
    N = wt2.shape[1]
    ce = pl.CostEstimate(
        flops=2 * B * M * K * N,
        transcendentals=0,
        bytes_accessed=(p2.size * p2.dtype.itemsize + wt2.size * wt2.dtype.itemsize
                        + B * M * N * 4 + 2 * B * N * 4),
    )
    return pl.pallas_call(
        _conv2_stats_kernel,
        out_shape=(jax.ShapeDtypeStruct((B, M, N), jnp.float32),
                   jax.ShapeDtypeStruct((B, 1, N), jnp.float32),
                   jax.ShapeDtypeStruct((B, 1, N), jnp.float32)),
        grid=(B,),
        in_specs=[
            pl.BlockSpec((1, M, K), lambda b: (b, 0, 0)),
            pl.BlockSpec((K, N), lambda b: (0, 0)),
        ],
        out_specs=(pl.BlockSpec((1, M, N), lambda b: (b, 0, 0)),
                   pl.BlockSpec((1, 1, N), lambda b: (b, 0, 0)),
                   pl.BlockSpec((1, 1, N), lambda b: (b, 0, 0))),
        compiler_params=pltpu.CompilerParams(dimension_semantics=("parallel",)),
        cost_estimate=ce,
    )(p2, wt2)


def _stage2_finish_head(y2, scale, shift, w3_2d, b3):
    B, M, N = y2.shape
    return pl.pallas_call(
        _bn_lrelu_head_kernel,
        out_shape=jax.ShapeDtypeStruct((B, 1, 128), jnp.float32),
        grid=(B,),
        in_specs=[
            pl.BlockSpec((1, M, N), lambda b: (b, 0, 0)),
            pl.BlockSpec((1, N), lambda b: (0, 0)),
            pl.BlockSpec((1, N), lambda b: (0, 0)),
            pl.BlockSpec((M, N), lambda b: (0, 0)),
            pl.BlockSpec(memory_space=pltpu.MemorySpace.SMEM),
        ],
        out_specs=pl.BlockSpec((1, 1, 128), lambda b: (b, 0, 0)),
        compiler_params=pltpu.CompilerParams(dimension_semantics=("parallel",)),
    )(y2, scale, shift, w3_2d, b3)


# ----------------------------- forward pass -----------------------------
def discriminator_forward(x, params):
    B = x.shape[0]
    x = jnp.transpose(x, (0, 2, 3, 1))                       # NCHW -> NHWC (C=1: trivial)

    # Stage 1: Conv2d(1,128,4,2,1) + LeakyReLU
    p1, H1, W1 = im2col_nhwc(x, 4, 2, 1)                     # (B, 196, 16)
    K1 = p1.shape[2]
    p1 = jnp.pad(p1, ((0, 0), (0, 0), (0, 128 - K1))).astype(jnp.bfloat16)   # lane-dense K
    wt1 = jnp.pad(flatten_weight(params["w1"]), ((0, 128 - K1), (0, 0))).astype(jnp.bfloat16)
    b1 = params["b1"].reshape(1, -1).astype(jnp.float32)
    y1 = _stage1(p1, wt1, b1)                                # (B, 196, 128) bf16
    y1 = y1.reshape(B, H1, W1, 128)                          # still NHWC, pure reshape

    # Stage 2 pass 1: Conv2d(128,256,4,2,1) as matmul + per-image partial BN stats
    # (b2 bias intentionally dropped: batch-mean subtraction in BN cancels it exactly)
    p2, H2, W2 = im2col_nhwc(y1, 4, 2, 1)                    # (B, 49, 2048) bf16
    wt2 = flatten_weight(params["w2"]).astype(jnp.bfloat16)  # (2048, 256)
    y2, ssum, ssq = _stage2_conv_stats(p2, wt2)              # (B,49,256) f32, (B,1,256) x2

    # Global training-mode BatchNorm statistics (tiny 256-wide reduction, plain JAX)
    n = B * H2 * W2
    mean = jnp.sum(ssum, axis=(0, 1)) / n
    var = jnp.sum(ssq, axis=(0, 1)) / n - mean * mean        # biased variance (PyTorch)
    inv_std = jax.lax.rsqrt(var + BN_EPS)
    scale = (params["gamma"] * inv_std).reshape(1, -1)
    shift = (params["beta"] - mean * params["gamma"] * inv_std).reshape(1, -1)

    # Stage 2 pass 2 (normalize + LeakyReLU) fused with stage 3: Conv2d(256,1,7,1,0) + Sigmoid
    w3_2d = params["w3"][0].transpose(1, 2, 0).reshape(H2 * W2, 256)  # (49,256), (kh,kw,C) order
    b3 = params["b3"].astype(jnp.float32)                    # (1,) scalar in SMEM
    y3 = _stage2_finish_head(y2, scale, shift, w3_2d, b3)    # (B, 1, 128), scalar broadcast on lanes
    return y3[:, :, 0].reshape(B, 1, 1, 1)


# ----------------------------- parameters & reference -----------------------------
def init_params(key):
    ks = jax.random.split(key, 6)

    def nrm(k, shape, scale):
        return scale * jax.random.normal(k, shape, jnp.float32)

    return dict(
        w1=nrm(ks[0], (128, 1, 4, 4), 0.10),
        b1=nrm(ks[1], (128,), 0.10),
        w2=nrm(ks[2], (256, 128, 4, 4), 0.02),
        b2=nrm(ks[3], (256,), 0.02),
        gamma=jnp.ones((256,), jnp.float32),
        beta=jnp.zeros((256,), jnp.float32),
        w3=nrm(ks[4], (1, 256, 7, 7), 0.02),
        b3=nrm(ks[5], (1,), 0.02),
    )


def ref_forward(x, params):
    """Pure-JAX reference (XLA convs, f32) mirroring PyTorch training-mode forward."""
    def conv(x, w, b, stride, pad):
        y = jax.lax.conv_general_dilated(
            x, w, (stride, stride), [(pad, pad), (pad, pad)],
            dimension_numbers=("NCHW", "OIHW", "NCHW"))
        return y + b[None, :, None, None]

    y = conv(x, params["w1"], params["b1"], 2, 1)
    y = jnp.where(y > 0, y, LRELU_SLOPE * y)
    y = conv(y, params["w2"], params["b2"], 2, 1)
    mean = y.mean(axis=(0, 2, 3), keepdims=True)
    var = ((y - mean) ** 2).mean(axis=(0, 2, 3), keepdims=True)
    y = (y - mean) / jnp.sqrt(var + BN_EPS)
    y = y * params["gamma"][None, :, None, None] + params["beta"][None, :, None, None]
    y = jnp.where(y > 0, y, LRELU_SLOPE * y)
    y = conv(y, params["w3"], params["b3"], 1, 0)
    return jax.nn.sigmoid(y)


if __name__ == "__main__":
    key = jax.random.PRNGKey(0)
    pkey, xkey = jax.random.split(key)
    params = init_params(pkey)
    # 28x28 single-channel input implied by the final 7x7 valid conv (MNIST-style).
    x = jax.random.normal(xkey, (2, 1, 28, 28), jnp.float32)

    out = jax.jit(discriminator_forward)(x, params)
    out = jax.block_until_ready(out)
    assert out.shape == (2, 1, 1, 1), out.shape

    ref = jax.block_until_ready(ref_forward(x, params))
    np.testing.assert_allclose(np.asarray(out), np.asarray(ref), atol=5e-2, rtol=5e-2)
    print("KERNEL_OK")
</pallas_src>

<mosaic_0001>
module attributes {stable_mosaic.version = 11 : i64} {
  func.func @_conv1_lrelu_kernel(%arg0: i32, %arg1: memref<1x196x128xbf16, #tpu.memory_space<vmem>>, %arg2: memref<128x128xbf16, #tpu.memory_space<vmem>>, %arg3: memref<1x128xf32, #tpu.memory_space<vmem>>, %arg4: memref<1x196x128xbf16, #tpu.memory_space<vmem>>) attributes {dimension_semantics = [#tpu.dimension_semantics<parallel>], iteration_bounds = array<i64: 2>, scalar_prefetch = 0 : i64, scratch_operands = 0 : i64, tpu.core_type = #tpu.core_type<tc>, window_params = [{transform_indices = @transform_0, window_bounds = array<i64: 1, 196, 128>}, {pipeline_mode = #tpu.pipeline_mode<synchronous>, transform_indices = @transform_1, window_bounds = array<i64: 128, 128>}, {pipeline_mode = #tpu.pipeline_mode<synchronous>, transform_indices = @transform_2, window_bounds = array<i64: 1, 128>}, {transform_indices = @transform_3, window_bounds = array<i64: 1, 196, 128>}]} {
    %c0 = arith.constant 0 : index
    %c0_0 = arith.constant 0 : index
    %c0_1 = arith.constant 0 : index
    %0 = vector.load %arg1[%c0, %c0_0, %c0_1] : memref<1x196x128xbf16, #tpu.memory_space<vmem>>, vector<1x196x128xbf16>
    %1 = vector.shape_cast %0 : vector<1x196x128xbf16> to vector<196x128xbf16>
    %c0_2 = arith.constant 0 : index
    %c0_3 = arith.constant 0 : index
    %2 = vector.load %arg2[%c0_2, %c0_3] : memref<128x128xbf16, #tpu.memory_space<vmem>>, vector<128x128xbf16>
    %cst = arith.constant dense<0.000000e+00> : vector<196x128xf32>
    %3 = tpu.matmul %1, %2, %cst {dimension_numbers = #tpu.dot_dimension_numbers<[1], [0], [0], [1], [0, 0, 1, 1], [], []>} : vector<196x128xbf16>, vector<128x128xbf16>, vector<196x128xf32> -> vector<196x128xf32>
    %c0_4 = arith.constant 0 : index
    %c0_5 = arith.constant 0 : index
    %4 = vector.load %arg3[%c0_4, %c0_5] : memref<1x128xf32, #tpu.memory_space<vmem>>, vector<1x128xf32>
    %5 = vector.broadcast %4 : vector<1x128xf32> to vector<196x128xf32>
    %6 = arith.addf %3, %5 : vector<196x128xf32>
    %cst_6 = arith.constant 0.000000e+00 : f32
    %7 = vector.broadcast %cst_6 : f32 to vector<196x128xf32>
    %8 = arith.cmpf ogt, %6, %7 : vector<196x128xf32>
    %cst_7 = arith.constant 2.000000e-01 : f32
    %9 = vector.broadcast %cst_7 : f32 to vector<196x128xf32>
    %10 = arith.mulf %9, %6 : vector<196x128xf32>
    %11 = arith.select %8, %6, %10 : vector<196x128xi1>, vector<196x128xf32>
    %12 = arith.truncf %11 : vector<196x128xf32> to vector<196x128xbf16>
    %c0_8 = arith.constant 0 : index
    %c0_9 = arith.constant 0 : index
    %c0_10 = arith.constant 0 : index
    %13 = vector.load %arg4[%c0_8, %c0_9, %c0_10] : memref<1x196x128xbf16, #tpu.memory_space<vmem>>, vector<1x196x128xbf16>
    %14 = vector.shape_cast %13 : vector<1x196x128xbf16> to vector<196x128xbf16>
    %15 = vector.shape_cast %12 : vector<196x128xbf16> to vector<1x196x128xbf16>
    tpu.vector_store %arg4[%c0_8, %c0_9, %c0_10], %15 {strides = array<i32>} : memref<1x196x128xbf16, #tpu.memory_space<vmem>>, vector<1x196x128xbf16>,
    return
  }
  func.func @transform_0(%arg0: i32) -> (i32, i32, i32) {
    %c0_i32 = arith.constant 0 : i32
    %c0_i32_0 = arith.constant 0 : i32
    %c0_i32_1 = arith.constant 0 : i32
    return %arg0, %c0_i32, %c0_i32_0 : i32, i32, i32
  }
  func.func @transform_1(%arg0: i32) -> (i32, i32) {
    %c0_i32 = arith.constant 0 : i32
    %c0_i32_0 = arith.constant 0 : i32
    %c0_i32_1 = arith.constant 0 : i32
    return %c0_i32, %c0_i32_0 : i32, i32
  }
  func.func @transform_2(%arg0: i32) -> (i32, i32) {
    %c0_i32 = arith.constant 0 : i32
    %c0_i32_0 = arith.constant 0 : i32
    %c0_i32_1 = arith.constant 0 : i32
    return %c0_i32, %c0_i32_0 : i32, i32
  }
  func.func @transform_3(%arg0: i32) -> (i32, i32, i32) {
    %c0_i32 = arith.constant 0 : i32
    %c0_i32_0 = arith.constant 0 : i32
    %c0_i32_1 = arith.constant 0 : i32
    return %arg0, %c0_i32, %c0_i32_0 : i32, i32, i32
  }
}

module attributes {stable_mosaic.version = 11 : i64} {
  func.func @_conv2_stats_kernel(%arg0: i32, %arg1: memref<1x49x2048xbf16, #tpu.memory_space<vmem>>, %arg2: memref<2048x256xbf16, #tpu.memory_space<vmem>>, %arg3: memref<1x49x256xf32, #tpu.memory_space<vmem>>, %arg4: memref<1x1x256xf32, #tpu.memory_space<vmem>>, %arg5: memref<1x1x256xf32, #tpu.memory_space<vmem>>) attributes {dimension_semantics = [#tpu.dimension_semantics<parallel>], iteration_bounds = array<i64: 2>, scalar_prefetch = 0 : i64, scratch_operands = 0 : i64, tpu.core_type = #tpu.core_type<tc>, window_params = [{transform_indices = @transform_0, window_bounds = array<i64: 1, 49, 2048>}, {pipeline_mode = #tpu.pipeline_mode<synchronous>, transform_indices = @transform_1, window_bounds = array<i64: 2048, 256>}, {transform_indices = @transform_2, window_bounds = array<i64: 1, 49, 256>}, {transform_indices = @transform_3, window_bounds = array<i64: 1, 1, 256>}, {transform_indices = @transform_4, window_bounds = array<i64: 1, 1, 256>}]} {
    %c0 = arith.constant 0 : index
    %c0_0 = arith.constant 0 : index
    %c0_1 = arith.constant 0 : index
    %0 = vector.load %arg1[%c0, %c0_0, %c0_1] : memref<1x49x2048xbf16, #tpu.memory_space<vmem>>, vector<1x49x2048xbf16>
    %1 = vector.shape_cast %0 : vector<1x49x2048xbf16> to vector<49x2048xbf16>
    %c0_2 = arith.constant 0 : index
    %c0_3 = arith.constant 0 : index
    %2 = vector.load %arg2[%c0_2, %c0_3] : memref<2048x256xbf16, #tpu.memory_space<vmem>>, vector<2048x256xbf16>
    %cst = arith.constant dense<0.000000e+00> : vector<49x256xf32>
    %3 = tpu.matmul %1, %2, %cst {dimension_numbers = #tpu.dot_dimension_numbers<[1], [0], [0], [1], [0, 0, 1, 1], [], []>} : vector<49x2048xbf16>, vector<2048x256xbf16>, vector<49x256xf32> -> vector<49x256xf32>
    %c0_4 = arith.constant 0 : index
    %c0_5 = arith.constant 0 : index
    %c0_6 = arith.constant 0 : index
    %4 = vector.load %arg3[%c0_4, %c0_5, %c0_6] : memref<1x49x256xf32, #tpu.memory_space<vmem>>, vector<1x49x256xf32>
    %5 = vector.shape_cast %4 : vector<1x49x256xf32> to vector<49x256xf32>
    %6 = vector.shape_cast %3 : vector<49x256xf32> to vector<1x49x256xf32>
    tpu.vector_store %arg3[%c0_4, %c0_5, %c0_6], %6 {strides = array<i32>} : memref<1x49x256xf32, #tpu.memory_space<vmem>>, vector<1x49x256xf32>,
    %cst_7 = arith.constant dense<0.000000e+00> : vector<256xf32>
    %7 = vector.multi_reduction <add>, %3, %cst_7 [0] : vector<49x256xf32> to vector<256xf32>
    %8 = vector.shape_cast %7 : vector<256xf32> to vector<1x256xf32>
    %c0_8 = arith.constant 0 : index
    %c0_9 = arith.constant 0 : index
    %c0_10 = arith.constant 0 : index
    %9 = vector.load %arg4[%c0_8, %c0_9, %c0_10] : memref<1x1x256xf32, #tpu.memory_space<vmem>>, vector<1x1x256xf32>
    %10 = vector.shape_cast %9 : vector<1x1x256xf32> to vector<1x256xf32>
    %11 = vector.shape_cast %8 : vector<1x256xf32> to vector<1x1x256xf32>
    tpu.vector_store %arg4[%c0_8, %c0_9, %c0_10], %11 {strides = array<i32>} : memref<1x1x256xf32, #tpu.memory_space<vmem>>, vector<1x1x256xf32>,
    %12 = arith.mulf %3, %3 : vector<49x256xf32>
    %cst_11 = arith.constant dense<0.000000e+00> : vector<256xf32>
    %13 = vector.multi_reduction <add>, %12, %cst_11 [0] : vector<49x256xf32> to vector<256xf32>
    %14 = vector.shape_cast %13 : vector<256xf32> to vector<1x256xf32>
    %c0_12 = arith.constant 0 : index
    %c0_13 = arith.constant 0 : index
    %c0_14 = arith.constant 0 : index
    %15 = vector.load %arg5[%c0_12, %c0_13, %c0_14] : memref<1x1x256xf32, #tpu.memory_space<vmem>>, vector<1x1x256xf32>
    %16 = vector.shape_cast %15 : vector<1x1x256xf32> to vector<1x256xf32>
    %17 = vector.shape_cast %14 : vector<1x256xf32> to vector<1x1x256xf32>
    tpu.vector_store %arg5[%c0_12, %c0_13, %c0_14], %17 {strides = array<i32>} : memref<1x1x256xf32, #tpu.memory_space<vmem>>, vector<1x1x256xf32>,
    return
  }
  func.func @transform_0(%arg0: i32) -> (i32, i32, i32) {
    %c0_i32 = arith.constant 0 : i32
    %c0_i32_0 = arith.constant 0 : i32
    %c0_i32_1 = arith.constant 0 : i32
    return %arg0, %c0_i32, %c0_i32_0 : i32, i32, i32
  }
  func.func @transform_1(%arg0: i32) -> (i32, i32) {
    %c0_i32 = arith.constant 0 : i32
    %c0_i32_0 = arith.constant 0 : i32
    %c0_i32_1 = arith.constant 0 : i32
    return %c0_i32, %c0_i32_0 : i32, i32
  }
  func.func @transform_2(%arg0: i32) -> (i32, i32, i32) {
    %c0_i32 = arith.constant 0 : i32
    %c0_i32_0 = arith.constant 0 : i32
    %c0_i32_1 = arith.constant 0 : i32
    return %arg0, %c0_i32, %c0_i32_0 : i32, i32, i32
  }
  func.func @transform_3(%arg0: i32) -> (i32, i32, i32) {
    %c0_i32 = arith.constant 0 : i32
    %c0_i32_0 = arith.constant 0 : i32
    %c0_i32_1 = arith.constant 0 : i32
    return %arg0, %c0_i32, %c0_i32_0 : i32, i32, i32
  }
  func.func @transform_4(%arg0: i32) -> (i32, i32, i32) {
    %c0_i32 = arith.constant 0 : i32
    %c0_i32_0 = arith.constant 0 : i32
    %c0_i32_1 = arith.constant 0 : i32
    return %arg0, %c0_i32, %c0_i32_0 : i32, i32, i32
  }
}

module attributes {stable_mosaic.version = 11 : i64} {
  func.func @_bn_lrelu_head_kernel(%arg0: i32, %arg1: memref<1x49x256xf32, #tpu.memory_space<vmem>>, %arg2: memref<1x256xf32, #tpu.memory_space<vmem>>, %arg3: memref<1x256xf32, #tpu.memory_space<vmem>>, %arg4: memref<49x256xf32, #tpu.memory_space<vmem>>, %arg5: memref<1xf32, #tpu.memory_space<smem>>, %arg6: memref<1x1x128xf32, #tpu.memory_space<vmem>>) attributes {dimension_semantics = [#tpu.dimension_semantics<parallel>], iteration_bounds = array<i64: 2>, scalar_prefetch = 0 : i64, scratch_operands = 0 : i64, tpu.core_type = #tpu.core_type<tc>, window_params = [{transform_indices = @transform_0, window_bounds = array<i64: 1, 49, 256>}, {pipeline_mode = #tpu.pipeline_mode<synchronous>, transform_indices = @transform_1, window_bounds = array<i64: 1, 256>}, {pipeline_mode = #tpu.pipeline_mode<synchronous>, transform_indices = @transform_2, window_bounds = array<i64: 1, 256>}, {pipeline_mode = #tpu.pipeline_mode<synchronous>, transform_indices = @transform_3, window_bounds = array<i64: 49, 256>}, {transform_indices = @transform_4, window_bounds = array<i64: 1>}, {transform_indices = @transform_5, window_bounds = array<i64: 1, 1, 128>}]} {
    %c0 = arith.constant 0 : index
    %c0_0 = arith.constant 0 : index
    %c0_1 = arith.constant 0 : index
    %0 = vector.load %arg1[%c0, %c0_0, %c0_1] : memref<1x49x256xf32, #tpu.memory_space<vmem>>, vector<1x49x256xf32>
    %1 = vector.shape_cast %0 : vector<1x49x256xf32> to vector<49x256xf32>
    %c0_2 = arith.constant 0 : index
    %c0_3 = arith.constant 0 : index
    %2 = vector.load %arg2[%c0_2, %c0_3] : memref<1x256xf32, #tpu.memory_space<vmem>>, vector<1x256xf32>
    %3 = vector.broadcast %2 : vector<1x256xf32> to vector<49x256xf32>
    %4 = arith.mulf %1, %3 : vector<49x256xf32>
    %c0_4 = arith.constant 0 : index
    %c0_5 = arith.constant 0 : index
    %5 = vector.load %arg3[%c0_4, %c0_5] : memref<1x256xf32, #tpu.memory_space<vmem>>, vector<1x256xf32>
    %6 = vector.broadcast %5 : vector<1x256xf32> to vector<49x256xf32>
    %7 = arith.addf %4, %6 : vector<49x256xf32>
    %cst = arith.constant 0.000000e+00 : f32
    %8 = vector.broadcast %cst : f32 to vector<49x256xf32>
    %9 = arith.cmpf ogt, %7, %8 : vector<49x256xf32>
    %cst_6 = arith.constant 2.000000e-01 : f32
    %10 = vector.broadcast %cst_6 : f32 to vector<49x256xf32>
    %11 = arith.mulf %10, %7 : vector<49x256xf32>
    %12 = arith.select %9, %7, %11 : vector<49x256xi1>, vector<49x256xf32>
    %c0_7 = arith.constant 0 : index
    %c0_8 = arith.constant 0 : index
    %13 = vector.load %arg4[%c0_7, %c0_8] : memref<49x256xf32, #tpu.memory_space<vmem>>, vector<49x256xf32>
    %14 = arith.mulf %12, %13 : vector<49x256xf32>
    %15 = vector.shape_cast %14 : vector<49x256xf32> to vector<1x49x256xf32>
    %cst_9 = arith.constant dense<0.000000e+00> : vector<1xf32>
    %16 = vector.multi_reduction <add>, %15, %cst_9 [1, 2] : vector<1x49x256xf32> to vector<1xf32>
    %17 = vector.shape_cast %16 : vector<1xf32> to vector<1x1x1xf32>
    %18 = vector.extract %17[0, 0, 0] : f32 from vector<1x1x1xf32>
    %c0_10 = arith.constant 0 : index
    %19 = memref.load %arg5[%c0_10] : memref<1xf32, #tpu.memory_space<smem>>
    %20 = arith.addf %18, %19 : f32
    %cst_11 = arith.constant 0.000000e+00 : f32
    %21 = arith.subf %cst_11, %20 : f32
    %22 = math.exp %21 : f32
    %cst_12 = arith.constant 1.000000e+00 : f32
    %23 = arith.addf %cst_12, %22 : f32
    %cst_13 = arith.constant 1.000000e+00 : f32
    %24 = arith.divf %cst_13, %23 : f32
    %25 = vector.broadcast %24 : f32 to vector<1x1x128xf32>
    %c0_14 = arith.constant 0 : index
    %c0_15 = arith.constant 0 : index
    %c0_16 = arith.constant 0 : index
    %26 = vector.load %arg6[%c0_14, %c0_15, %c0_16] : memref<1x1x128xf32, #tpu.memory_space<vmem>>, vector<1x1x128xf32>
    tpu.vector_store %arg6[%c0_14, %c0_15, %c0_16], %25 {strides = array<i32>} : memref<1x1x128xf32, #tpu.memory_space<vmem>>, vector<1x1x128xf32>,
    return
  }
  func.func @transform_0(%arg0: i32) -> (i32, i32, i32) {
    %c0_i32 = arith.constant 0 : i32
    %c0_i32_0 = arith.constant 0 : i32
    %c0_i32_1 = arith.constant 0 : i32
    return %arg0, %c0_i32, %c0_i32_0 : i32, i32, i32
  }
  func.func @transform_1(%arg0: i32) -> (i32, i32) {
    %c0_i32 = arith.constant 0 : i32
    %c0_i32_0 = arith.constant 0 : i32
    %c0_i32_1 = arith.constant 0 : i32
    return %c0_i32, %c0_i32_0 : i32, i32
  }
  func.func @transform_2(%arg0: i32) -> (i32, i32) {
    %c0_i32 = arith.constant 0 : i32
    %c0_i32_0 = arith.constant 0 : i32
    %c0_i32_1 = arith.constant 0 : i32
    return %c0_i32, %c0_i32_0 : i32, i32
  }
  func.func @transform_3(%arg0: i32) -> (i32, i32) {
    %c0_i32 = arith.constant 0 : i32
    %c0_i32_0 = arith.constant 0 : i32
    %c0_i32_1 = arith.constant 0 : i32
    return %c0_i32, %c0_i32_0 : i32, i32
  }
  func.func @transform_4(%arg0: i32) -> i32 {
    %c0_i32 = arith.constant 0 : i32
    %c0_i32_0 = arith.constant 0 : i32
    return %c0_i32 : i32
  }
  func.func @transform_5(%arg0: i32) -> (i32, i32, i32) {
    %c0_i32 = arith.constant 0 : i32
    %c0_i32_0 = arith.constant 0 : i32
    %c0_i32_1 = arith.constant 0 : i32
    return %arg0, %c0_i32, %c0_i32_0 : i32, i32, i32
  }
}

</mosaic_0001>

<llo_original>
// kernel: discriminator_forward.3
$region0: #{discriminator_forward.3}
  #allocation0 [shape = 'u32[]', space=smem, size = 0x4, offset = 0x4, fixed_abs, tag = 'smem constant byte address 0x4 - core index']
  #allocation1 [shape = 'u32[144,128]{1,0:T(1,128)}', space=vmem, size = 0x12000, scoped, tag = 'internal scratch']
  %s0 = inlined_call_operand.vmem [shape: bf16[2,196,128], index: 0, kind: input, shape index: {}]
  %s1 = inlined_call_operand.vmem [shape: bf16[128,128], index: 1, kind: input, shape index: {}]
  %s2 = inlined_call_operand.vmem [shape: f32[1,128], index: 2, kind: input, shape index: {}]
  %s3 = inlined_call_operand.vmem [shape: bf16[2,196,128], index: 3, kind: output, shape index: {}]
  %s4 = sld [smem:[#allocation0]]
  $region45: #{discriminator_forward.3} parent=0
    _
  %s6 = ssub.s32 1, %s4
  %s7 = scalar_select 0, %s6, %s4
  loop: start=0, step=1, limit=4
  $region2: #{discriminator_forward.3} parent=0 // loop_pre_header
    _
  $region3: #{discriminator_forward.3} parent=0 // loop_header
    %s9 = sphi 0, %s13
    %p10 = scmp.ge.s32.totalorder %s9, 4
    %s19 = sphi 0, %s21
    %s22 = sphi 0, %s19
    %s23 = sphi 0, %s22
    %s39 = sphi 0, %s23
    %s43 = sphi 0, %s43
    %s45 = sphi 0, %s43
    %s46 = sphi 0, %s45
    %s60 = sphi 0, %s46
    %s64 = sphi 0, %s64
    %s66 = sphi 0, %s64
    %s67 = sphi 0, %s66
    %s81 = sphi 0, %s67
    %s87 = sphi 0, %s89
    %s90 = sphi 0, %s87
    %s91 = sphi 0, %s90
    %s107 = sphi 0, %s91
  $region4: #{discriminator_forward.3} parent=0 // loop_header_branch
    %12 = sbr.rel (%p10) target = $region8
  $region5: #{discriminator_forward.3} parent=0 // loop_body
    %s14 = ssub.s32 %s9, 1
    %s15 = ssub.s32 %s9, 2
    %s16 = sadd.s32 %s9, 1
    %s17 = ssub.s32 %s9, %s16
    %p18 = scmp.eq.s32.totalorder %s17, 0
    %s20 = sadd.s32 %s19, 1
    %s21 = scalar_select %p18, %s19, %s20
    %p24 = pneg %p18
    %p25 = scmp.eq.s32.totalorder %s9, 1
    %p26 = por %p24, %p25
    %p27 = scmp.ne.s32.totalorder %s19, %s22
    %p28 = scmp.eq.s32.totalorder %s9, 0
    %p29 = por %p27, %p28
    %p30 = scmp.ne.s32.totalorder %s19, %s22
    %p31 = scmp.eq.s32.totalorder %s14, 1
    %p32 = por %p30, %p31
    %p33 = scmp.ne.s32.totalorder %s22, %s23
    %p34 = scmp.eq.s32.totalorder %s14, 0
    %p35 = por %p33, %p34
    %p36 = scmp.ne.s32.totalorder %s22, %s23
    %p37 = scmp.eq.s32.totalorder %s15, 1
    %p38 = por %p36, %p37
    %p40 = scmp.ne.s32.totalorder %s23, %s39
    %p41 = scmp.eq.s32.totalorder %s15, 0
    %p42 = por %p40, %p41
    %s44 = sadd.s32 %s43, 1
    %p47 = scmp.eq.s32.totalorder %s9, 1
    %p48 = scmp.ne.s32.totalorder %s43, %s45
    %p49 = scmp.eq.s32.totalorder %s9, 0
    %p50 = por %p48, %p49
    %p51 = scmp.ne.s32.totalorder %s43, %s45
    %p52 = scmp.eq.s32.totalorder %s14, 1
    %p53 = por %p51, %p52
    %p54 = scmp.ne.s32.totalorder %s45, %s46
    %p55 = scmp.eq.s32.totalorder %s14, 0
    %p56 = por %p54, %p55
    %p57 = scmp.ne.s32.totalorder %s45, %s46
    %p58 = scmp.eq.s32.totalorder %s15, 1
    %p59 = por %p57, %p58
    %p61 = scmp.ne.s32.totalorder %s46, %s60
    %p62 = scmp.eq.s32.totalorder %s15, 0
    %p63 = por %p61, %p62
    %s65 = sadd.s32 %s64, 1
    %p68 = scmp.eq.s32.totalorder %s9, 1
    %p69 = scmp.ne.s32.totalorder %s64, %s66
    %p70 = scmp.eq.s32.totalorder %s9, 0
    %p71 = por %p69, %p70
    %p72 = scmp.ne.s32.totalorder %s64, %s66
    %p73 = scmp.eq.s32.totalorder %s14, 1
    %p74 = por %p72, %p73
    %p75 = scmp.ne.s32.totalorder %s66, %s67
    %p76 = scmp.eq.s32.totalorder %s14, 0
    %p77 = por %p75, %p76
    %p78 = scmp.ne.s32.totalorder %s66, %s67
    %p79 = scmp.eq.s32.totalorder %s15, 1
    %p80 = por %p78, %p79
    %p82 = scmp.ne.s32.totalorder %s67, %s81
    %p83 = scmp.eq.s32.totalorder %s15, 0
    %p84 = por %p82, %p83
    %s85 = ssub.s32 %s9, %s16
    %p86 = scmp.eq.s32.totalorder %s85, 0
    %s88 = sadd.s32 %s87, 1
    %s89 = scalar_select %p86, %s87, %s88
    %p92 = pneg %p86
    %p93 = scmp.eq.s32.totalorder %s9, 1
    %p94 = por %p92, %p93
    %p95 = scmp.ne.s32.totalorder %s87, %s90
    %p96 = scmp.eq.s32.totalorder %s9, 0
    %p97 = por %p95, %p96
    %p98 = scmp.ne.s32.totalorder %s87, %s90
    %p99 = scmp.eq.s32.totalorder %s14, 1
    %p100 = por %p98, %p99
    %p101 = scmp.ne.s32.totalorder %s90, %s91
    %p102 = scmp.eq.s32.totalorder %s14, 0
    %p103 = por %p101, %p102
    %p104 = scmp.ne.s32.totalorder %s90, %s91
    %p105 = scmp.eq.s32.totalorder %s15, 1
    %p106 = por %p104, %p105
    %p108 = scmp.ne.s32.totalorder %s91, %s107
    %p109 = scmp.eq.s32.totalorder %s15, 0
    %p110 = por %p108, %p109
    %p111 = scmp.le.s32.totalorder 1, %s9
    %p112 = scmp.lt.s32.totalorder %s9, 3
    %p113 = pnand %p111, %p112
    %p114 = pneg %p113
    // Predicated region
    $region9: #{discriminator_forward.3} parent=5 // pred_check
      _
    $region10: #{discriminator_forward.3} parent=5 // pred_check_branch
      %116 = sbr.rel (%p113) target = $region12
    $region11: #{discriminator_forward.3} parent=5 // pred_region
      %s117 = ssub.s32 %s9, 1
      // Predicated region
      $region13: #{discriminator_forward.3} parent=11 // pred_check
        %p118 = pneg %p56
      $region14: #{discriminator_forward.3} parent=11 // pred_check_branch
        %120 = sbr.rel (%p118) target = $region16
      $region15: #{discriminator_forward.3} parent=11 // pred_region
        _
      $region16: #{discriminator_forward.3} parent=11 // pred_fallthru
        _
      // Predicated region
      $region17: #{discriminator_forward.3} parent=11 // pred_check
        %p121 = pneg %p77
      $region18: #{discriminator_forward.3} parent=11 // pred_check_branch
        %123 = sbr.rel (%p121) target = $region20
      $region19: #{discriminator_forward.3} parent=11 // pred_region
        _
      $region20: #{discriminator_forward.3} parent=11 // pred_fallthru
        _
    $region12: #{discriminator_forward.3} parent=5 // pred_fallthru
      _
    %p124 = scmp.lt.s32.totalorder %s9, 2
    // Predicated region
    $region21: #{discriminator_forward.3} parent=5 // pred_check
      %p125 = pneg %p124
    $region22: #{discriminator_forward.3} parent=5 // pred_check_branch
      %127 = sbr.rel (%p125) target = $region24
    $region23: #{discriminator_forward.3} parent=5 // pred_region
      // Predicated region
      $region25: #{discriminator_forward.3} parent=23 // pred_check
        %p128 = pneg %p29
      $region26: #{discriminator_forward.3} parent=23 // pred_check_branch
        %130 = sbr.rel (%p128) target = $region28
      $region27: #{discriminator_forward.3} parent=23 // pred_region
        %p131 = scmp.lt.s32.totalorder %s9, 1
        %s132 = scalar_select %p131, %s9, 1
        %s133 = smul.addr %s132, 25
        %s134 = smul.addr %s133, 4
        %s135 = scalar_lea.vmem %s0, %s134
      $region28: #{discriminator_forward.3} parent=23 // pred_fallthru
        _
    $region24: #{discriminator_forward.3} parent=5 // pred_fallthru
      _
    %p136 = scmp.le.s32.totalorder 1, %s9
    %p137 = scmp.lt.s32.totalorder %s9, 3
    %p138 = pnand %p136, %p137
    %p139 = pneg %p138
    // Predicated region
    $region29: #{discriminator_forward.3} parent=5 // pred_check
      _
    $region30: #{discriminator_forward.3} parent=5 // pred_check_branch
      %141 = sbr.rel (%p138) target = $region32
    $region31: #{discriminator_forward.3} parent=5 // pred_region
      %s142 = ssub.s32 %s9, 1
      %p143 = scmp.lt.s32.totalorder %s14, 1
      %s144 = scalar_select %p143, %s14, 1
      %s145 = smul.addr %s144, 25
      %s146 = smul.addr %s145, 4
      %s147 = scalar_lea.vmem %s0, %s146
      %p148 = pneg %p35
      %p149 = pneg %p32
      %p150 = pneg %p56
      %p151 = pneg %p53
      %p152 = pneg %p77
      %p153 = pneg %p74
      %p154 = pneg %p103
      %p155 = pneg %p100
      %p156 = scmp.lt.s32.totalorder %s14, 1
      %s157 = scalar_select %p156, %s14, 1
      %s158 = smul.addr %s157, 25
      %s159 = smul.addr %s158, 4
      %s160 = scalar_lea.vmem %s3, %s159
      %p161 = scmp.lt.s32.totalorder %s14, 1
      %s162 = scalar_select %p161, %s14, 1
      %s163 = smul.addr %s162, 25
      %s164 = smul.addr %s163, 4
      %s165 = scalar_lea.vmem %s0, %s164
      %p166 = scmp.lt.s32.totalorder %s14, 1
      %s167 = scalar_select %p166, %s14, 1
      %s168 = smul.addr %s167, 25
      %s169 = smul.addr %s168, 4
      %s170 = scalar_lea.vmem %s3, %s169
      %v172 = vld [vmem:[%s165] sm:$0xf]
      %v173 = vld [vmem:[%s165 + $0x4] sm:$0xf]
      %v174 = vld [vmem:[%s165 + $0x8] sm:$0xf]
      %v175 = vld [vmem:[%s165 + $0xc] sm:$0xf]
      %v176 = vld [vmem:[%s165 + $0x10] sm:$0xf]
      %v177 = vld [vmem:[%s165 + $0x14] sm:$0xf]
      %v178 = vld [vmem:[%s165 + $0x18] sm:$0xf]
      %v179 = vld [vmem:[%s165 + $0x1c] sm:$0xf]
      %v180 = vld [vmem:[%s165 + $0x20] sm:$0xf]
      %v181 = vld [vmem:[%s165 + $0x24] sm:$0xf]
      %v182 = vld [vmem:[%s165 + $0x28] sm:$0xf]
      %v183 = vld [vmem:[%s165 + $0x2c] sm:$0xf]
      %v184 = vld [vmem:[%s165 + $0x30] sm:$0xf]
      %v185 = vld [vmem:[%s165 + $0x34] sm:$0xf]
      %v186 = vld [vmem:[%s165 + $0x38] sm:$0xf]
      %v187 = vld [vmem:[%s165 + $0x3c] sm:$0xf]
      %v188 = vld [vmem:[%s165 + $0x40] sm:$0xf]
      %v189 = vld [vmem:[%s165 + $0x44] sm:$0xf]
      %v190 = vld [vmem:[%s165 + $0x48] sm:$0xf]
      %v191 = vld [vmem:[%s165 + $0x4c] sm:$0xf]
      %v192 = vld [vmem:[%s165 + $0x50] sm:$0xf]
      %v193 = vld [vmem:[%s165 + $0x54] sm:$0xf]
      %v194 = vld [vmem:[%s165 + $0x58] sm:$0xf]
      %v195 = vld [vmem:[%s165 + $0x5c] sm:$0xf]
      %v196 = vld [vmem:[%s165 + $0x60] sm:$0x3]
      %v197 = vld [vmem:[%s1] sm:$0xf]
      %v198 = vld [vmem:[%s1 + $0x4] sm:$0xf]
      %v199 = vld [vmem:[%s1 + $0x8] sm:$0xf]
      %v200 = vld [vmem:[%s1 + $0xc] sm:$0xf]
      %v201 = vld [vmem:[%s1 + $0x10] sm:$0xf]
      %v202 = vld [vmem:[%s1 + $0x14] sm:$0xf]
      %v203 = vld [vmem:[%s1 + $0x18] sm:$0xf]
      %v204 = vld [vmem:[%s1 + $0x1c] sm:$0xf]
      %v205 = vld [vmem:[%s1 + $0x20] sm:$0xf]
      %v206 = vld [vmem:[%s1 + $0x24] sm:$0xf]
      %v207 = vld [vmem:[%s1 + $0x28] sm:$0xf]
      %v208 = vld [vmem:[%s1 + $0x2c] sm:$0xf]
      %v209 = vld [vmem:[%s1 + $0x30] sm:$0xf]
      %v210 = vld [vmem:[%s1 + $0x34] sm:$0xf]
      %v211 = vld [vmem:[%s1 + $0x38] sm:$0xf]
      %v212 = vld [vmem:[%s1 + $0x3c] sm:$0xf]
      %v213 = vld [vmem:[%s2] sm:$0x1]
      %v215 = vlaneseq
      %v216 = vshrl.u32 %v215, 7
      %v217 = vsub.s32 0, %v216
      %v218 = vrot.slane %v213, %v217
      %v245 = vunpack.c.l.b16 %v172
      %v246 = vunpack.c.l.b16 %v173
      %v247 = vunpack.c.l.b16 %v174
      %v248 = vunpack.c.l.b16 %v175
      %v249 = vunpack.c.l.b16 %v176
      %v250 = vunpack.c.l.b16 %v177
      %v251 = vunpack.c.l.b16 %v178
      %v252 = vunpack.c.l.b16 %v179
      %v253 = vunpack.c.l.b16 %v180
      %v254 = vunpack.c.l.b16 %v181
      %v255 = vunpack.c.l.b16 %v182
      %v256 = vunpack.c.l.b16 %v183
      %v257 = vunpack.c.l.b16 %v184
      %v258 = vunpack.c.l.b16 %v185
      %v259 = vunpack.c.l.b16 %v186
      %v260 = vunpack.c.l.b16 %v187
      %v261 = vunpack.c.l.b16 %v188
      %v262 = vunpack.c.l.b16 %v189
      %v263 = vunpack.c.l.b16 %v190
      %v264 = vunpack.c.l.b16 %v191
      %v265 = vunpack.c.l.b16 %v192
      %v266 = vunpack.c.l.b16 %v193
      %v267 = vunpack.c.l.b16 %v194
      %v268 = vunpack.c.l.b16 %v195
      %v269 = vunpack.c.l.b16 %v196
      %v270 = vpack.c.b16 %v246, %v245
      %v271 = vpack.c.b16 %v248, %v247
      %v272 = vpack.c.b16 %v250, %v249
      %v273 = vpack.c.b16 %v252, %v251
      %v274 = vpack.c.b16 %v254, %v253
      %v275 = vpack.c.b16 %v256, %v255
      %v276 = vpack.c.b16 %v258, %v257
      %v277 = vpack.c.b16 %v260, %v259
      %v278 = vpack.c.b16 %v262, %v261
      %v279 = vpack.c.b16 %v264, %v263
      %v280 = vpack.c.b16 %v266, %v265
      %v281 = vpack.c.b16 %v268, %v267
      %v282 = vpack.c.b16 %v269, %v269
      %v312 = vunpack.c.l.b16 %v197
      %v313 = vunpack.c.l.b16 %v198
      %v314 = vunpack.c.l.b16 %v199
      %v315 = vunpack.c.l.b16 %v200
      %v316 = vunpack.c.l.b16 %v201
      %v317 = vunpack.c.l.b16 %v202
      %v318 = vunpack.c.l.b16 %v203
      %v319 = vunpack.c.l.b16 %v204
      %v320 = vunpack.c.l.b16 %v205
      %v321 = vunpack.c.l.b16 %v206
      %v322 = vunpack.c.l.b16 %v207
      %v323 = vunpack.c.l.b16 %v208
      %v324 = vunpack.c.l.b16 %v209
      %v325 = vunpack.c.l.b16 %v210
      %v326 = vunpack.c.l.b16 %v211
      %v327 = vunpack.c.l.b16 %v212
      %v328 = vpack.c.b16 %v313, %v312
      %v329 = vpack.c.b16 %v315, %v314
      %v330 = vpack.c.b16 %v317, %v316
      %v331 = vpack.c.b16 %v319, %v318
      %v332 = vpack.c.b16 %v321, %v320
      %v333 = vpack.c.b16 %v323, %v322
      %v334 = vpack.c.b16 %v325, %v324
      %v335 = vpack.c.b16 %v327, %v326
      %344 = vmatprep.subr.bf16.mxu0 0
      %345 = vmatpush1.bf16.msra.mxu0 %v328
      %346 = vmatprep.subr.bf16.mxu0 0
      %347 = vmatpush1.bf16.msra.mxu0 %v329
      %348 = vmatprep.subr.bf16.mxu0 0
      %349 = vmatpush1.bf16.msra.mxu0 %v330
      %350 = vmatprep.subr.bf16.mxu0 0
      %351 = vmatpush1.bf16.msra.mxu0 %v331
      %352 = vmatprep.subr.bf16.mxu0 0
      %353 = vmatpush1.bf16.msra.mxu0 %v332
      %354 = vmatprep.subr.bf16.mxu0 0
      %355 = vmatpush1.bf16.msra.mxu0 %v333
      %356 = vmatprep.subr.bf16.mxu0 0
      %357 = vmatpush1.bf16.msra.mxu0 %v334
      %358 = vmatprep.subr.bf16.mxu0 0
      %359 = vmatpush1.bf16.msra.mxu0 %v335
      %360 = vmatprep.subr.bf16.mxu0 0
      %361 = vmatpush1.bf16.msra.mxu0 0
      %362 = vmatprep.subr.bf16.mxu0 0
      %363 = vmatpush1.bf16.msra.mxu0 0
      %364 = vmatprep.subr.bf16.mxu0 0
      %365 = vmatpush1.bf16.msra.mxu0 0
      %366 = vmatprep.subr.bf16.mxu0 0
      %367 = vmatpush1.bf16.msra.mxu0 0
      %368 = vmatprep.subr.bf16.mxu0 0
      %369 = vmatpush1.bf16.msra.mxu0 0
      %370 = vmatprep.subr.bf16.mxu0 0
      %371 = vmatpush1.bf16.msra.mxu0 0
      %372 = vmatprep.subr.bf16.mxu0 0
      %373 = vmatpush1.bf16.msra.mxu0 0
      %374 = vmatprep.subr.bf16.mxu0 0
      %375 = vmatpush1.bf16.msra.mxu0 0
      %376 = vmatprep.mubr.bf16.mxu0 0
      %377 = vmatmul.mubr.bf16.gmra.mrb[0].mxu0 %v270
      %v378 = vpop.f32.mrb[0].mxu0
      %v379 = vadd.f32 %v218, %v378
      %v380 = vpop.f32.mrb[0].mxu0
      %v381 = vpop.f32.mrb[0].mxu0
      %v382 = vadd.f32 %v218, %v381
      %v383 = vpop.f32.mrb[0].mxu0
      %384 = vmatprep.mubr.bf16.mxu0 0
      %385 = vmatmul.mubr.bf16.gmra.mrb[0].mxu0 %v271
      %v386 = vpop.f32.mrb[0].mxu0
      %v387 = vadd.f32 %v218, %v386
      %v388 = vpop.f32.mrb[0].mxu0
      %v389 = vpop.f32.mrb[0].mxu0
      %v390 = vadd.f32 %v218, %v389
      %v391 = vpop.f32.mrb[0].mxu0
      %392 = vmatprep.mubr.bf16.mxu0 0
      %393 = vmatmul.mubr.bf16.gmra.mrb[0].mxu0 %v272
      %v394 = vpop.f32.mrb[0].mxu0
      %v395 = vadd.f32 %v218, %v394
      %v396 = vpop.f32.mrb[0].mxu0
      %v397 = vpop.f32.mrb[0].mxu0
      %v398 = vadd.f32 %v218, %v397
      %v399 = vpop.f32.mrb[0].mxu0
      %400 = vmatprep.mubr.bf16.mxu0 0
      %401 = vmatmul.mubr.bf16.gmra.mrb[0].mxu0 %v273
      %v402 = vpop.f32.mrb[0].mxu0
      %v403 = vadd.f32 %v218, %v402
      %v404 = vpop.f32.mrb[0].mxu0
      %v405 = vpop.f32.mrb[0].mxu0
      %v406 = vadd.f32 %v218, %v405
      %v407 = vpop.f32.mrb[0].mxu0
      %408 = vmatprep.mubr.bf16.mxu0 0
      %409 = vmatmul.mubr.bf16.gmra.mrb[0].mxu0 %v274
      %v410 = vpop.f32.mrb[0].mxu0
      %v411 = vadd.f32 %v218, %v410
      %v412 = vpop.f32.mrb[0].mxu0
      %v413 = vpop.f32.mrb[0].mxu0
      %v414 = vadd.f32 %v218, %v413
      %v415 = vpop.f32.mrb[0].mxu0
      %416 = vmatprep.mubr.bf16.mxu0 0
      %417 = vmatmul.mubr.bf16.gmra.mrb[0].mxu0 %v275
      %v418 = vpop.f32.mrb[0].mxu0
      %v419 = vadd.f32 %v218, %v418
      %v420 = vpop.f32.mrb[0].mxu0
      %v421 = vpop.f32.mrb[0].mxu0
      %v422 = vadd.f32 %v218, %v421
      %v423 = vpop.f32.mrb[0].mxu0
      %424 = vmatprep.mubr.bf16.mxu0 0
      %425 = vmatmul.mubr.bf16.gmra.mrb[0].mxu0 %v276
      %v426 = vpop.f32.mrb[0].mxu0
      %v427 = vadd.f32 %v218, %v426
      %v428 = vpop.f32.mrb[0].mxu0
      %v429 = vpop.f32.mrb[0].mxu0
      %v430 = vadd.f32 %v218, %v429
      %v431 = vpop.f32.mrb[0].mxu0
      %432 = vmatprep.mubr.bf16.mxu0 0
      %433 = vmatmul.mubr.bf16.gmra.mrb[0].mxu0 %v277
      %v434 = vpop.f32.mrb[0].mxu0
      %v435 = vadd.f32 %v218, %v434
      %v436 = vpop.f32.mrb[0].mxu0
      %v437 = vpop.f32.mrb[0].mxu0
      %v438 = vadd.f32 %v218, %v437
      %v439 = vpop.f32.mrb[0].mxu0
      %440 = vmatprep.mubr.bf16.mxu0 0
      %441 = vmatmul.mubr.bf16.gmra.mrb[0].mxu0 %v278
      %v442 = vpop.f32.mrb[0].mxu0
      %v443 = vadd.f32 %v218, %v442
      %v444 = vpop.f32.mrb[0].mxu0
      %v445 = vpop.f32.mrb[0].mxu0
      %v446 = vadd.f32 %v218, %v445
      %v447 = vpop.f32.mrb[0].mxu0
      %448 = vmatprep.mubr.bf16.mxu0 0
      %449 = vmatmul.mubr.bf16.gmra.mrb[0].mxu0 %v279
      %v450 = vpop.f32.mrb[0].mxu0
      %v451 = vadd.f32 %v218, %v450
      %v452 = vpop.f32.mrb[0].mxu0
      %v453 = vpop.f32.mrb[0].mxu0
      %v454 = vadd.f32 %v218, %v453
      %v455 = vpop.f32.mrb[0].mxu0
      %456 = vmatprep.mubr.bf16.mxu0 0
      %457 = vmatmul.mubr.bf16.gmra.mrb[0].mxu0 %v280
      %v458 = vpop.f32.mrb[0].mxu0
      %v459 = vadd.f32 %v218, %v458
      %v460 = vpop.f32.mrb[0].mxu0
      %v461 = vpop.f32.mrb[0].mxu0
      %v462 = vadd.f32 %v218, %v461
      %v463 = vpop.f32.mrb[0].mxu0
      %464 = vmatprep.mubr.bf16.mxu0 0
      %465 = vmatmul.mubr.bf16.gmra.mrb[0].mxu0 %v281
      %v466 = vpop.f32.mrb[0].mxu0
      %v467 = vadd.f32 %v218, %v466
      %v468 = vpop.f32.mrb[0].mxu0
      %v469 = vpop.f32.mrb[0].mxu0
      %v470 = vadd.f32 %v218, %v469
      %v471 = vpop.f32.mrb[0].mxu0
      %472 = vmatprep.mubr.bf16.mxu0 0
      %473 = vmatmul.mubr.bf16.gmra.mrb[0].mxu0 %v282
      %v474 = vpop.f32.mrb[0].mxu0
      %v475 = vadd.f32 %v218, %v474
      %v476 = vpop.f32.mrb[0].mxu0
      %v477 = vpop.f32.mrb[0].mxu0
      %v478 = vpop.f32.mrb[0].mxu0
      %479 = vdwg.mxu0
      %vm480 = vcmp.gt.f32.partialorder %v379, 0.0
      %vm481 = vcmp.gt.f32.partialorder %v382, 0.0
      %vm482 = vcmp.gt.f32.partialorder %v387, 0.0
      %vm483 = vcmp.gt.f32.partialorder %v390, 0.0
      %vm484 = vcmp.gt.f32.partialorder %v395, 0.0
      %vm485 = vcmp.gt.f32.partialorder %v398, 0.0
      %vm486 = vcmp.gt.f32.partialorder %v403, 0.0
      %vm487 = vcmp.gt.f32.partialorder %v406, 0.0
      %vm488 = vcmp.gt.f32.partialorder %v411, 0.0
      %vm489 = vcmp.gt.f32.partialorder %v414, 0.0
      %vm490 = vcmp.gt.f32.partialorder %v419, 0.0
      %vm491 = vcmp.gt.f32.partialorder %v422, 0.0
      %vm492 = vcmp.gt.f32.partialorder %v427, 0.0
      %vm493 = vcmp.gt.f32.partialorder %v430, 0.0
      %vm494 = vcmp.gt.f32.partialorder %v435, 0.0
      %vm495 = vcmp.gt.f32.partialorder %v438, 0.0
      %vm496 = vcmp.gt.f32.partialorder %v443, 0.0
      %vm497 = vcmp.gt.f32.partialorder %v446, 0.0
      %vm498 = vcmp.gt.f32.partialorder %v451, 0.0
      %vm499 = vcmp.gt.f32.partialorder %v454, 0.0
      %vm500 = vcmp.gt.f32.partialorder %v459, 0.0
      %vm501 = vcmp.gt.f32.partialorder %v462, 0.0
      %vm502 = vcmp.gt.f32.partialorder %v467, 0.0
      %vm503 = vcmp.gt.f32.partialorder %v470, 0.0
      %vm504 = vcmp.gt.f32.partialorder %v475, 0.0
      %v505 = vmul.f32 %v379, 0.2
      %v506 = vmul.f32 %v382, 0.2
      %v507 = vmul.f32 %v387, 0.2
      %v508 = vmul.f32 %v390, 0.2
      %v509 = vmul.f32 %v395, 0.2
      %v510 = vmul.f32 %v398, 0.2
      %v511 = vmul.f32 %v403, 0.2
      %v512 = vmul.f32 %v406, 0.2
      %v513 = vmul.f32 %v411, 0.2
      %v514 = vmul.f32 %v414, 0.2
      %v515 = vmul.f32 %v419, 0.2
      %v516 = vmul.f32 %v422, 0.2
      %v517 = vmul.f32 %v427, 0.2
      %v518 = vmul.f32 %v430, 0.2
      %v519 = vmul.f32 %v435, 0.2
      %v520 = vmul.f32 %v438, 0.2
      %v521 = vmul.f32 %v443, 0.2
      %v522 = vmul.f32 %v446, 0.2
      %v523 = vmul.f32 %v451, 0.2
      %v524 = vmul.f32 %v454, 0.2
      %v525 = vmul.f32 %v459, 0.2
      %v526 = vmul.f32 %v462, 0.2
      %v527 = vmul.f32 %v467, 0.2
      %v528 = vmul.f32 %v470, 0.2
      %v529 = vmul.f32 %v475, 0.2
      %v530 = vsel %vm480, %v379, %v505
      %v531 = vsel %vm481, %v382, %v506
      %v532 = vsel %vm482, %v387, %v507
      %v533 = vsel %vm483, %v390, %v508
      %v534 = vsel %vm484, %v395, %v509
      %v535 = vsel %vm485, %v398, %v510
      %v536 = vsel %vm486, %v403, %v511
      %v537 = vsel %vm487, %v406, %v512
      %v538 = vsel %vm488, %v411, %v513
      %v539 = vsel %vm489, %v414, %v514
      %v540 = vsel %vm490, %v419, %v515
      %v541 = vsel %vm491, %v422, %v516
      %v542 = vsel %vm492, %v427, %v517
      %v543 = vsel %vm493, %v430, %v518
      %v544 = vsel %vm494, %v435, %v519
      %v545 = vsel %vm495, %v438, %v520
      %v546 = vsel %vm496, %v443, %v521
      %v547 = vsel %vm497, %v446, %v522
      %v548 = vsel %vm498, %v451, %v523
      %v549 = vsel %vm499, %v454, %v524
      %v550 = vsel %vm500, %v459, %v525
      %v551 = vsel %vm501, %v462, %v526
      %v552 = vsel %vm502, %v467, %v527
      %v553 = vsel %vm503, %v470, %v528
      %v554 = vsel %vm504, %v475, %v529
      %v555 = vpack.c.bf16 %v531, %v530
      %v556 = vpack.c.bf16 %v533, %v532
      %v557 = vpack.c.bf16 %v535, %v534
      %v558 = vpack.c.bf16 %v537, %v536
      %v559 = vpack.c.bf16 %v539, %v538
      %v560 = vpack.c.bf16 %v541, %v540
      %v561 = vpack.c.bf16 %v543, %v542
      %v562 = vpack.c.bf16 %v545, %v544
      %v563 = vpack.c.bf16 %v547, %v546
      %v564 = vpack.c.bf16 %v549, %v548
      %v565 = vpack.c.bf16 %v551, %v550
      %v566 = vpack.c.bf16 %v553, %v552
      %v567 = vpack.c.bf16 %v554, %v554
      %v581 = vunpack.c.l.b16 %v555
      %v582 = vunpack.c.h.b16 %v555
      %v583 = vunpack.c.l.b16 %v556
      %v584 = vunpack.c.h.b16 %v556
      %v585 = vunpack.c.l.b16 %v557
      %v586 = vunpack.c.h.b16 %v557
      %v587 = vunpack.c.l.b16 %v558
      %v588 = vunpack.c.h.b16 %v558
      %v589 = vunpack.c.l.b16 %v559
      %v590 = vunpack.c.h.b16 %v559
      %v591 = vunpack.c.l.b16 %v560
      %v592 = vunpack.c.h.b16 %v560
      %v593 = vunpack.c.l.b16 %v561
      %v594 = vunpack.c.h.b16 %v561
      %v595 = vunpack.c.l.b16 %v562
      %v596 = vunpack.c.h.b16 %v562
      %v597 = vunpack.c.l.b16 %v563
      %v598 = vunpack.c.h.b16 %v563
      %v599 = vunpack.c.l.b16 %v564
      %v600 = vunpack.c.h.b16 %v564
      %v601 = vunpack.c.l.b16 %v565
      %v602 = vunpack.c.h.b16 %v565
      %v603 = vunpack.c.l.b16 %v566
      %v604 = vunpack.c.h.b16 %v566
      %v605 = vunpack.c.l.b16 %v567
      %v606 = vpack.c.b16 %v581, %v581
      %v607 = vpack.c.b16 %v582, %v582
      %v608 = vpack.c.b16 %v583, %v583
      %v609 = vpack.c.b16 %v584, %v584
      %v610 = vpack.c.b16 %v585, %v585
      %v611 = vpack.c.b16 %v586, %v586
      %v612 = vpack.c.b16 %v587, %v587
      %v613 = vpack.c.b16 %v588, %v588
      %v614 = vpack.c.b16 %v589, %v589
      %v615 = vpack.c.b16 %v590, %v590
      %v616 = vpack.c.b16 %v591, %v591
      %v617 = vpack.c.b16 %v592, %v592
      %v618 = vpack.c.b16 %v593, %v593
      %v619 = vpack.c.b16 %v594, %v594
      %v620 = vpack.c.b16 %v595, %v595
      %v621 = vpack.c.b16 %v596, %v596
      %v622 = vpack.c.b16 %v597, %v597
      %v623 = vpack.c.b16 %v598, %v598
      %v624 = vpack.c.b16 %v599, %v599
      %v625 = vpack.c.b16 %v600, %v600
      %v626 = vpack.c.b16 %v601, %v601
      %v627 = vpack.c.b16 %v602, %v602
      %v628 = vpack.c.b16 %v603, %v603
      %v629 = vpack.c.b16 %v604, %v604
      %v630 = vpack.c.b16 %v605, %v605
      %656 = vst [vmem:[%s170] sm:$0xf] %v606
      %657 = vst [vmem:[%s170 + $0x4] sm:$0xf] %v607
      %658 = vst [vmem:[%s170 + $0x8] sm:$0xf] %v608
      %659 = vst [vmem:[%s170 + $0xc] sm:$0xf] %v609
      %660 = vst [vmem:[%s170 + $0x10] sm:$0xf] %v610
      %661 = vst [vmem:[%s170 + $0x14] sm:$0xf] %v611
      %662 = vst [vmem:[%s170 + $0x18] sm:$0xf] %v612
      %663 = vst [vmem:[%s170 + $0x1c] sm:$0xf] %v613
      %664 = vst [vmem:[%s170 + $0x20] sm:$0xf] %v614
      %665 = vst [vmem:[%s170 + $0x24] sm:$0xf] %v615
      %666 = vst [vmem:[%s170 + $0x28] sm:$0xf] %v616
      %667 = vst [vmem:[%s170 + $0x2c] sm:$0xf] %v617
      %668 = vst [vmem:[%s170 + $0x30] sm:$0xf] %v618
      %669 = vst [vmem:[%s170 + $0x34] sm:$0xf] %v619
      %670 = vst [vmem:[%s170 + $0x38] sm:$0xf] %v620
      %671 = vst [vmem:[%s170 + $0x3c] sm:$0xf] %v621
      %672 = vst [vmem:[%s170 + $0x40] sm:$0xf] %v622
      %673 = vst [vmem:[%s170 + $0x44] sm:$0xf] %v623
      %674 = vst [vmem:[%s170 + $0x48] sm:$0xf] %v624
      %675 = vst [vmem:[%s170 + $0x4c] sm:$0xf] %v625
      %676 = vst [vmem:[%s170 + $0x50] sm:$0xf] %v626
      %677 = vst [vmem:[%s170 + $0x54] sm:$0xf] %v627
      %678 = vst [vmem:[%s170 + $0x58] sm:$0xf] %v628
      %679 = vst [vmem:[%s170 + $0x5c] sm:$0xf] %v629
      %680 = vst [vmem:[%s170 + $0x60] sm:$0x3] %v630
      %p681 = scmp.lt.s32.totalorder %s14, 1
      %s682 = scalar_select %p681, %s14, 1
      %s683 = smul.addr %s682, 25
      %s684 = smul.addr %s683, 4
      %s685 = scalar_lea.vmem %s3, %s684
      // Predicated region
      $region33: #{discriminator_forward.3} parent=31 // pred_check
        %p686 = pneg %p100
      $region34: #{discriminator_forward.3} parent=31 // pred_check_branch
        %688 = sbr.rel (%p686) target = $region36
      $region35: #{discriminator_forward.3} parent=31 // pred_region
        _
      $region36: #{discriminator_forward.3} parent=31 // pred_fallthru
        _
    $region32: #{discriminator_forward.3} parent=5 // pred_fallthru
      _
    %p689 = scmp.le.s32.totalorder 2, %s9
    // Predicated region
    $region37: #{discriminator_forward.3} parent=5 // pred_check
      %p690 = pneg %p689
    $region38: #{discriminator_forward.3} parent=5 // pred_check_branch
      %692 = sbr.rel (%p690) target = $region40
    $region39: #{discriminator_forward.3} parent=5 // pred_region
      %s693 = ssub.s32 %s9, 2
      // Predicated region
      $region41: #{discriminator_forward.3} parent=39 // pred_check
        %p694 = pneg %p106
      $region42: #{discriminator_forward.3} parent=39 // pred_check_branch
        %696 = sbr.rel (%p694) target = $region44
      $region43: #{discriminator_forward.3} parent=39 // pred_region
        %p697 = scmp.lt.s32.totalorder %s15, 1
        %s698 = scalar_select %p697, %s15, 1
        %s699 = smul.addr %s698, 25
        %s700 = smul.addr %s699, 4
        %s701 = scalar_lea.vmem %s3, %s700
      $region44: #{discriminator_forward.3} parent=39 // pred_fallthru
        _
    $region40: #{discriminator_forward.3} parent=5 // pred_fallthru
      _
  $region6: #{discriminator_forward.3} parent=0 // loop_footer
    %s13 = sadd.s32 1, %s9
  $region7: #{discriminator_forward.3} parent=0 // loop_footer_branch
    %8 = sbr.rel target = $region3
  $region8: #{discriminator_forward.3} parent=0 // loop_exit
    _

// kernel: discriminator_forward.5
$region0: #{discriminator_forward.5}
  #allocation0 [shape = 'u32[]', space=smem, size = 0x4, offset = 0x4, fixed_abs, tag = 'smem constant byte address 0x4 - core index']
  #allocation1 [shape = 'u32[144,128]{1,0:T(1,128)}', space=vmem, size = 0x12000, scoped, tag = 'internal scratch']
  #allocation2 [shape = 'f32[1]{0:T(128)S(6)}', space=smem, size = 0x200, scoped, tag = 'scoped memory for discriminator_forward.5']
  %s0 = inlined_call_operand.vmem [shape: f32[2,49,256], index: 0, kind: input, shape index: {}]
  %s1 = inlined_call_operand.vmem [shape: f32[1,256], index: 1, kind: input, shape index: {}]
  %s2 = inlined_call_operand.vmem [shape: f32[1,256], index: 2, kind: input, shape index: {}]
  %s3 = inlined_call_operand.vmem [shape: f32[49,256], index: 3, kind: input, shape index: {}]
  %s4 = inlined_call_operand.<no memory space> [shape: f32[1], index: 4, kind: input, shape index: {}]
  %s5 = inlined_call_operand.vmem [shape: f32[2,1,128], index: 5, kind: output, shape index: {}]
  %s6 = sld [smem:[#allocation0]]
  $region53: #{discriminator_forward.5} parent=0
    _
  %s8 = ssub.s32 1, %s6
  %s9 = scalar_select 0, %s8, %s6
  %10 = sst [smem:[#allocation2]] %s4
  loop: start=0, step=1, limit=4
  $region2: #{discriminator_forward.5} parent=0 // loop_pre_header
    _
  $region3: #{discriminator_forward.5} parent=0 // loop_header
    %s12 = sphi 0, %s16
    %p13 = scmp.ge.s32.totalorder %s12, 4
    %s22 = sphi 0, %s24
    %s25 = sphi 0, %s22
    %s26 = sphi 0, %s25
    %s42 = sphi 0, %s26
    %s46 = sphi 0, %s46
    %s48 = sphi 0, %s46
    %s49 = sphi 0, %s48
    %s63 = sphi 0, %s49
    %s67 = sphi 0, %s67
    %s69 = sphi 0, %s67
    %s70 = sphi 0, %s69
    %s84 = sphi 0, %s70
    %s88 = sphi 0, %s88
    %s90 = sphi 0, %s88
    %s91 = sphi 0, %s90
    %s105 = sphi 0, %s91
    %s109 = sphi 0, %s109
    %s111 = sphi 0, %s109
    %s112 = sphi 0, %s111
    %s126 = sphi 0, %s112
    %s132 = sphi 0, %s134
    %s135 = sphi 0, %s132
    %s136 = sphi 0, %s135
    %s152 = sphi 0, %s136
  $region4: #{discriminator_forward.5} parent=0 // loop_header_branch
    %15 = sbr.rel (%p13) target = $region8
  $region5: #{discriminator_forward.5} parent=0 // loop_body
    %s17 = ssub.s32 %s12, 1
    %s18 = ssub.s32 %s12, 2
    %s19 = sadd.s32 %s12, 1
    %s20 = ssub.s32 %s12, %s19
    %p21 = scmp.eq.s32.totalorder %s20, 0
    %s23 = sadd.s32 %s22, 1
    %s24 = scalar_select %p21, %s22, %s23
    %p27 = pneg %p21
    %p28 = scmp.eq.s32.totalorder %s12, 1
    %p29 = por %p27, %p28
    %p30 = scmp.ne.s32.totalorder %s22, %s25
    %p31 = scmp.eq.s32.totalorder %s12, 0
    %p32 = por %p30, %p31
    %p33 = scmp.ne.s32.totalorder %s22, %s25
    %p34 = scmp.eq.s32.totalorder %s17, 1
    %p35 = por %p33, %p34
    %p36 = scmp.ne.s32.totalorder %s25, %s26
    %p37 = scmp.eq.s32.totalorder %s17, 0
    %p38 = por %p36, %p37
    %p39 = scmp.ne.s32.totalorder %s25, %s26
    %p40 = scmp.eq.s32.totalorder %s18, 1
    %p41 = por %p39, %p40
    %p43 = scmp.ne.s32.totalorder %s26, %s42
    %p44 = scmp.eq.s32.totalorder %s18, 0
    %p45 = por %p43, %p44
    %s47 = sadd.s32 %s46, 1
    %p50 = scmp.eq.s32.totalorder %s12, 1
    %p51 = scmp.ne.s32.totalorder %s46, %s48
    %p52 = scmp.eq.s32.totalorder %s12, 0
    %p53 = por %p51, %p52
    %p54 = scmp.ne.s32.totalorder %s46, %s48
    %p55 = scmp.eq.s32.totalorder %s17, 1
    %p56 = por %p54, %p55
    %p57 = scmp.ne.s32.totalorder %s48, %s49
    %p58 = scmp.eq.s32.totalorder %s17, 0
    %p59 = por %p57, %p58
    %p60 = scmp.ne.s32.totalorder %s48, %s49
    %p61 = scmp.eq.s32.totalorder %s18, 1
    %p62 = por %p60, %p61
    %p64 = scmp.ne.s32.totalorder %s49, %s63
    %p65 = scmp.eq.s32.totalorder %s18, 0
    %p66 = por %p64, %p65
    %s68 = sadd.s32 %s67, 1
    %p71 = scmp.eq.s32.totalorder %s12, 1
    %p72 = scmp.ne.s32.totalorder %s67, %s69
    %p73 = scmp.eq.s32.totalorder %s12, 0
    %p74 = por %p72, %p73
    %p75 = scmp.ne.s32.totalorder %s67, %s69
    %p76 = scmp.eq.s32.totalorder %s17, 1
    %p77 = por %p75, %p76
    %p78 = scmp.ne.s32.totalorder %s69, %s70
    %p79 = scmp.eq.s32.totalorder %s17, 0
    %p80 = por %p78, %p79
    %p81 = scmp.ne.s32.totalorder %s69, %s70
    %p82 = scmp.eq.s32.totalorder %s18, 1
    %p83 = por %p81, %p82
    %p85 = scmp.ne.s32.totalorder %s70, %s84
    %p86 = scmp.eq.s32.totalorder %s18, 0
    %p87 = por %p85, %p86
    %s89 = sadd.s32 %s88, 1
    %p92 = scmp.eq.s32.totalorder %s12, 1
    %p93 = scmp.ne.s32.totalorder %s88, %s90
    %p94 = scmp.eq.s32.totalorder %s12, 0
    %p95 = por %p93, %p94
    %p96 = scmp.ne.s32.totalorder %s88, %s90
    %p97 = scmp.eq.s32.totalorder %s17, 1
    %p98 = por %p96, %p97
    %p99 = scmp.ne.s32.totalorder %s90, %s91
    %p100 = scmp.eq.s32.totalorder %s17, 0
    %p101 = por %p99, %p100
    %p102 = scmp.ne.s32.totalorder %s90, %s91
    %p103 = scmp.eq.s32.totalorder %s18, 1
    %p104 = por %p102, %p103
    %p106 = scmp.ne.s32.totalorder %s91, %s105
    %p107 = scmp.eq.s32.totalorder %s18, 0
    %p108 = por %p106, %p107
    %s110 = sadd.s32 %s109, 1
    %p113 = scmp.eq.s32.totalorder %s12, 1
    %p114 = scmp.ne.s32.totalorder %s109, %s111
    %p115 = scmp.eq.s32.totalorder %s12, 0
    %p116 = por %p114, %p115
    %p117 = scmp.ne.s32.totalorder %s109, %s111
    %p118 = scmp.eq.s32.totalorder %s17, 1
    %p119 = por %p117, %p118
    %p120 = scmp.ne.s32.totalorder %s111, %s112
    %p121 = scmp.eq.s32.totalorder %s17, 0
    %p122 = por %p120, %p121
    %p123 = scmp.ne.s32.totalorder %s111, %s112
    %p124 = scmp.eq.s32.totalorder %s18, 1
    %p125 = por %p123, %p124
    %p127 = scmp.ne.s32.totalorder %s112, %s126
    %p128 = scmp.eq.s32.totalorder %s18, 0
    %p129 = por %p127, %p128
    %s130 = ssub.s32 %s12, %s19
    %p131 = scmp.eq.s32.totalorder %s130, 0
    %s133 = sadd.s32 %s132, 1
    %s134 = scalar_select %p131, %s132, %s133
    %p137 = pneg %p131
    %p138 = scmp.eq.s32.totalorder %s12, 1
    %p139 = por %p137, %p138
    %p140 = scmp.ne.s32.totalorder %s132, %s135
    %p141 = scmp.eq.s32.totalorder %s12, 0
    %p142 = por %p140, %p141
    %p143 = scmp.ne.s32.totalorder %s132, %s135
    %p144 = scmp.eq.s32.totalorder %s17, 1
    %p145 = por %p143, %p144
    %p146 = scmp.ne.s32.totalorder %s135, %s136
    %p147 = scmp.eq.s32.totalorder %s17, 0
    %p148 = por %p146, %p147
    %p149 = scmp.ne.s32.totalorder %s135, %s136
    %p150 = scmp.eq.s32.totalorder %s18, 1
    %p151 = por %p149, %p150
    %p153 = scmp.ne.s32.totalorder %s136, %s152
    %p154 = scmp.eq.s32.totalorder %s18, 0
    %p155 = por %p153, %p154
    %p156 = scmp.le.s32.totalorder 1, %s12
    %p157 = scmp.lt.s32.totalorder %s12, 3
    %p158 = pnand %p156, %p157
    %p159 = pneg %p158
    // Predicated region
    $region9: #{discriminator_forward.5} parent=5 // pred_check
      _
    $region10: #{discriminator_forward.5} parent=5 // pred_check_branch
      %161 = sbr.rel (%p158) target = $region12
    $region11: #{discriminator_forward.5} parent=5 // pred_region
      %s162 = ssub.s32 %s12, 1
      // Predicated region
      $region13: #{discriminator_forward.5} parent=11 // pred_check
        %p163 = pneg %p59
      $region14: #{discriminator_forward.5} parent=11 // pred_check_branch
        %165 = sbr.rel (%p163) target = $region16
      $region15: #{discriminator_forward.5} parent=11 // pred_region
        _
      $region16: #{discriminator_forward.5} parent=11 // pred_fallthru
        _
      // Predicated region
      $region17: #{discriminator_forward.5} parent=11 // pred_check
        %p166 = pneg %p80
      $region18: #{discriminator_forward.5} parent=11 // pred_check_branch
        %168 = sbr.rel (%p166) target = $region20
      $region19: #{discriminator_forward.5} parent=11 // pred_region
        _
      $region20: #{discriminator_forward.5} parent=11 // pred_fallthru
        _
      // Predicated region
      $region21: #{discriminator_forward.5} parent=11 // pred_check
        %p169 = pneg %p101
      $region22: #{discriminator_forward.5} parent=11 // pred_check_branch
        %171 = sbr.rel (%p169) target = $region24
      $region23: #{discriminator_forward.5} parent=11 // pred_region
        _
      $region24: #{discriminator_forward.5} parent=11 // pred_fallthru
        _
      // Predicated region
      $region25: #{discriminator_forward.5} parent=11 // pred_check
        %p172 = pneg %p122
      $region26: #{discriminator_forward.5} parent=11 // pred_check_branch
        %174 = sbr.rel (%p172) target = $region28
      $region27: #{discriminator_forward.5} parent=11 // pred_region
        _
      $region28: #{discriminator_forward.5} parent=11 // pred_fallthru
        _
    $region12: #{discriminator_forward.5} parent=5 // pred_fallthru
      _
    %p175 = scmp.lt.s32.totalorder %s12, 2
    // Predicated region
    $region29: #{discriminator_forward.5} parent=5 // pred_check
      %p176 = pneg %p175
    $region30: #{discriminator_forward.5} parent=5 // pred_check_branch
      %178 = sbr.rel (%p176) target = $region32
    $region31: #{discriminator_forward.5} parent=5 // pred_region
      // Predicated region
      $region33: #{discriminator_forward.5} parent=31 // pred_check
        %p179 = pneg %p32
      $region34: #{discriminator_forward.5} parent=31 // pred_check_branch
        %181 = sbr.rel (%p179) target = $region36
      $region35: #{discriminator_forward.5} parent=31 // pred_region
        %p182 = scmp.lt.s32.totalorder %s12, 1
        %s183 = scalar_select %p182, %s12, 1
        %s184 = smul.addr %s183, 14
        %s185 = smul.addr %s184, 8
        %s186 = scalar_lea.vmem %s0, %s185
      $region36: #{discriminator_forward.5} parent=31 // pred_fallthru
        _
    $region32: #{discriminator_forward.5} parent=5 // pred_fallthru
      _
    %p187 = scmp.le.s32.totalorder 1, %s12
    %p188 = scmp.lt.s32.totalorder %s12, 3
    %p189 = pnand %p187, %p188
    %p190 = pneg %p189
    // Predicated region
    $region37: #{discriminator_forward.5} parent=5 // pred_check
      _
    $region38: #{discriminator_forward.5} parent=5 // pred_check_branch
      %192 = sbr.rel (%p189) target = $region40
    $region39: #{discriminator_forward.5} parent=5 // pred_region
      %s193 = ssub.s32 %s12, 1
      %p194 = scmp.lt.s32.totalorder %s17, 1
      %s195 = scalar_select %p194, %s17, 1
      %s196 = smul.addr %s195, 14
      %s197 = smul.addr %s196, 8
      %s198 = scalar_lea.vmem %s0, %s197
      %p199 = pneg %p38
      %p200 = pneg %p35
      %p201 = pneg %p59
      %p202 = pneg %p56
      %p203 = pneg %p80
      %p204 = pneg %p77
      %p205 = pneg %p101
      %p206 = pneg %p98
      %p207 = pneg %p122
      %p208 = pneg %p119
      %p209 = pneg %p148
      %p210 = pneg %p145
      %p211 = scmp.lt.s32.totalorder %s17, 1
      %s212 = scalar_select %p211, %s17, 1
      %s213 = scalar_lea.vmem %s5, %s212
      %p214 = scmp.lt.s32.totalorder %s17, 1
      %s215 = scalar_select %p214, %s17, 1
      %s216 = smul.addr %s215, 14
      %s217 = smul.addr %s216, 8
      %s218 = scalar_lea.vmem %s0, %s217
      %p219 = scmp.lt.s32.totalorder %s17, 1
      %s220 = scalar_select %p219, %s17, 1
      %s221 = scalar_lea.vmem %s5, %s220
      %v222 = vld [vmem:[%s218] sm:$0xff]
      %v223 = vld [vmem:[%s218 + $0x8] sm:$0xff]
      %v224 = vld [vmem:[%s218 + $0x10] sm:$0xff]
      %v225 = vld [vmem:[%s218 + $0x18] sm:$0xff]
      %v226 = vld [vmem:[%s218 + $0x20] sm:$0xff]
      %v227 = vld [vmem:[%s218 + $0x28] sm:$0xff]
      %v228 = vld [vmem:[%s218 + $0x30] sm:$0xff]
      %v229 = vld [vmem:[%s218 + $0x38] sm:$0xff]
      %v230 = vld [vmem:[%s218 + $0x40] sm:$0xff]
      %v231 = vld [vmem:[%s218 + $0x48] sm:$0xff]
      %v232 = vld [vmem:[%s218 + $0x50] sm:$0xff]
      %v233 = vld [vmem:[%s218 + $0x58] sm:$0xff]
      %v234 = vld [vmem:[%s218 + $0x60] sm:$0x1]
      %v235 = vld [vmem:[%s218 + $0x68] sm:$0x1]
      %v236 = vld [vmem:[%s1] sm:$0x3]
      %v238 = vlaneseq
      %v239 = vshrl.u32 %v238, 7
      %v240 = vsub.s32 0, %v239
      %v241 = vrot.slane %v236, %v240
      %v242 = vlaneseq
      %v243 = vshrl.u32 %v242, 7
      %v244 = vsub.s32 1, %v243
      %v245 = vrot.slane %v236, %v244
      %v248 = vmul.f32 %v222, %v241
      %v249 = vmul.f32 %v223, %v245
      %v250 = vmul.f32 %v224, %v241
      %v251 = vmul.f32 %v225, %v245
      %v252 = vmul.f32 %v226, %v241
      %v253 = vmul.f32 %v227, %v245
      %v254 = vmul.f32 %v228, %v241
      %v255 = vmul.f32 %v229, %v245
      %v256 = vmul.f32 %v230, %v241
      %v257 = vmul.f32 %v231, %v245
      %v258 = vmul.f32 %v232, %v241
      %v259 = vmul.f32 %v233, %v245
      %v260 = vmul.f32 %v234, %v241
      %v261 = vmul.f32 %v235, %v245
      %v262 = vld [vmem:[%s2] sm:$0x3]
      %v264 = vlaneseq
      %v265 = vshrl.u32 %v264, 7
      %v266 = vsub.s32 0, %v265
      %v267 = vrot.slane %v262, %v266
      %v268 = vlaneseq
      %v269 = vshrl.u32 %v268, 7
      %v270 = vsub.s32 1, %v269
      %v271 = vrot.slane %v262, %v270
      %v274 = vadd.f32 %v248, %v267
      %v275 = vadd.f32 %v249, %v271
      %v276 = vadd.f32 %v250, %v267
      %v277 = vadd.f32 %v251, %v271
      %v278 = vadd.f32 %v252, %v267
      %v279 = vadd.f32 %v253, %v271
      %v280 = vadd.f32 %v254, %v267
      %v281 = vadd.f32 %v255, %v271
      %v282 = vadd.f32 %v256, %v267
      %v283 = vadd.f32 %v257, %v271
      %v284 = vadd.f32 %v258, %v267
      %v285 = vadd.f32 %v259, %v271
      %v286 = vadd.f32 %v260, %v267
      %v287 = vadd.f32 %v261, %v271
      %vm288 = vcmp.gt.f32.partialorder %v274, 0.0
      %vm289 = vcmp.gt.f32.partialorder %v275, 0.0
      %vm290 = vcmp.gt.f32.partialorder %v276, 0.0
      %vm291 = vcmp.gt.f32.partialorder %v277, 0.0
      %vm292 = vcmp.gt.f32.partialorder %v278, 0.0
      %vm293 = vcmp.gt.f32.partialorder %v279, 0.0
      %vm294 = vcmp.gt.f32.partialorder %v280, 0.0
      %vm295 = vcmp.gt.f32.partialorder %v281, 0.0
      %vm296 = vcmp.gt.f32.partialorder %v282, 0.0
      %vm297 = vcmp.gt.f32.partialorder %v283, 0.0
      %vm298 = vcmp.gt.f32.partialorder %v284, 0.0
      %vm299 = vcmp.gt.f32.partialorder %v285, 0.0
      %vm300 = vcmp.gt.f32.partialorder %v286, 0.0
      %vm301 = vcmp.gt.f32.partialorder %v287, 0.0
      %v302 = vmul.f32 %v274, 0.2
      %v303 = vmul.f32 %v275, 0.2
      %v304 = vmul.f32 %v276, 0.2
      %v305 = vmul.f32 %v277, 0.2
      %v306 = vmul.f32 %v278, 0.2
      %v307 = vmul.f32 %v279, 0.2
      %v308 = vmul.f32 %v280, 0.2
      %v309 = vmul.f32 %v281, 0.2
      %v310 = vmul.f32 %v282, 0.2
      %v311 = vmul.f32 %v283, 0.2
      %v312 = vmul.f32 %v284, 0.2
      %v313 = vmul.f32 %v285, 0.2
      %v314 = vmul.f32 %v286, 0.2
      %v315 = vmul.f32 %v287, 0.2
      %v316 = vsel %vm288, %v274, %v302
      %v317 = vsel %vm289, %v275, %v303
      %v318 = vsel %vm290, %v276, %v304
      %v319 = vsel %vm291, %v277, %v305
      %v320 = vsel %vm292, %v278, %v306
      %v321 = vsel %vm293, %v279, %v307
      %v322 = vsel %vm294, %v280, %v308
      %v323 = vsel %vm295, %v281, %v309
      %v324 = vsel %vm296, %v282, %v310
      %v325 = vsel %vm297, %v283, %v311
      %v326 = vsel %vm298, %v284, %v312
      %v327 = vsel %vm299, %v285, %v313
      %v328 = vsel %vm300, %v286, %v314
      %v329 = vsel %vm301, %v287, %v315
      %v330 = vld [vmem:[%s3] sm:$0xff]
      %v331 = vld [vmem:[%s3 + $0x8] sm:$0xff]
      %v332 = vld [vmem:[%s3 + $0x10] sm:$0xff]
      %v333 = vld [vmem:[%s3 + $0x18] sm:$0xff]
      %v334 = vld [vmem:[%s3 + $0x20] sm:$0xff]
      %v335 = vld [vmem:[%s3 + $0x28] sm:$0xff]
      %v336 = vld [vmem:[%s3 + $0x30] sm:$0xff]
      %v337 = vld [vmem:[%s3 + $0x38] sm:$0xff]
      %v338 = vld [vmem:[%s3 + $0x40] sm:$0xff]
      %v339 = vld [vmem:[%s3 + $0x48] sm:$0xff]
      %v340 = vld [vmem:[%s3 + $0x50] sm:$0xff]
      %v341 = vld [vmem:[%s3 + $0x58] sm:$0xff]
      %v342 = vld [vmem:[%s3 + $0x60] sm:$0x1]
      %v343 = vld [vmem:[%s3 + $0x68] sm:$0x1]
      %v344 = vmul.f32 %v316, %v330
      %v345 = vmul.f32 %v317, %v331
      %v346 = vmul.f32 %v318, %v332
      %v347 = vmul.f32 %v319, %v333
      %v348 = vmul.f32 %v320, %v334
      %v349 = vmul.f32 %v321, %v335
      %v350 = vmul.f32 %v322, %v336
      %v351 = vmul.f32 %v323, %v337
      %v352 = vmul.f32 %v324, %v338
      %v353 = vmul.f32 %v325, %v339
      %v354 = vmul.f32 %v326, %v340
      %v355 = vmul.f32 %v327, %v341
      %v356 = vmul.f32 %v328, %v342
      %v357 = vmul.f32 %v329, %v343
      %v358 = vadd.f32 %v344, %v345
      %v359 = vadd.f32 %v358, %v346
      %v360 = vadd.f32 %v359, %v347
      %v361 = vadd.f32 %v360, %v348
      %v362 = vadd.f32 %v361, %v349
      %v363 = vadd.f32 %v362, %v350
      %v364 = vadd.f32 %v363, %v351
      %v365 = vadd.f32 %v364, %v352
      %v366 = vadd.f32 %v365, %v353
      %v367 = vadd.f32 %v366, %v354
      %v368 = vadd.f32 %v367, %v355
      %vm369 = vcmask 1040384
      %v370 = vsel %vm369, %v356, 0.0
      %v371 = vadd.f32 %v368, %v370
      %v372 = vsel %vm369, %v357, 0.0
      %v373 = vadd.f32 %v371, %v372
      %374 = vadd.xlane.f32.xlu0 %v373
      %v375 = vpop.xlane.xlu0 %374
      %v376 = vrot.slane %v375, 4
      %v377 = vadd.f32 %v375, %v376
      %v378 = vrot.slane %v377, 2
      %v379 = vadd.f32 %v377, %v378
      %v380 = vrot.slane %v379, 1
      %v381 = vadd.f32 %v379, %v380
      %s382 = vtos %v381
      %s383 = sld [smem:[#allocation2]]
      %s384 = sadd.f32 %s382, %s383
      %s385 = ssub.f32 0.0, %s384
      %v386 = vstv %s385
      %v387 = vmul.f32 %v386, 1.442695
      %v388 = vpow.pop %v387
      %s389 = vtos %v388
      %s390 = sadd.f32 %s389, 1.0
      %v391 = vstv %s390
      %v392 = vrcp.pop %v391
      %s393 = vtos %v392
      %v394 = vstv %s393
      %395 = vst [vmem:[%s221] sm:$0x1] %v394
      %p396 = scmp.lt.s32.totalorder %s17, 1
      %s397 = scalar_select %p396, %s17, 1
      %s398 = scalar_lea.vmem %s5, %s397
      // Predicated region
      $region41: #{discriminator_forward.5} parent=39 // pred_check
        %p399 = pneg %p145
      $region42: #{discriminator_forward.5} parent=39 // pred_check_branch
        %401 = sbr.rel (%p399) target = $region44
      $region43: #{discriminator_forward.5} parent=39 // pred_region
        _
      $region44: #{discriminator_forward.5} parent=39 // pred_fallthru
        _
    $region40: #{discriminator_forward.5} parent=5 // pred_fallthru
      _
    %p402 = scmp.le.s32.totalorder 2, %s12
    // Predicated region
    $region45: #{discriminator_forward.5} parent=5 // pred_check
      %p403 = pneg %p402
    $region46: #{discriminator_forward.5} parent=5 // pred_check_branch
      %405 = sbr.rel (%p403) target = $region48
    $region47: #{discriminator_forward.5} parent=5 // pred_region
      %s406 = ssub.s32 %s12, 2
      // Predicated region
      $region49: #{discriminator_forward.5} parent=47 // pred_check
        %p407 = pneg %p151
      $region50: #{discriminator_forward.5} parent=47 // pred_check_branch
        %409 = sbr.rel (%p407) target = $region52
      $region51: #{discriminator_forward.5} parent=47 // pred_region
        %p410 = scmp.lt.s32.totalorder %s18, 1
        %s411 = scalar_select %p410, %s18, 1
        %s412 = scalar_lea.vmem %s5, %s411
      $region52: #{discriminator_forward.5} parent=47 // pred_fallthru
        _
    $region48: #{discriminator_forward.5} parent=5 // pred_fallthru
      _
  $region6: #{discriminator_forward.5} parent=0 // loop_footer
    %s16 = sadd.s32 1, %s12
  $region7: #{discriminator_forward.5} parent=0 // loop_footer_branch
    %11 = sbr.rel target = $region3
  $region8: #{discriminator_forward.5} parent=0 // loop_exit
    _

// kernel: discriminator_forward.4
$region0: #{discriminator_forward.4}
  #allocation0 [shape = 'u32[]', space=smem, size = 0x4, offset = 0x4, fixed_abs, tag = 'smem constant byte address 0x4 - core index']
  #allocation1 [shape = 'u32[144,128]{1,0:T(1,128)}', space=vmem, size = 0x12000, scoped, tag = 'internal scratch']
  %s0 = inlined_call_operand.vmem [shape: bf16[2,49,2048], index: 0, kind: input, shape index: {}]
  %s1 = inlined_call_operand.vmem [shape: bf16[2048,256], index: 1, kind: input, shape index: {}]
  %s2 = inlined_call_operand.vmem [shape: f32[2,49,256], index: 2, kind: output, shape index: {0}]
  %s3 = inlined_call_operand.vmem [shape: f32[2,1,256], index: 3, kind: output, shape index: {1}]
  %s4 = inlined_call_operand.vmem [shape: f32[2,1,256], index: 4, kind: output, shape index: {2}]
  %5 = xla_tuple %s2, %s3, %s4
  %s6 = sld [smem:[#allocation0]]
  $region57: #{discriminator_forward.4} parent=0
    _
  %s8 = ssub.s32 1, %s6
  %s9 = scalar_select 0, %s8, %s6
  loop: start=0, step=1, limit=4
  $region2: #{discriminator_forward.4} parent=0 // loop_pre_header
    _
  $region3: #{discriminator_forward.4} parent=0 // loop_header
    %s11 = sphi 0, %s15
    %p12 = scmp.ge.s32.totalorder %s11, 4
    %s21 = sphi 0, %s23
    %s24 = sphi 0, %s21
    %s25 = sphi 0, %s24
    %s41 = sphi 0, %s25
    %s45 = sphi 0, %s45
    %s47 = sphi 0, %s45
    %s48 = sphi 0, %s47
    %s62 = sphi 0, %s48
    %s68 = sphi 0, %s70
    %s71 = sphi 0, %s68
    %s72 = sphi 0, %s71
    %s88 = sphi 0, %s72
    %s94 = sphi 0, %s96
    %s97 = sphi 0, %s94
    %s98 = sphi 0, %s97
    %s114 = sphi 0, %s98
    %s120 = sphi 0, %s122
    %s123 = sphi 0, %s120
    %s124 = sphi 0, %s123
    %s140 = sphi 0, %s124
  $region4: #{discriminator_forward.4} parent=0 // loop_header_branch
    %14 = sbr.rel (%p12) target = $region8
  $region5: #{discriminator_forward.4} parent=0 // loop_body
    %s16 = ssub.s32 %s11, 1
    %s17 = ssub.s32 %s11, 2
    %s18 = sadd.s32 %s11, 1
    %s19 = ssub.s32 %s11, %s18
    %p20 = scmp.eq.s32.totalorder %s19, 0
    %s22 = sadd.s32 %s21, 1
    %s23 = scalar_select %p20, %s21, %s22
    %p26 = pneg %p20
    %p27 = scmp.eq.s32.totalorder %s11, 1
    %p28 = por %p26, %p27
    %p29 = scmp.ne.s32.totalorder %s21, %s24
    %p30 = scmp.eq.s32.totalorder %s11, 0
    %p31 = por %p29, %p30
    %p32 = scmp.ne.s32.totalorder %s21, %s24
    %p33 = scmp.eq.s32.totalorder %s16, 1
    %p34 = por %p32, %p33
    %p35 = scmp.ne.s32.totalorder %s24, %s25
    %p36 = scmp.eq.s32.totalorder %s16, 0
    %p37 = por %p35, %p36
    %p38 = scmp.ne.s32.totalorder %s24, %s25
    %p39 = scmp.eq.s32.totalorder %s17, 1
    %p40 = por %p38, %p39
    %p42 = scmp.ne.s32.totalorder %s25, %s41
    %p43 = scmp.eq.s32.totalorder %s17, 0
    %p44 = por %p42, %p43
    %s46 = sadd.s32 %s45, 1
    %p49 = scmp.eq.s32.totalorder %s11, 1
    %p50 = scmp.ne.s32.totalorder %s45, %s47
    %p51 = scmp.eq.s32.totalorder %s11, 0
    %p52 = por %p50, %p51
    %p53 = scmp.ne.s32.totalorder %s45, %s47
    %p54 = scmp.eq.s32.totalorder %s16, 1
    %p55 = por %p53, %p54
    %p56 = scmp.ne.s32.totalorder %s47, %s48
    %p57 = scmp.eq.s32.totalorder %s16, 0
    %p58 = por %p56, %p57
    %p59 = scmp.ne.s32.totalorder %s47, %s48
    %p60 = scmp.eq.s32.totalorder %s17, 1
    %p61 = por %p59, %p60
    %p63 = scmp.ne.s32.totalorder %s48, %s62
    %p64 = scmp.eq.s32.totalorder %s17, 0
    %p65 = por %p63, %p64
    %s66 = ssub.s32 %s11, %s18
    %p67 = scmp.eq.s32.totalorder %s66, 0
    %s69 = sadd.s32 %s68, 1
    %s70 = scalar_select %p67, %s68, %s69
    %p73 = pneg %p67
    %p74 = scmp.eq.s32.totalorder %s11, 1
    %p75 = por %p73, %p74
    %p76 = scmp.ne.s32.totalorder %s68, %s71
    %p77 = scmp.eq.s32.totalorder %s11, 0
    %p78 = por %p76, %p77
    %p79 = scmp.ne.s32.totalorder %s68, %s71
    %p80 = scmp.eq.s32.totalorder %s16, 1
    %p81 = por %p79, %p80
    %p82 = scmp.ne.s32.totalorder %s71, %s72
    %p83 = scmp.eq.s32.totalorder %s16, 0
    %p84 = por %p82, %p83
    %p85 = scmp.ne.s32.totalorder %s71, %s72
    %p86 = scmp.eq.s32.totalorder %s17, 1
    %p87 = por %p85, %p86
    %p89 = scmp.ne.s32.totalorder %s72, %s88
    %p90 = scmp.eq.s32.totalorder %s17, 0
    %p91 = por %p89, %p90
    %s92 = ssub.s32 %s11, %s18
    %p93 = scmp.eq.s32.totalorder %s92, 0
    %s95 = sadd.s32 %s94, 1
    %s96 = scalar_select %p93, %s94, %s95
    %p99 = pneg %p93
    %p100 = scmp.eq.s32.totalorder %s11, 1
    %p101 = por %p99, %p100
    %p102 = scmp.ne.s32.totalorder %s94, %s97
    %p103 = scmp.eq.s32.totalorder %s11, 0
    %p104 = por %p102, %p103
    %p105 = scmp.ne.s32.totalorder %s94, %s97
    %p106 = scmp.eq.s32.totalorder %s16, 1
    %p107 = por %p105, %p106
    %p108 = scmp.ne.s32.totalorder %s97, %s98
    %p109 = scmp.eq.s32.totalorder %s16, 0
    %p110 = por %p108, %p109
    %p111 = scmp.ne.s32.totalorder %s97, %s98
    %p112 = scmp.eq.s32.totalorder %s17, 1
    %p113 = por %p111, %p112
    %p115 = scmp.ne.s32.totalorder %s98, %s114
    %p116 = scmp.eq.s32.totalorder %s17, 0
    %p117 = por %p115, %p116
    %s118 = ssub.s32 %s11, %s18
    %p119 = scmp.eq.s32.totalorder %s118, 0
    %s121 = sadd.s32 %s120, 1
    %s122 = scalar_select %p119, %s120, %s121
    %p125 = pneg %p119
    %p126 = scmp.eq.s32.totalorder %s11, 1
    %p127 = por %p125, %p126
    %p128 = scmp.ne.s32.totalorder %s120, %s123
    %p129 = scmp.eq.s32.totalorder %s11, 0
    %p130 = por %p128, %p129
    %p131 = scmp.ne.s32.totalorder %s120, %s123
    %p132 = scmp.eq.s32.totalorder %s16, 1
    %p133 = por %p131, %p132
    %p134 = scmp.ne.s32.totalorder %s123, %s124
    %p135 = scmp.eq.s32.totalorder %s16, 0
    %p136 = por %p134, %p135
    %p137 = scmp.ne.s32.totalorder %s123, %s124
    %p138 = scmp.eq.s32.totalorder %s17, 1
    %p139 = por %p137, %p138
    %p141 = scmp.ne.s32.totalorder %s124, %s140
    %p142 = scmp.eq.s32.totalorder %s17, 0
    %p143 = por %p141, %p142
    %p144 = scmp.le.s32.totalorder 1, %s11
    %p145 = scmp.lt.s32.totalorder %s11, 3
    %p146 = pnand %p144, %p145
    %p147 = pneg %p146
    // Predicated region
    $region9: #{discriminator_forward.4} parent=5 // pred_check
      _
    $region10: #{discriminator_forward.4} parent=5 // pred_check_branch
      %149 = sbr.rel (%p146) target = $region12
    $region11: #{discriminator_forward.4} parent=5 // pred_region
      %s150 = ssub.s32 %s11, 1
      // Predicated region
      $region13: #{discriminator_forward.4} parent=11 // pred_check
        %p151 = pneg %p58
      $region14: #{discriminator_forward.4} parent=11 // pred_check_branch
        %153 = sbr.rel (%p151) target = $region16
      $region15: #{discriminator_forward.4} parent=11 // pred_region
        _
      $region16: #{discriminator_forward.4} parent=11 // pred_fallthru
        _
    $region12: #{discriminator_forward.4} parent=5 // pred_fallthru
      _
    %p154 = scmp.lt.s32.totalorder %s11, 2
    // Predicated region
    $region17: #{discriminator_forward.4} parent=5 // pred_check
      %p155 = pneg %p154
    $region18: #{discriminator_forward.4} parent=5 // pred_check_branch
      %157 = sbr.rel (%p155) target = $region20
    $region19: #{discriminator_forward.4} parent=5 // pred_region
      // Predicated region
      $region21: #{discriminator_forward.4} parent=19 // pred_check
        %p158 = pneg %p31
      $region22: #{discriminator_forward.4} parent=19 // pred_check_branch
        %160 = sbr.rel (%p158) target = $region24
      $region23: #{discriminator_forward.4} parent=19 // pred_region
        %p161 = scmp.lt.s32.totalorder %s11, 1
        %s162 = scalar_select %p161, %s11, 1
        %s163 = smul.addr %s162, 112
        %s164 = smul.addr %s163, 4
        %s165 = scalar_lea.vmem %s0, %s164
      $region24: #{discriminator_forward.4} parent=19 // pred_fallthru
        _
    $region20: #{discriminator_forward.4} parent=5 // pred_fallthru
      _
    %p166 = scmp.le.s32.totalorder 1, %s11
    %p167 = scmp.lt.s32.totalorder %s11, 3
    %p168 = pnand %p166, %p167
    %p169 = pneg %p168
    // Predicated region
    $region25: #{discriminator_forward.4} parent=5 // pred_check
      _
    $region26: #{discriminator_forward.4} parent=5 // pred_check_branch
      %171 = sbr.rel (%p168) target = $region28
    $region27: #{discriminator_forward.4} parent=5 // pred_region
      %s172 = ssub.s32 %s11, 1
      %p173 = scmp.lt.s32.totalorder %s16, 1
      %s174 = scalar_select %p173, %s16, 1
      %s175 = smul.addr %s174, 112
      %s176 = smul.addr %s175, 4
      %s177 = scalar_lea.vmem %s0, %s176
      %p178 = pneg %p37
      %p179 = pneg %p34
      %p180 = pneg %p58
      %p181 = pneg %p55
      %p182 = pneg %p84
      %p183 = pneg %p81
      %p184 = scmp.lt.s32.totalorder %s16, 1
      %s185 = scalar_select %p184, %s16, 1
      %s186 = smul.addr %s185, 14
      %s187 = smul.addr %s186, 8
      %s188 = scalar_lea.vmem %s2, %s187
      %p189 = pneg %p110
      %p190 = pneg %p107
      %p191 = scmp.lt.s32.totalorder %s16, 1
      %s192 = scalar_select %p191, %s16, 1
      %s193 = smul.addr %s192, 2
      %s194 = scalar_lea.vmem %s3, %s193
      %p195 = pneg %p136
      %p196 = pneg %p133
      %p197 = scmp.lt.s32.totalorder %s16, 1
      %s198 = scalar_select %p197, %s16, 1
      %s199 = smul.addr %s198, 2
      %s200 = scalar_lea.vmem %s4, %s199
      %p201 = scmp.lt.s32.totalorder %s16, 1
      %s202 = scalar_select %p201, %s16, 1
      %s203 = smul.addr %s202, 112
      %s204 = smul.addr %s203, 4
      %s205 = scalar_lea.vmem %s0, %s204
      %p206 = scmp.lt.s32.totalorder %s16, 1
      %s207 = scalar_select %p206, %s16, 1
      %s208 = smul.addr %s207, 14
      %s209 = smul.addr %s208, 8
      %s210 = scalar_lea.vmem %s2, %s209
      %p211 = scmp.lt.s32.totalorder %s16, 1
      %s212 = scalar_select %p211, %s16, 1
      %s213 = smul.addr %s212, 2
      %s214 = scalar_lea.vmem %s3, %s213
      %p215 = scmp.lt.s32.totalorder %s16, 1
      %s216 = scalar_select %p215, %s16, 1
      %s217 = smul.addr %s216, 2
      %s218 = scalar_lea.vmem %s4, %s217
      %v219 = vld [vmem:[%s205] sm:$0xff]
      %v220 = vld [vmem:[%s205 + $0x8] sm:$0xff]
      %v221 = vld [vmem:[%s205 + $0x10] sm:$0xff]
      %v222 = vld [vmem:[%s205 + $0x18] sm:$0xff]
      %v223 = vld [vmem:[%s205 + $0x20] sm:$0xff]
      %v224 = vld [vmem:[%s205 + $0x28] sm:$0xff]
      %v225 = vld [vmem:[%s205 + $0x30] sm:$0xff]
      %v226 = vld [vmem:[%s205 + $0x38] sm:$0xff]
      %v227 = vld [vmem:[%s205 + $0x40] sm:$0xff]
      %v228 = vld [vmem:[%s205 + $0x48] sm:$0xff]
      %v229 = vld [vmem:[%s205 + $0x50] sm:$0xff]
      %v230 = vld [vmem:[%s205 + $0x58] sm:$0xff]
      %v231 = vld [vmem:[%s205 + $0x60] sm:$0xff]
      %v232 = vld [vmem:[%s205 + $0x68] sm:$0xff]
      %v233 = vld [vmem:[%s205 + $0x70] sm:$0xff]
      %v234 = vld [vmem:[%s205 + $0x78] sm:$0xff]
      %v235 = vld [vmem:[%s205 + $0x80] sm:$0xff]
      %v236 = vld [vmem:[%s205 + $0x88] sm:$0xff]
      %v237 = vld [vmem:[%s205 + $0x90] sm:$0xff]
      %v238 = vld [vmem:[%s205 + $0x98] sm:$0xff]
      %v239 = vld [vmem:[%s205 + $0xa0] sm:$0xff]
      %v240 = vld [vmem:[%s205 + $0xa8] sm:$0xff]
      %v241 = vld [vmem:[%s205 + $0xb0] sm:$0xff]
      %v242 = vld [vmem:[%s205 + $0xb8] sm:$0xff]
      %v243 = vld [vmem:[%s205 + $0xc0] sm:$0xff]
      %v244 = vld [vmem:[%s205 + $0xc8] sm:$0xff]
      %v245 = vld [vmem:[%s205 + $0xd0] sm:$0xff]
      %v246 = vld [vmem:[%s205 + $0xd8] sm:$0xff]
      %v247 = vld [vmem:[%s205 + $0xe0] sm:$0xff]
      %v248 = vld [vmem:[%s205 + $0xe8] sm:$0xff]
      %v249 = vld [vmem:[%s205 + $0xf0] sm:$0xff]
      %v250 = vld [vmem:[%s205 + $0xf8] sm:$0xff]
      %v251 = vld [vmem:[%s205 + $0x100] sm:$0xff]
      %v252 = vld [vmem:[%s205 + $0x108] sm:$0xff]
      %v253 = vld [vmem:[%s205 + $0x110] sm:$0xff]
      %v254 = vld [vmem:[%s205 + $0x118] sm:$0xff]
      %v255 = vld [vmem:[%s205 + $0x120] sm:$0xff]
      %v256 = vld [vmem:[%s205 + $0x128] sm:$0xff]
      %v257 = vld [vmem:[%s205 + $0x130] sm:$0xff]
      %v258 = vld [vmem:[%s205 + $0x138] sm:$0xff]
      %v259 = vld [vmem:[%s205 + $0x140] sm:$0xff]
      %v260 = vld [vmem:[%s205 + $0x148] sm:$0xff]
      %v261 = vld [vmem:[%s205 + $0x150] sm:$0xff]
      %v262 = vld [vmem:[%s205 + $0x158] sm:$0xff]
      %v263 = vld [vmem:[%s205 + $0x160] sm:$0xff]
      %v264 = vld [vmem:[%s205 + $0x168] sm:$0xff]
      %v265 = vld [vmem:[%s205 + $0x170] sm:$0xff]
      %v266 = vld [vmem:[%s205 + $0x178] sm:$0xff]
      %v267 = vld [vmem:[%s205 + $0x180] sm:$0x11]
      %v268 = vld [vmem:[%s205 + $0x188] sm:$0x11]
      %v269 = vld [vmem:[%s205 + $0x190] sm:$0x11]
      %v270 = vld [vmem:[%s205 + $0x198] sm:$0x11]
      %v271 = vld [vmem:[%s205 + $0x1a0] sm:$0x11]
      %v272 = vld [vmem:[%s205 + $0x1a8] sm:$0x11]
      %v273 = vld [vmem:[%s205 + $0x1b0] sm:$0x11]
      %v274 = vld [vmem:[%s205 + $0x1b8] sm:$0x11]
      %v275 = vld [vmem:[%s1] sm:$0xff]
      %v276 = vld [vmem:[%s1 + $0x8] sm:$0xff]
      %v277 = vld [vmem:[%s1 + $0x10] sm:$0xff]
      %v278 = vld [vmem:[%s1 + $0x18] sm:$0xff]
      %v279 = vld [vmem:[%s1 + $0x20] sm:$0xff]
      %v280 = vld [vmem:[%s1 + $0x28] sm:$0xff]
      %v281 = vld [vmem:[%s1 + $0x30] sm:$0xff]
      %v282 = vld [vmem:[%s1 + $0x38] sm:$0xff]
      %v283 = vld [vmem:[%s1 + $0x40] sm:$0xff]
      %v284 = vld [vmem:[%s1 + $0x48] sm:$0xff]
      %v285 = vld [vmem:[%s1 + $0x50] sm:$0xff]
      %v286 = vld [vmem:[%s1 + $0x58] sm:$0xff]
      %v287 = vld [vmem:[%s1 + $0x60] sm:$0xff]
      %v288 = vld [vmem:[%s1 + $0x68] sm:$0xff]
      %v289 = vld [vmem:[%s1 + $0x70] sm:$0xff]
      %v290 = vld [vmem:[%s1 + $0x78] sm:$0xff]
      %v291 = vld [vmem:[%s1 + $0x80] sm:$0xff]
      %v292 = vld [vmem:[%s1 + $0x88] sm:$0xff]
      %v293 = vld [vmem:[%s1 + $0x90] sm:$0xff]
      %v294 = vld [vmem:[%s1 + $0x98] sm:$0xff]
      %v295 = vld [vmem:[%s1 + $0xa0] sm:$0xff]
      %v296 = vld [vmem:[%s1 + $0xa8] sm:$0xff]
      %v297 = vld [vmem:[%s1 + $0xb0] sm:$0xff]
      %v298 = vld [vmem:[%s1 + $0xb8] sm:$0xff]
      %v299 = vld [vmem:[%s1 + $0xc0] sm:$0xff]
      %v300 = vld [vmem:[%s1 + $0xc8] sm:$0xff]
      %v301 = vld [vmem:[%s1 + $0xd0] sm:$0xff]
      %v302 = vld [vmem:[%s1 + $0xd8] sm:$0xff]
      %v303 = vld [vmem:[%s1 + $0xe0] sm:$0xff]
      %v304 = vld [vmem:[%s1 + $0xe8] sm:$0xff]
      %v305 = vld [vmem:[%s1 + $0xf0] sm:$0xff]
      %v306 = vld [vmem:[%s1 + $0xf8] sm:$0xff]
      %v307 = vld [vmem:[%s1 + $0x100] sm:$0xff]
      %v308 = vld [vmem:[%s1 + $0x108] sm:$0xff]
      %v309 = vld [vmem:[%s1 + $0x110] sm:$0xff]
      %v310 = vld [vmem:[%s1 + $0x118] sm:$0xff]
      %v311 = vld [vmem:[%s1 + $0x120] sm:$0xff]
      %v312 = vld [vmem:[%s1 + $0x128] sm:$0xff]
      %v313 = vld [vmem:[%s1 + $0x130] sm:$0xff]
      %v314 = vld [vmem:[%s1 + $0x138] sm:$0xff]
      %v315 = vld [vmem:[%s1 + $0x140] sm:$0xff]
      %v316 = vld [vmem:[%s1 + $0x148] sm:$0xff]
      %v317 = vld [vmem:[%s1 + $0x150] sm:$0xff]
      %v318 = vld [vmem:[%s1 + $0x158] sm:$0xff]
      %v319 = vld [vmem:[%s1 + $0x160] sm:$0xff]
      %v320 = vld [vmem:[%s1 + $0x168] sm:$0xff]
      %v321 = vld [vmem:[%s1 + $0x170] sm:$0xff]
      %v322 = vld [vmem:[%s1 + $0x178] sm:$0xff]
      %v323 = vld [vmem:[%s1 + $0x180] sm:$0xff]
      %v324 = vld [vmem:[%s1 + $0x188] sm:$0xff]
      %v325 = vld [vmem:[%s1 + $0x190] sm:$0xff]
      %v326 = vld [vmem:[%s1 + $0x198] sm:$0xff]
      %v327 = vld [vmem:[%s1 + $0x1a0] sm:$0xff]
      %v328 = vld [vmem:[%s1 + $0x1a8] sm:$0xff]
      %v329 = vld [vmem:[%s1 + $0x1b0] sm:$0xff]
      %v330 = vld [vmem:[%s1 + $0x1b8] sm:$0xff]
      %v331 = vld [vmem:[%s1 + $0x1c0] sm:$0xff]
      %v332 = vld [vmem:[%s1 + $0x1c8] sm:$0xff]
      %v333 = vld [vmem:[%s1 + $0x1d0] sm:$0xff]
      %v334 = vld [vmem:[%s1 + $0x1d8] sm:$0xff]
      %v335 = vld [vmem:[%s1 + $0x1e0] sm:$0xff]
      %v336 = vld [vmem:[%s1 + $0x1e8] sm:$0xff]
      %v337 = vld [vmem:[%s1 + $0x1f0] sm:$0xff]
      %v338 = vld [vmem:[%s1 + $0x1f8] sm:$0xff]
      %v339 = vld [vmem:[%s1 + $0x200] sm:$0xff]
      %v340 = vld [vmem:[%s1 + $0x208] sm:$0xff]
      %v341 = vld [vmem:[%s1 + $0x210] sm:$0xff]
      %v342 = vld [vmem:[%s1 + $0x218] sm:$0xff]
      %v343 = vld [vmem:[%s1 + $0x220] sm:$0xff]
      %v344 = vld [vmem:[%s1 + $0x228] sm:$0xff]
      %v345 = vld [vmem:[%s1 + $0x230] sm:$0xff]
      %v346 = vld [vmem:[%s1 + $0x238] sm:$0xff]
      %v347 = vld [vmem:[%s1 + $0x240] sm:$0xff]
      %v348 = vld [vmem:[%s1 + $0x248] sm:$0xff]
      %v349 = vld [vmem:[%s1 + $0x250] sm:$0xff]
      %v350 = vld [vmem:[%s1 + $0x258] sm:$0xff]
      %v351 = vld [vmem:[%s1 + $0x260] sm:$0xff]
      %v352 = vld [vmem:[%s1 + $0x268] sm:$0xff]
      %v353 = vld [vmem:[%s1 + $0x270] sm:$0xff]
      %v354 = vld [vmem:[%s1 + $0x278] sm:$0xff]
      %v355 = vld [vmem:[%s1 + $0x280] sm:$0xff]
      %v356 = vld [vmem:[%s1 + $0x288] sm:$0xff]
      %v357 = vld [vmem:[%s1 + $0x290] sm:$0xff]
      %v358 = vld [vmem:[%s1 + $0x298] sm:$0xff]
      %v359 = vld [vmem:[%s1 + $0x2a0] sm:$0xff]
      %v360 = vld [vmem:[%s1 + $0x2a8] sm:$0xff]
      %v361 = vld [vmem:[%s1 + $0x2b0] sm:$0xff]
      %v362 = vld [vmem:[%s1 + $0x2b8] sm:$0xff]
      %v363 = vld [vmem:[%s1 + $0x2c0] sm:$0xff]
      %v364 = vld [vmem:[%s1 + $0x2c8] sm:$0xff]
      %v365 = vld [vmem:[%s1 + $0x2d0] sm:$0xff]
      %v366 = vld [vmem:[%s1 + $0x2d8] sm:$0xff]
      %v367 = vld [vmem:[%s1 + $0x2e0] sm:$0xff]
      %v368 = vld [vmem:[%s1 + $0x2e8] sm:$0xff]
      %v369 = vld [vmem:[%s1 + $0x2f0] sm:$0xff]
      %v370 = vld [vmem:[%s1 + $0x2f8] sm:$0xff]
      %v371 = vld [vmem:[%s1 + $0x300] sm:$0xff]
      %v372 = vld [vmem:[%s1 + $0x308] sm:$0xff]
      %v373 = vld [vmem:[%s1 + $0x310] sm:$0xff]
      %v374 = vld [vmem:[%s1 + $0x318] sm:$0xff]
      %v375 = vld [vmem:[%s1 + $0x320] sm:$0xff]
      %v376 = vld [vmem:[%s1 + $0x328] sm:$0xff]
      %v377 = vld [vmem:[%s1 + $0x330] sm:$0xff]
      %v378 = vld [vmem:[%s1 + $0x338] sm:$0xff]
      %v379 = vld [vmem:[%s1 + $0x340] sm:$0xff]
      %v380 = vld [vmem:[%s1 + $0x348] sm:$0xff]
      %v381 = vld [vmem:[%s1 + $0x350] sm:$0xff]
      %v382 = vld [vmem:[%s1 + $0x358] sm:$0xff]
      %v383 = vld [vmem:[%s1 + $0x360] sm:$0xff]
      %v384 = vld [vmem:[%s1 + $0x368] sm:$0xff]
      %v385 = vld [vmem:[%s1 + $0x370] sm:$0xff]
      %v386 = vld [vmem:[%s1 + $0x378] sm:$0xff]
      %v387 = vld [vmem:[%s1 + $0x380] sm:$0xff]
      %v388 = vld [vmem:[%s1 + $0x388] sm:$0xff]
      %v389 = vld [vmem:[%s1 + $0x390] sm:$0xff]
      %v390 = vld [vmem:[%s1 + $0x398] sm:$0xff]
      %v391 = vld [vmem:[%s1 + $0x3a0] sm:$0xff]
      %v392 = vld [vmem:[%s1 + $0x3a8] sm:$0xff]
      %v393 = vld [vmem:[%s1 + $0x3b0] sm:$0xff]
      %v394 = vld [vmem:[%s1 + $0x3b8] sm:$0xff]
      %v395 = vld [vmem:[%s1 + $0x3c0] sm:$0xff]
      %v396 = vld [vmem:[%s1 + $0x3c8] sm:$0xff]
      %v397 = vld [vmem:[%s1 + $0x3d0] sm:$0xff]
      %v398 = vld [vmem:[%s1 + $0x3d8] sm:$0xff]
      %v399 = vld [vmem:[%s1 + $0x3e0] sm:$0xff]
      %v400 = vld [vmem:[%s1 + $0x3e8] sm:$0xff]
      %v401 = vld [vmem:[%s1 + $0x3f0] sm:$0xff]
      %v402 = vld [vmem:[%s1 + $0x3f8] sm:$0xff]
      %v403 = vld [vmem:[%s1 + $0x400] sm:$0xff]
      %v404 = vld [vmem:[%s1 + $0x408] sm:$0xff]
      %v405 = vld [vmem:[%s1 + $0x410] sm:$0xff]
      %v406 = vld [vmem:[%s1 + $0x418] sm:$0xff]
      %v407 = vld [vmem:[%s1 + $0x420] sm:$0xff]
      %v408 = vld [vmem:[%s1 + $0x428] sm:$0xff]
      %v409 = vld [vmem:[%s1 + $0x430] sm:$0xff]
      %v410 = vld [vmem:[%s1 + $0x438] sm:$0xff]
      %v411 = vld [vmem:[%s1 + $0x440] sm:$0xff]
      %v412 = vld [vmem:[%s1 + $0x448] sm:$0xff]
      %v413 = vld [vmem:[%s1 + $0x450] sm:$0xff]
      %v414 = vld [vmem:[%s1 + $0x458] sm:$0xff]
      %v415 = vld [vmem:[%s1 + $0x460] sm:$0xff]
      %v416 = vld [vmem:[%s1 + $0x468] sm:$0xff]
      %v417 = vld [vmem:[%s1 + $0x470] sm:$0xff]
      %v418 = vld [vmem:[%s1 + $0x478] sm:$0xff]
      %v419 = vld [vmem:[%s1 + $0x480] sm:$0xff]
      %v420 = vld [vmem:[%s1 + $0x488] sm:$0xff]
      %v421 = vld [vmem:[%s1 + $0x490] sm:$0xff]
      %v422 = vld [vmem:[%s1 + $0x498] sm:$0xff]
      %v423 = vld [vmem:[%s1 + $0x4a0] sm:$0xff]
      %v424 = vld [vmem:[%s1 + $0x4a8] sm:$0xff]
      %v425 = vld [vmem:[%s1 + $0x4b0] sm:$0xff]
      %v426 = vld [vmem:[%s1 + $0x4b8] sm:$0xff]
      %v427 = vld [vmem:[%s1 + $0x4c0] sm:$0xff]
      %v428 = vld [vmem:[%s1 + $0x4c8] sm:$0xff]
      %v429 = vld [vmem:[%s1 + $0x4d0] sm:$0xff]
      %v430 = vld [vmem:[%s1 + $0x4d8] sm:$0xff]
      %v431 = vld [vmem:[%s1 + $0x4e0] sm:$0xff]
      %v432 = vld [vmem:[%s1 + $0x4e8] sm:$0xff]
      %v433 = vld [vmem:[%s1 + $0x4f0] sm:$0xff]
      %v434 = vld [vmem:[%s1 + $0x4f8] sm:$0xff]
      %v435 = vld [vmem:[%s1 + $0x500] sm:$0xff]
      %v436 = vld [vmem:[%s1 + $0x508] sm:$0xff]
      %v437 = vld [vmem:[%s1 + $0x510] sm:$0xff]
      %v438 = vld [vmem:[%s1 + $0x518] sm:$0xff]
      %v439 = vld [vmem:[%s1 + $0x520] sm:$0xff]
      %v440 = vld [vmem:[%s1 + $0x528] sm:$0xff]
      %v441 = vld [vmem:[%s1 + $0x530] sm:$0xff]
      %v442 = vld [vmem:[%s1 + $0x538] sm:$0xff]
      %v443 = vld [vmem:[%s1 + $0x540] sm:$0xff]
      %v444 = vld [vmem:[%s1 + $0x548] sm:$0xff]
      %v445 = vld [vmem:[%s1 + $0x550] sm:$0xff]
      %v446 = vld [vmem:[%s1 + $0x558] sm:$0xff]
      %v447 = vld [vmem:[%s1 + $0x560] sm:$0xff]
      %v448 = vld [vmem:[%s1 + $0x568] sm:$0xff]
      %v449 = vld [vmem:[%s1 + $0x570] sm:$0xff]
      %v450 = vld [vmem:[%s1 + $0x578] sm:$0xff]
      %v451 = vld [vmem:[%s1 + $0x580] sm:$0xff]
      %v452 = vld [vmem:[%s1 + $0x588] sm:$0xff]
      %v453 = vld [vmem:[%s1 + $0x590] sm:$0xff]
      %v454 = vld [vmem:[%s1 + $0x598] sm:$0xff]
      %v455 = vld [vmem:[%s1 + $0x5a0] sm:$0xff]
      %v456 = vld [vmem:[%s1 + $0x5a8] sm:$0xff]
      %v457 = vld [vmem:[%s1 + $0x5b0] sm:$0xff]
      %v458 = vld [vmem:[%s1 + $0x5b8] sm:$0xff]
      %v459 = vld [vmem:[%s1 + $0x5c0] sm:$0xff]
      %v460 = vld [vmem:[%s1 + $0x5c8] sm:$0xff]
      %v461 = vld [vmem:[%s1 + $0x5d0] sm:$0xff]
      %v462 = vld [vmem:[%s1 + $0x5d8] sm:$0xff]
      %v463 = vld [vmem:[%s1 + $0x5e0] sm:$0xff]
      %v464 = vld [vmem:[%s1 + $0x5e8] sm:$0xff]
      %v465 = vld [vmem:[%s1 + $0x5f0] sm:$0xff]
      %v466 = vld [vmem:[%s1 + $0x5f8] sm:$0xff]
      %v467 = vld [vmem:[%s1 + $0x600] sm:$0xff]
      %v468 = vld [vmem:[%s1 + $0x608] sm:$0xff]
      %v469 = vld [vmem:[%s1 + $0x610] sm:$0xff]
      %v470 = vld [vmem:[%s1 + $0x618] sm:$0xff]
      %v471 = vld [vmem:[%s1 + $0x620] sm:$0xff]
      %v472 = vld [vmem:[%s1 + $0x628] sm:$0xff]
      %v473 = vld [vmem:[%s1 + $0x630] sm:$0xff]
      %v474 = vld [vmem:[%s1 + $0x638] sm:$0xff]
      %v475 = vld [vmem:[%s1 + $0x640] sm:$0xff]
      %v476 = vld [vmem:[%s1 + $0x648] sm:$0xff]
      %v477 = vld [vmem:[%s1 + $0x650] sm:$0xff]
      %v478 = vld [vmem:[%s1 + $0x658] sm:$0xff]
      %v479 = vld [vmem:[%s1 + $0x660] sm:$0xff]
      %v480 = vld [vmem:[%s1 + $0x668] sm:$0xff]
      %v481 = vld [vmem:[%s1 + $0x670] sm:$0xff]
      %v482 = vld [vmem:[%s1 + $0x678] sm:$0xff]
      %v483 = vld [vmem:[%s1 + $0x680] sm:$0xff]
      %v484 = vld [vmem:[%s1 + $0x688] sm:$0xff]
      %v485 = vld [vmem:[%s1 + $0x690] sm:$0xff]
      %v486 = vld [vmem:[%s1 + $0x698] sm:$0xff]
      %v487 = vld [vmem:[%s1 + $0x6a0] sm:$0xff]
      %v488 = vld [vmem:[%s1 + $0x6a8] sm:$0xff]
      %v489 = vld [vmem:[%s1 + $0x6b0] sm:$0xff]
      %v490 = vld [vmem:[%s1 + $0x6b8] sm:$0xff]
      %v491 = vld [vmem:[%s1 + $0x6c0] sm:$0xff]
      %v492 = vld [vmem:[%s1 + $0x6c8] sm:$0xff]
      %v493 = vld [vmem:[%s1 + $0x6d0] sm:$0xff]
      %v494 = vld [vmem:[%s1 + $0x6d8] sm:$0xff]
      %v495 = vld [vmem:[%s1 + $0x6e0] sm:$0xff]
      %v496 = vld [vmem:[%s1 + $0x6e8] sm:$0xff]
      %v497 = vld [vmem:[%s1 + $0x6f0] sm:$0xff]
      %v498 = vld [vmem:[%s1 + $0x6f8] sm:$0xff]
      %v499 = vld [vmem:[%s1 + $0x700] sm:$0xff]
      %v500 = vld [vmem:[%s1 + $0x708] sm:$0xff]
      %v501 = vld [vmem:[%s1 + $0x710] sm:$0xff]
      %v502 = vld [vmem:[%s1 + $0x718] sm:$0xff]
      %v503 = vld [vmem:[%s1 + $0x720] sm:$0xff]
      %v504 = vld [vmem:[%s1 + $0x728] sm:$0xff]
      %v505 = vld [vmem:[%s1 + $0x730] sm:$0xff]
      %v506 = vld [vmem:[%s1 + $0x738] sm:$0xff]
      %v507 = vld [vmem:[%s1 + $0x740] sm:$0xff]
      %v508 = vld [vmem:[%s1 + $0x748] sm:$0xff]
      %v509 = vld [vmem:[%s1 + $0x750] sm:$0xff]
      %v510 = vld [vmem:[%s1 + $0x758] sm:$0xff]
      %v511 = vld [vmem:[%s1 + $0x760] sm:$0xff]
      %v512 = vld [vmem:[%s1 + $0x768] sm:$0xff]
      %v513 = vld [vmem:[%s1 + $0x770] sm:$0xff]
      %v514 = vld [vmem:[%s1 + $0x778] sm:$0xff]
      %v515 = vld [vmem:[%s1 + $0x780] sm:$0xff]
      %v516 = vld [vmem:[%s1 + $0x788] sm:$0xff]
      %v517 = vld [vmem:[%s1 + $0x790] sm:$0xff]
      %v518 = vld [vmem:[%s1 + $0x798] sm:$0xff]
      %v519 = vld [vmem:[%s1 + $0x7a0] sm:$0xff]
      %v520 = vld [vmem:[%s1 + $0x7a8] sm:$0xff]
      %v521 = vld [vmem:[%s1 + $0x7b0] sm:$0xff]
      %v522 = vld [vmem:[%s1 + $0x7b8] sm:$0xff]
      %v523 = vld [vmem:[%s1 + $0x7c0] sm:$0xff]
      %v524 = vld [vmem:[%s1 + $0x7c8] sm:$0xff]
      %v525 = vld [vmem:[%s1 + $0x7d0] sm:$0xff]
      %v526 = vld [vmem:[%s1 + $0x7d8] sm:$0xff]
      %v527 = vld [vmem:[%s1 + $0x7e0] sm:$0xff]
      %v528 = vld [vmem:[%s1 + $0x7e8] sm:$0xff]
      %v529 = vld [vmem:[%s1 + $0x7f0] sm:$0xff]
      %v530 = vld [vmem:[%s1 + $0x7f8] sm:$0xff]
      %v587 = vunpack.c.l.b16 %v219
      %v588 = vunpack.c.h.b16 %v219
      %v589 = vunpack.c.l.b16 %v220
      %v590 = vunpack.c.h.b16 %v220
      %v591 = vunpack.c.l.b16 %v221
      %v592 = vunpack.c.h.b16 %v221
      %v593 = vunpack.c.l.b16 %v222
      %v594 = vunpack.c.h.b16 %v222
      %v595 = vunpack.c.l.b16 %v223
      %v596 = vunpack.c.h.b16 %v223
      %v597 = vunpack.c.l.b16 %v224
      %v598 = vunpack.c.h.b16 %v224
      %v599 = vunpack.c.l.b16 %v225
      %v600 = vunpack.c.h.b16 %v225
      %v601 = vunpack.c.l.b16 %v226
      %v602 = vunpack.c.h.b16 %v226
      %v603 = vunpack.c.l.b16 %v227
      %v604 = vunpack.c.h.b16 %v227
      %v605 = vunpack.c.l.b16 %v228
      %v606 = vunpack.c.h.b16 %v228
      %v607 = vunpack.c.l.b16 %v229
      %v608 = vunpack.c.h.b16 %v229
      %v609 = vunpack.c.l.b16 %v230
      %v610 = vunpack.c.h.b16 %v230
      %v611 = vunpack.c.l.b16 %v231
      %v612 = vunpack.c.h.b16 %v231
      %v613 = vunpack.c.l.b16 %v232
      %v614 = vunpack.c.h.b16 %v232
      %v615 = vunpack.c.l.b16 %v233
      %v616 = vunpack.c.h.b16 %v233
      %v617 = vunpack.c.l.b16 %v234
      %v618 = vunpack.c.h.b16 %v234
      %v619 = vunpack.c.l.b16 %v235
      %v620 = vunpack.c.h.b16 %v235
      %v621 = vunpack.c.l.b16 %v236
      %v622 = vunpack.c.h.b16 %v236
      %v623 = vunpack.c.l.b16 %v237
      %v624 = vunpack.c.h.b16 %v237
      %v625 = vunpack.c.l.b16 %v238
      %v626 = vunpack.c.h.b16 %v238
      %v627 = vunpack.c.l.b16 %v239
      %v628 = vunpack.c.h.b16 %v239
      %v629 = vunpack.c.l.b16 %v240
      %v630 = vunpack.c.h.b16 %v240
      %v631 = vunpack.c.l.b16 %v241
      %v632 = vunpack.c.h.b16 %v241
      %v633 = vunpack.c.l.b16 %v242
      %v634 = vunpack.c.h.b16 %v242
      %v635 = vunpack.c.l.b16 %v243
      %v636 = vunpack.c.h.b16 %v243
      %v637 = vunpack.c.l.b16 %v244
      %v638 = vunpack.c.h.b16 %v244
      %v639 = vunpack.c.l.b16 %v245
      %v640 = vunpack.c.h.b16 %v245
      %v641 = vunpack.c.l.b16 %v246
      %v642 = vunpack.c.h.b16 %v246
      %v643 = vunpack.c.l.b16 %v247
      %v644 = vunpack.c.h.b16 %v247
      %v645 = vunpack.c.l.b16 %v248
      %v646 = vunpack.c.h.b16 %v248
      %v647 = vunpack.c.l.b16 %v249
      %v648 = vunpack.c.h.b16 %v249
      %v649 = vunpack.c.l.b16 %v250
      %v650 = vunpack.c.h.b16 %v250
      %v651 = vunpack.c.l.b16 %v251
      %v652 = vunpack.c.h.b16 %v251
      %v653 = vunpack.c.l.b16 %v252
      %v654 = vunpack.c.h.b16 %v252
      %v655 = vunpack.c.l.b16 %v253
      %v656 = vunpack.c.h.b16 %v253
      %v657 = vunpack.c.l.b16 %v254
      %v658 = vunpack.c.h.b16 %v254
      %v659 = vunpack.c.l.b16 %v255
      %v660 = vunpack.c.h.b16 %v255
      %v661 = vunpack.c.l.b16 %v256
      %v662 = vunpack.c.h.b16 %v256
      %v663 = vunpack.c.l.b16 %v257
      %v664 = vunpack.c.h.b16 %v257
      %v665 = vunpack.c.l.b16 %v258
      %v666 = vunpack.c.h.b16 %v258
      %v667 = vunpack.c.l.b16 %v259
      %v668 = vunpack.c.h.b16 %v259
      %v669 = vunpack.c.l.b16 %v260
      %v670 = vunpack.c.h.b16 %v260
      %v671 = vunpack.c.l.b16 %v261
      %v672 = vunpack.c.h.b16 %v261
      %v673 = vunpack.c.l.b16 %v262
      %v674 = vunpack.c.h.b16 %v262
      %v675 = vunpack.c.l.b16 %v263
      %v676 = vunpack.c.h.b16 %v263
      %v677 = vunpack.c.l.b16 %v264
      %v678 = vunpack.c.h.b16 %v264
      %v679 = vunpack.c.l.b16 %v265
      %v680 = vunpack.c.h.b16 %v265
      %v681 = vunpack.c.l.b16 %v266
      %v682 = vunpack.c.h.b16 %v266
      %v683 = vunpack.c.l.b16 %v267
      %v684 = vunpack.c.h.b16 %v267
      %v685 = vunpack.c.l.b16 %v268
      %v686 = vunpack.c.h.b16 %v268
      %v687 = vunpack.c.l.b16 %v269
      %v688 = vunpack.c.h.b16 %v269
      %v689 = vunpack.c.l.b16 %v270
      %v690 = vunpack.c.h.b16 %v270
      %v691 = vunpack.c.l.b16 %v271
      %v692 = vunpack.c.h.b16 %v271
      %v693 = vunpack.c.l.b16 %v272
      %v694 = vunpack.c.h.b16 %v272
      %v695 = vunpack.c.l.b16 %v273
      %v696 = vunpack.c.h.b16 %v273
      %v697 = vunpack.c.l.b16 %v274
      %v698 = vunpack.c.h.b16 %v274
      %v699 = vpack.c.b16 %v603, %v587
      %v700 = vpack.c.b16 %v604, %v588
      %v701 = vpack.c.b16 %v605, %v589
      %v702 = vpack.c.b16 %v606, %v590
      %v703 = vpack.c.b16 %v607, %v591
      %v704 = vpack.c.b16 %v608, %v592
      %v705 = vpack.c.b16 %v609, %v593
      %v706 = vpack.c.b16 %v610, %v594
      %v707 = vpack.c.b16 %v611, %v595
      %v708 = vpack.c.b16 %v612, %v596
      %v709 = vpack.c.b16 %v613, %v597
      %v710 = vpack.c.b16 %v614, %v598
      %v711 = vpack.c.b16 %v615, %v599
      %v712 = vpack.c.b16 %v616, %v600
      %v713 = vpack.c.b16 %v617, %v601
      %v714 = vpack.c.b16 %v618, %v602
      %v715 = vpack.c.b16 %v635, %v619
      %v716 = vpack.c.b16 %v636, %v620
      %v717 = vpack.c.b16 %v637, %v621
      %v718 = vpack.c.b16 %v638, %v622
      %v719 = vpack.c.b16 %v639, %v623
      %v720 = vpack.c.b16 %v640, %v624
      %v721 = vpack.c.b16 %v641, %v625
      %v722 = vpack.c.b16 %v642, %v626
      %v723 = vpack.c.b16 %v643, %v627
      %v724 = vpack.c.b16 %v644, %v628
      %v725 = vpack.c.b16 %v645, %v629
      %v726 = vpack.c.b16 %v646, %v630
      %v727 = vpack.c.b16 %v647, %v631
      %v728 = vpack.c.b16 %v648, %v632
      %v729 = vpack.c.b16 %v649, %v633
      %v730 = vpack.c.b16 %v650, %v634
      %v731 = vpack.c.b16 %v667, %v651
      %v732 = vpack.c.b16 %v668, %v652
      %v733 = vpack.c.b16 %v669, %v653
      %v734 = vpack.c.b16 %v670, %v654
      %v735 = vpack.c.b16 %v671, %v655
      %v736 = vpack.c.b16 %v672, %v656
      %v737 = vpack.c.b16 %v673, %v657
      %v738 = vpack.c.b16 %v674, %v658
      %v739 = vpack.c.b16 %v675, %v659
      %v740 = vpack.c.b16 %v676, %v660
      %v741 = vpack.c.b16 %v677, %v661
      %v742 = vpack.c.b16 %v678, %v662
      %v743 = vpack.c.b16 %v679, %v663
      %v744 = vpack.c.b16 %v680, %v664
      %v745 = vpack.c.b16 %v681, %v665
      %v746 = vpack.c.b16 %v682, %v666
      %v747 = vpack.c.b16 %v683, %v683
      %v748 = vpack.c.b16 %v684, %v684
      %v749 = vpack.c.b16 %v685, %v685
      %v750 = vpack.c.b16 %v686, %v686
      %v751 = vpack.c.b16 %v687, %v687
      %v752 = vpack.c.b16 %v688, %v688
      %v753 = vpack.c.b16 %v689, %v689
      %v754 = vpack.c.b16 %v690, %v690
      %v755 = vpack.c.b16 %v691, %v691
      %v756 = vpack.c.b16 %v692, %v692
      %v757 = vpack.c.b16 %v693, %v693
      %v758 = vpack.c.b16 %v694, %v694
      %v759 = vpack.c.b16 %v695, %v695
      %v760 = vpack.c.b16 %v696, %v696
      %v761 = vpack.c.b16 %v697, %v697
      %v762 = vpack.c.b16 %v698, %v698
      %v1083 = vunpack.c.l.b16 %v275
      %v1084 = vunpack.c.h.b16 %v275
      %v1085 = vunpack.c.l.b16 %v276
      %v1086 = vunpack.c.h.b16 %v276
      %v1087 = vunpack.c.l.b16 %v277
      %v1088 = vunpack.c.h.b16 %v277
      %v1089 = vunpack.c.l.b16 %v278
      %v1090 = vunpack.c.h.b16 %v278
      %v1091 = vunpack.c.l.b16 %v279
      %v1092 = vunpack.c.h.b16 %v279
      %v1093 = vunpack.c.l.b16 %v280
      %v1094 = vunpack.c.h.b16 %v280
      %v1095 = vunpack.c.l.b16 %v281
      %v1096 = vunpack.c.h.b16 %v281
      %v1097 = vunpack.c.l.b16 %v282
      %v1098 = vunpack.c.h.b16 %v282
      %v1099 = vunpack.c.l.b16 %v283
      %v1100 = vunpack.c.h.b16 %v283
      %v1101 = vunpack.c.l.b16 %v284
      %v1102 = vunpack.c.h.b16 %v284
      %v1103 = vunpack.c.l.b16 %v285
      %v1104 = vunpack.c.h.b16 %v285
      %v1105 = vunpack.c.l.b16 %v286
      %v1106 = vunpack.c.h.b16 %v286
      %v1107 = vunpack.c.l.b16 %v287
      %v1108 = vunpack.c.h.b16 %v287
      %v1109 = vunpack.c.l.b16 %v288
      %v1110 = vunpack.c.h.b16 %v288
      %v1111 = vunpack.c.l.b16 %v289
      %v1112 = vunpack.c.h.b16 %v289
      %v1113 = vunpack.c.l.b16 %v290
      %v1114 = vunpack.c.h.b16 %v290
      %v1115 = vunpack.c.l.b16 %v291
      %v1116 = vunpack.c.h.b16 %v291
      %v1117 = vunpack.c.l.b16 %v292
      %v1118 = vunpack.c.h.b16 %v292
      %v1119 = vunpack.c.l.b16 %v293
      %v1120 = vunpack.c.h.b16 %v293
      %v1121 = vunpack.c.l.b16 %v294
      %v1122 = vunpack.c.h.b16 %v294
      %v1123 = vunpack.c.l.b16 %v295
      %v1124 = vunpack.c.h.b16 %v295
      %v1125 = vunpack.c.l.b16 %v296
      %v1126 = vunpack.c.h.b16 %v296
      %v1127 = vunpack.c.l.b16 %v297
      %v1128 = vunpack.c.h.b16 %v297
      %v1129 = vunpack.c.l.b16 %v298
      %v1130 = vunpack.c.h.b16 %v298
      %v1131 = vunpack.c.l.b16 %v299
      %v1132 = vunpack.c.h.b16 %v299
      %v1133 = vunpack.c.l.b16 %v300
      %v1134 = vunpack.c.h.b16 %v300
      %v1135 = vunpack.c.l.b16 %v301
      %v1136 = vunpack.c.h.b16 %v301
      %v1137 = vunpack.c.l.b16 %v302
      %v1138 = vunpack.c.h.b16 %v302
      %v1139 = vunpack.c.l.b16 %v303
      %v1140 = vunpack.c.h.b16 %v303
      %v1141 = vunpack.c.l.b16 %v304
      %v1142 = vunpack.c.h.b16 %v304
      %v1143 = vunpack.c.l.b16 %v305
      %v1144 = vunpack.c.h.b16 %v305
      %v1145 = vunpack.c.l.b16 %v306
      %v1146 = vunpack.c.h.b16 %v306
      %v1147 = vunpack.c.l.b16 %v307
      %v1148 = vunpack.c.h.b16 %v307
      %v1149 = vunpack.c.l.b16 %v308
      %v1150 = vunpack.c.h.b16 %v308
      %v1151 = vunpack.c.l.b16 %v309
      %v1152 = vunpack.c.h.b16 %v309
      %v1153 = vunpack.c.l.b16 %v310
      %v1154 = vunpack.c.h.b16 %v310
      %v1155 = vunpack.c.l.b16 %v311
      %v1156 = vunpack.c.h.b16 %v311
      %v1157 = vunpack.c.l.b16 %v312
      %v1158 = vunpack.c.h.b16 %v312
      %v1159 = vunpack.c.l.b16 %v313
      %v1160 = vunpack.c.h.b16 %v313
      %v1161 = vunpack.c.l.b16 %v314
      %v1162 = vunpack.c.h.b16 %v314
      %v1163 = vunpack.c.l.b16 %v315
      %v1164 = vunpack.c.h.b16 %v315
      %v1165 = vunpack.c.l.b16 %v316
      %v1166 = vunpack.c.h.b16 %v316
      %v1167 = vunpack.c.l.b16 %v317
      %v1168 = vunpack.c.h.b16 %v317
      %v1169 = vunpack.c.l.b16 %v318
      %v1170 = vunpack.c.h.b16 %v318
      %v1171 = vunpack.c.l.b16 %v319
      %v1172 = vunpack.c.h.b16 %v319
      %v1173 = vunpack.c.l.b16 %v320
      %v1174 = vunpack.c.h.b16 %v320
      %v1175 = vunpack.c.l.b16 %v321
      %v1176 = vunpack.c.h.b16 %v321
      %v1177 = vunpack.c.l.b16 %v322
      %v1178 = vunpack.c.h.b16 %v322
      %v1179 = vunpack.c.l.b16 %v323
      %v1180 = vunpack.c.h.b16 %v323
      %v1181 = vunpack.c.l.b16 %v324
      %v1182 = vunpack.c.h.b16 %v324
      %v1183 = vunpack.c.l.b16 %v325
      %v1184 = vunpack.c.h.b16 %v325
      %v1185 = vunpack.c.l.b16 %v326
      %v1186 = vunpack.c.h.b16 %v326
      %v1187 = vunpack.c.l.b16 %v327
      %v1188 = vunpack.c.h.b16 %v327
      %v1189 = vunpack.c.l.b16 %v328
      %v1190 = vunpack.c.h.b16 %v328
      %v1191 = vunpack.c.l.b16 %v329
      %v1192 = vunpack.c.h.b16 %v329
      %v1193 = vunpack.c.l.b16 %v330
      %v1194 = vunpack.c.h.b16 %v330
      %v1195 = vunpack.c.l.b16 %v331
      %v1196 = vunpack.c.h.b16 %v331
      %v1197 = vunpack.c.l.b16 %v332
      %v1198 = vunpack.c.h.b16 %v332
      %v1199 = vunpack.c.l.b16 %v333
      %v1200 = vunpack.c.h.b16 %v333
      %v1201 = vunpack.c.l.b16 %v334
      %v1202 = vunpack.c.h.b16 %v334
      %v1203 = vunpack.c.l.b16 %v335
      %v1204 = vunpack.c.h.b16 %v335
      %v1205 = vunpack.c.l.b16 %v336
      %v1206 = vunpack.c.h.b16 %v336
      %v1207 = vunpack.c.l.b16 %v337
      %v1208 = vunpack.c.h.b16 %v337
      %v1209 = vunpack.c.l.b16 %v338
      %v1210 = vunpack.c.h.b16 %v338
      %v1211 = vunpack.c.l.b16 %v339
      %v1212 = vunpack.c.h.b16 %v339
      %v1213 = vunpack.c.l.b16 %v340
      %v1214 = vunpack.c.h.b16 %v340
      %v1215 = vunpack.c.l.b16 %v341
      %v1216 = vunpack.c.h.b16 %v341
      %v1217 = vunpack.c.l.b16 %v342
      %v1218 = vunpack.c.h.b16 %v342
      %v1219 = vunpack.c.l.b16 %v343
      %v1220 = vunpack.c.h.b16 %v343
      %v1221 = vunpack.c.l.b16 %v344
      %v1222 = vunpack.c.h.b16 %v344
      %v1223 = vunpack.c.l.b16 %v345
      %v1224 = vunpack.c.h.b16 %v345
      %v1225 = vunpack.c.l.b16 %v346
      %v1226 = vunpack.c.h.b16 %v346
      %v1227 = vunpack.c.l.b16 %v347
      %v1228 = vunpack.c.h.b16 %v347
      %v1229 = vunpack.c.l.b16 %v348
      %v1230 = vunpack.c.h.b16 %v348
      %v1231 = vunpack.c.l.b16 %v349
      %v1232 = vunpack.c.h.b16 %v349
      %v1233 = vunpack.c.l.b16 %v350
      %v1234 = vunpack.c.h.b16 %v350
      %v1235 = vunpack.c.l.b16 %v351
      %v1236 = vunpack.c.h.b16 %v351
      %v1237 = vunpack.c.l.b16 %v352
      %v1238 = vunpack.c.h.b16 %v352
      %v1239 = vunpack.c.l.b16 %v353
      %v1240 = vunpack.c.h.b16 %v353
      %v1241 = vunpack.c.l.b16 %v354
      %v1242 = vunpack.c.h.b16 %v354
      %v1243 = vunpack.c.l.b16 %v355
      %v1244 = vunpack.c.h.b16 %v355
      %v1245 = vunpack.c.l.b16 %v356
      %v1246 = vunpack.c.h.b16 %v356
      %v1247 = vunpack.c.l.b16 %v357
      %v1248 = vunpack.c.h.b16 %v357
      %v1249 = vunpack.c.l.b16 %v358
      %v1250 = vunpack.c.h.b16 %v358
      %v1251 = vunpack.c.l.b16 %v359
      %v1252 = vunpack.c.h.b16 %v359
      %v1253 = vunpack.c.l.b16 %v360
      %v1254 = vunpack.c.h.b16 %v360
      %v1255 = vunpack.c.l.b16 %v361
      %v1256 = vunpack.c.h.b16 %v361
      %v1257 = vunpack.c.l.b16 %v362
      %v1258 = vunpack.c.h.b16 %v362
      %v1259 = vunpack.c.l.b16 %v363
      %v1260 = vunpack.c.h.b16 %v363
      %v1261 = vunpack.c.l.b16 %v364
      %v1262 = vunpack.c.h.b16 %v364
      %v1263 = vunpack.c.l.b16 %v365
      %v1264 = vunpack.c.h.b16 %v365
      %v1265 = vunpack.c.l.b16 %v366
      %v1266 = vunpack.c.h.b16 %v366
      %v1267 = vunpack.c.l.b16 %v367
      %v1268 = vunpack.c.h.b16 %v367
      %v1269 = vunpack.c.l.b16 %v368
      %v1270 = vunpack.c.h.b16 %v368
      %v1271 = vunpack.c.l.b16 %v369
      %v1272 = vunpack.c.h.b16 %v369
      %v1273 = vunpack.c.l.b16 %v370
      %v1274 = vunpack.c.h.b16 %v370
      %v1275 = vunpack.c.l.b16 %v371
      %v1276 = vunpack.c.h.b16 %v371
      %v1277 = vunpack.c.l.b16 %v372
      %v1278 = vunpack.c.h.b16 %v372
      %v1279 = vunpack.c.l.b16 %v373
      %v1280 = vunpack.c.h.b16 %v373
      %v1281 = vunpack.c.l.b16 %v374
      %v1282 = vunpack.c.h.b16 %v374
      %v1283 = vunpack.c.l.b16 %v375
      %v1284 = vunpack.c.h.b16 %v375
      %v1285 = vunpack.c.l.b16 %v376
      %v1286 = vunpack.c.h.b16 %v376
      %v1287 = vunpack.c.l.b16 %v377
      %v1288 = vunpack.c.h.b16 %v377
      %v1289 = vunpack.c.l.b16 %v378
      %v1290 = vunpack.c.h.b16 %v378
      %v1291 = vunpack.c.l.b16 %v379
      %v1292 = vunpack.c.h.b16 %v379
      %v1293 = vunpack.c.l.b16 %v380
      %v1294 = vunpack.c.h.b16 %v380
      %v1295 = vunpack.c.l.b16 %v381
      %v1296 = vunpack.c.h.b16 %v381
      %v1297 = vunpack.c.l.b16 %v382
      %v1298 = vunpack.c.h.b16 %v382
      %v1299 = vunpack.c.l.b16 %v383
      %v1300 = vunpack.c.h.b16 %v383
      %v1301 = vunpack.c.l.b16 %v384
      %v1302 = vunpack.c.h.b16 %v384
      %v1303 = vunpack.c.l.b16 %v385
      %v1304 = vunpack.c.h.b16 %v385
      %v1305 = vunpack.c.l.b16 %v386
      %v1306 = vunpack.c.h.b16 %v386
      %v1307 = vunpack.c.l.b16 %v387
      %v1308 = vunpack.c.h.b16 %v387
      %v1309 = vunpack.c.l.b16 %v388
      %v1310 = vunpack.c.h.b16 %v388
      %v1311 = vunpack.c.l.b16 %v389
      %v1312 = vunpack.c.h.b16 %v389
      %v1313 = vunpack.c.l.b16 %v390
      %v1314 = vunpack.c.h.b16 %v390
      %v1315 = vunpack.c.l.b16 %v391
      %v1316 = vunpack.c.h.b16 %v391
      %v1317 = vunpack.c.l.b16 %v392
      %v1318 = vunpack.c.h.b16 %v392
      %v1319 = vunpack.c.l.b16 %v393
      %v1320 = vunpack.c.h.b16 %v393
      %v1321 = vunpack.c.l.b16 %v394
      %v1322 = vunpack.c.h.b16 %v394
      %v1323 = vunpack.c.l.b16 %v395
      %v1324 = vunpack.c.h.b16 %v395
      %v1325 = vunpack.c.l.b16 %v396
      %v1326 = vunpack.c.h.b16 %v396
      %v1327 = vunpack.c.l.b16 %v397
      %v1328 = vunpack.c.h.b16 %v397
      %v1329 = vunpack.c.l.b16 %v398
      %v1330 = vunpack.c.h.b16 %v398
      %v1331 = vunpack.c.l.b16 %v399
      %v1332 = vunpack.c.h.b16 %v399
      %v1333 = vunpack.c.l.b16 %v400
      %v1334 = vunpack.c.h.b16 %v400
      %v1335 = vunpack.c.l.b16 %v401
      %v1336 = vunpack.c.h.b16 %v401
      %v1337 = vunpack.c.l.b16 %v402
      %v1338 = vunpack.c.h.b16 %v402
      %v1339 = vunpack.c.l.b16 %v403
      %v1340 = vunpack.c.h.b16 %v403
      %v1341 = vunpack.c.l.b16 %v404
      %v1342 = vunpack.c.h.b16 %v404
      %v1343 = vunpack.c.l.b16 %v405
      %v1344 = vunpack.c.h.b16 %v405
      %v1345 = vunpack.c.l.b16 %v406
      %v1346 = vunpack.c.h.b16 %v406
      %v1347 = vunpack.c.l.b16 %v407
      %v1348 = vunpack.c.h.b16 %v407
      %v1349 = vunpack.c.l.b16 %v408
      %v1350 = vunpack.c.h.b16 %v408
      %v1351 = vunpack.c.l.b16 %v409
      %v1352 = vunpack.c.h.b16 %v409
      %v1353 = vunpack.c.l.b16 %v410
      %v1354 = vunpack.c.h.b16 %v410
      %v1355 = vunpack.c.l.b16 %v411
      %v1356 = vunpack.c.h.b16 %v411
      %v1357 = vunpack.c.l.b16 %v412
      %v1358 = vunpack.c.h.b16 %v412
      %v1359 = vunpack.c.l.b16 %v413
      %v1360 = vunpack.c.h.b16 %v413
      %v1361 = vunpack.c.l.b16 %v414
      %v1362 = vunpack.c.h.b16 %v414
      %v1363 = vunpack.c.l.b16 %v415
      %v1364 = vunpack.c.h.b16 %v415
      %v1365 = vunpack.c.l.b16 %v416
      %v1366 = vunpack.c.h.b16 %v416
      %v1367 = vunpack.c.l.b16 %v417
      %v1368 = vunpack.c.h.b16 %v417
      %v1369 = vunpack.c.l.b16 %v418
      %v1370 = vunpack.c.h.b16 %v418
      %v1371 = vunpack.c.l.b16 %v419
      %v1372 = vunpack.c.h.b16 %v419
      %v1373 = vunpack.c.l.b16 %v420
      %v1374 = vunpack.c.h.b16 %v420
      %v1375 = vunpack.c.l.b16 %v421
      %v1376 = vunpack.c.h.b16 %v421
      %v1377 = vunpack.c.l.b16 %v422
      %v1378 = vunpack.c.h.b16 %v422
      %v1379 = vunpack.c.l.b16 %v423
      %v1380 = vunpack.c.h.b16 %v423
      %v1381 = vunpack.c.l.b16 %v424
      %v1382 = vunpack.c.h.b16 %v424
      %v1383 = vunpack.c.l.b16 %v425
      %v1384 = vunpack.c.h.b16 %v425
      %v1385 = vunpack.c.l.b16 %v426
      %v1386 = vunpack.c.h.b16 %v426
      %v1387 = vunpack.c.l.b16 %v427
      %v1388 = vunpack.c.h.b16 %v427
      %v1389 = vunpack.c.l.b16 %v428
      %v1390 = vunpack.c.h.b16 %v428
      %v1391 = vunpack.c.l.b16 %v429
      %v1392 = vunpack.c.h.b16 %v429
      %v1393 = vunpack.c.l.b16 %v430
      %v1394 = vunpack.c.h.b16 %v430
      %v1395 = vunpack.c.l.b16 %v431
      %v1396 = vunpack.c.h.b16 %v431
      %v1397 = vunpack.c.l.b16 %v432
      %v1398 = vunpack.c.h.b16 %v432
      %v1399 = vunpack.c.l.b16 %v433
      %v1400 = vunpack.c.h.b16 %v433
      %v1401 = vunpack.c.l.b16 %v434
      %v1402 = vunpack.c.h.b16 %v434
      %v1403 = vunpack.c.l.b16 %v435
      %v1404 = vunpack.c.h.b16 %v435
      %v1405 = vunpack.c.l.b16 %v436
      %v1406 = vunpack.c.h.b16 %v436
      %v1407 = vunpack.c.l.b16 %v437
      %v1408 = vunpack.c.h.b16 %v437
      %v1409 = vunpack.c.l.b16 %v438
      %v1410 = vunpack.c.h.b16 %v438
      %v1411 = vunpack.c.l.b16 %v439
      %v1412 = vunpack.c.h.b16 %v439
      %v1413 = vunpack.c.l.b16 %v440
      %v1414 = vunpack.c.h.b16 %v440
      %v1415 = vunpack.c.l.b16 %v441
      %v1416 = vunpack.c.h.b16 %v441
      %v1417 = vunpack.c.l.b16 %v442
      %v1418 = vunpack.c.h.b16 %v442
      %v1419 = vunpack.c.l.b16 %v443
      %v1420 = vunpack.c.h.b16 %v443
      %v1421 = vunpack.c.l.b16 %v444
      %v1422 = vunpack.c.h.b16 %v444
      %v1423 = vunpack.c.l.b16 %v445
      %v1424 = vunpack.c.h.b16 %v445
      %v1425 = vunpack.c.l.b16 %v446
      %v1426 = vunpack.c.h.b16 %v446
      %v1427 = vunpack.c.l.b16 %v447
      %v1428 = vunpack.c.h.b16 %v447
      %v1429 = vunpack.c.l.b16 %v448
      %v1430 = vunpack.c.h.b16 %v448
      %v1431 = vunpack.c.l.b16 %v449
      %v1432 = vunpack.c.h.b16 %v449
      %v1433 = vunpack.c.l.b16 %v450
      %v1434 = vunpack.c.h.b16 %v450
      %v1435 = vunpack.c.l.b16 %v451
      %v1436 = vunpack.c.h.b16 %v451
      %v1437 = vunpack.c.l.b16 %v452
      %v1438 = vunpack.c.h.b16 %v452
      %v1439 = vunpack.c.l.b16 %v453
      %v1440 = vunpack.c.h.b16 %v453
      %v1441 = vunpack.c.l.b16 %v454
      %v1442 = vunpack.c.h.b16 %v454
      %v1443 = vunpack.c.l.b16 %v455
      %v1444 = vunpack.c.h.b16 %v455
      %v1445 = vunpack.c.l.b16 %v456
      %v1446 = vunpack.c.h.b16 %v456
      %v1447 = vunpack.c.l.b16 %v457
      %v1448 = vunpack.c.h.b16 %v457
      %v1449 = vunpack.c.l.b16 %v458
      %v1450 = vunpack.c.h.b16 %v458
      %v1451 = vunpack.c.l.b16 %v459
      %v1452 = vunpack.c.h.b16 %v459
      %v1453 = vunpack.c.l.b16 %v460
      %v1454 = vunpack.c.h.b16 %v460
      %v1455 = vunpack.c.l.b16 %v461
      %v1456 = vunpack.c.h.b16 %v461
      %v1457 = vunpack.c.l.b16 %v462
      %v1458 = vunpack.c.h.b16 %v462
      %v1459 = vunpack.c.l.b16 %v463
      %v1460 = vunpack.c.h.b16 %v463
      %v1461 = vunpack.c.l.b16 %v464
      %v1462 = vunpack.c.h.b16 %v464
      %v1463 = vunpack.c.l.b16 %v465
      %v1464 = vunpack.c.h.b16 %v465
      %v1465 = vunpack.c.l.b16 %v466
      %v1466 = vunpack.c.h.b16 %v466
      %v1467 = vunpack.c.l.b16 %v467
      %v1468 = vunpack.c.h.b16 %v467
      %v1469 = vunpack.c.l.b16 %v468
      %v1470 = vunpack.c.h.b16 %v468
      %v1471 = vunpack.c.l.b16 %v469
      %v1472 = vunpack.c.h.b16 %v469
      %v1473 = vunpack.c.l.b16 %v470
      %v1474 = vunpack.c.h.b16 %v470
      %v1475 = vunpack.c.l.b16 %v471
      %v1476 = vunpack.c.h.b16 %v471
      %v1477 = vunpack.c.l.b16 %v472
      %v1478 = vunpack.c.h.b16 %v472
      %v1479 = vunpack.c.l.b16 %v473
      %v1480 = vunpack.c.h.b16 %v473
      %v1481 = vunpack.c.l.b16 %v474
      %v1482 = vunpack.c.h.b16 %v474
      %v1483 = vunpack.c.l.b16 %v475
      %v1484 = vunpack.c.h.b16 %v475
      %v1485 = vunpack.c.l.b16 %v476
      %v1486 = vunpack.c.h.b16 %v476
      %v1487 = vunpack.c.l.b16 %v477
      %v1488 = vunpack.c.h.b16 %v477
      %v1489 = vunpack.c.l.b16 %v478
      %v1490 = vunpack.c.h.b16 %v478
      %v1491 = vunpack.c.l.b16 %v479
      %v1492 = vunpack.c.h.b16 %v479
      %v1493 = vunpack.c.l.b16 %v480
      %v1494 = vunpack.c.h.b16 %v480
      %v1495 = vunpack.c.l.b16 %v481
      %v1496 = vunpack.c.h.b16 %v481
      %v1497 = vunpack.c.l.b16 %v482
      %v1498 = vunpack.c.h.b16 %v482
      %v1499 = vunpack.c.l.b16 %v483
      %v1500 = vunpack.c.h.b16 %v483
      %v1501 = vunpack.c.l.b16 %v484
      %v1502 = vunpack.c.h.b16 %v484
      %v1503 = vunpack.c.l.b16 %v485
      %v1504 = vunpack.c.h.b16 %v485
      %v1505 = vunpack.c.l.b16 %v486
      %v1506 = vunpack.c.h.b16 %v486
      %v1507 = vunpack.c.l.b16 %v487
      %v1508 = vunpack.c.h.b16 %v487
      %v1509 = vunpack.c.l.b16 %v488
      %v1510 = vunpack.c.h.b16 %v488
      %v1511 = vunpack.c.l.b16 %v489
      %v1512 = vunpack.c.h.b16 %v489
      %v1513 = vunpack.c.l.b16 %v490
      %v1514 = vunpack.c.h.b16 %v490
      %v1515 = vunpack.c.l.b16 %v491
      %v1516 = vunpack.c.h.b16 %v491
      %v1517 = vunpack.c.l.b16 %v492
      %v1518 = vunpack.c.h.b16 %v492
      %v1519 = vunpack.c.l.b16 %v493
      %v1520 = vunpack.c.h.b16 %v493
      %v1521 = vunpack.c.l.b16 %v494
      %v1522 = vunpack.c.h.b16 %v494
      %v1523 = vunpack.c.l.b16 %v495
      %v1524 = vunpack.c.h.b16 %v495
      %v1525 = vunpack.c.l.b16 %v496
      %v1526 = vunpack.c.h.b16 %v496
      %v1527 = vunpack.c.l.b16 %v497
      %v1528 = vunpack.c.h.b16 %v497
      %v1529 = vunpack.c.l.b16 %v498
      %v1530 = vunpack.c.h.b16 %v498
      %v1531 = vunpack.c.l.b16 %v499
      %v1532 = vunpack.c.h.b16 %v499
      %v1533 = vunpack.c.l.b16 %v500
      %v1534 = vunpack.c.h.b16 %v500
      %v1535 = vunpack.c.l.b16 %v501
      %v1536 = vunpack.c.h.b16 %v501
      %v1537 = vunpack.c.l.b16 %v502
      %v1538 = vunpack.c.h.b16 %v502
      %v1539 = vunpack.c.l.b16 %v503
      %v1540 = vunpack.c.h.b16 %v503
      %v1541 = vunpack.c.l.b16 %v504
      %v1542 = vunpack.c.h.b16 %v504
      %v1543 = vunpack.c.l.b16 %v505
      %v1544 = vunpack.c.h.b16 %v505
      %v1545 = vunpack.c.l.b16 %v506
      %v1546 = vunpack.c.h.b16 %v506
      %v1547 = vunpack.c.l.b16 %v507
      %v1548 = vunpack.c.h.b16 %v507
      %v1549 = vunpack.c.l.b16 %v508
      %v1550 = vunpack.c.h.b16 %v508
      %v1551 = vunpack.c.l.b16 %v509
      %v1552 = vunpack.c.h.b16 %v509
      %v1553 = vunpack.c.l.b16 %v510
      %v1554 = vunpack.c.h.b16 %v510
      %v1555 = vunpack.c.l.b16 %v511
      %v1556 = vunpack.c.h.b16 %v511
      %v1557 = vunpack.c.l.b16 %v512
      %v1558 = vunpack.c.h.b16 %v512
      %v1559 = vunpack.c.l.b16 %v513
      %v1560 = vunpack.c.h.b16 %v513
      %v1561 = vunpack.c.l.b16 %v514
      %v1562 = vunpack.c.h.b16 %v514
      %v1563 = vunpack.c.l.b16 %v515
      %v1564 = vunpack.c.h.b16 %v515
      %v1565 = vunpack.c.l.b16 %v516
      %v1566 = vunpack.c.h.b16 %v516
      %v1567 = vunpack.c.l.b16 %v517
      %v1568 = vunpack.c.h.b16 %v517
      %v1569 = vunpack.c.l.b16 %v518
      %v1570 = vunpack.c.h.b16 %v518
      %v1571 = vunpack.c.l.b16 %v519
      %v1572 = vunpack.c.h.b16 %v519
      %v1573 = vunpack.c.l.b16 %v520
      %v1574 = vunpack.c.h.b16 %v520
      %v1575 = vunpack.c.l.b16 %v521
      %v1576 = vunpack.c.h.b16 %v521
      %v1577 = vunpack.c.l.b16 %v522
      %v1578 = vunpack.c.h.b16 %v522
      %v1579 = vunpack.c.l.b16 %v523
      %v1580 = vunpack.c.h.b16 %v523
      %v1581 = vunpack.c.l.b16 %v524
      %v1582 = vunpack.c.h.b16 %v524
      %v1583 = vunpack.c.l.b16 %v525
      %v1584 = vunpack.c.h.b16 %v525
      %v1585 = vunpack.c.l.b16 %v526
      %v1586 = vunpack.c.h.b16 %v526
      %v1587 = vunpack.c.l.b16 %v527
      %v1588 = vunpack.c.h.b16 %v527
      %v1589 = vunpack.c.l.b16 %v528
      %v1590 = vunpack.c.h.b16 %v528
      %v1591 = vunpack.c.l.b16 %v529
      %v1592 = vunpack.c.h.b16 %v529
      %v1593 = vunpack.c.l.b16 %v530
      %v1594 = vunpack.c.h.b16 %v530
      %v1595 = vpack.c.b16 %v1085, %v1083
      %v1596 = vpack.c.b16 %v1086, %v1084
      %v1597 = vpack.c.b16 %v1089, %v1087
      %v1598 = vpack.c.b16 %v1090, %v1088
      %v1599 = vpack.c.b16 %v1093, %v1091
      %v1600 = vpack.c.b16 %v1094, %v1092
      %v1601 = vpack.c.b16 %v1097, %v1095
      %v1602 = vpack.c.b16 %v1098, %v1096
      %v1603 = vpack.c.b16 %v1101, %v1099
      %v1604 = vpack.c.b16 %v1102, %v1100
      %v1605 = vpack.c.b16 %v1105, %v1103
      %v1606 = vpack.c.b16 %v1106, %v1104
      %v1607 = vpack.c.b16 %v1109, %v1107
      %v1608 = vpack.c.b16 %v1110, %v1108
      %v1609 = vpack.c.b16 %v1113, %v1111
      %v1610 = vpack.c.b16 %v1114, %v1112
      %v1611 = vpack.c.b16 %v1117, %v1115
      %v1612 = vpack.c.b16 %v1118, %v1116
      %v1613 = vpack.c.b16 %v1121, %v1119
      %v1614 = vpack.c.b16 %v1122, %v1120
      %v1615 = vpack.c.b16 %v1125, %v1123
      %v1616 = vpack.c.b16 %v1126, %v1124
      %v1617 = vpack.c.b16 %v1129, %v1127
      %v1618 = vpack.c.b16 %v1130, %v1128
      %v1619 = vpack.c.b16 %v1133, %v1131
      %v1620 = vpack.c.b16 %v1134, %v1132
      %v1621 = vpack.c.b16 %v1137, %v1135
      %v1622 = vpack.c.b16 %v1138, %v1136
      %v1623 = vpack.c.b16 %v1141, %v1139
      %v1624 = vpack.c.b16 %v1142, %v1140
      %v1625 = vpack.c.b16 %v1145, %v1143
      %v1626 = vpack.c.b16 %v1146, %v1144
      %v1627 = vpack.c.b16 %v1149, %v1147
      %v1628 = vpack.c.b16 %v1150, %v1148
      %v1629 = vpack.c.b16 %v1153, %v1151
      %v1630 = vpack.c.b16 %v1154, %v1152
      %v1631 = vpack.c.b16 %v1157, %v1155
      %v1632 = vpack.c.b16 %v1158, %v1156
      %v1633 = vpack.c.b16 %v1161, %v1159
      %v1634 = vpack.c.b16 %v1162, %v1160
      %v1635 = vpack.c.b16 %v1165, %v1163
      %v1636 = vpack.c.b16 %v1166, %v1164
      %v1637 = vpack.c.b16 %v1169, %v1167
      %v1638 = vpack.c.b16 %v1170, %v1168
      %v1639 = vpack.c.b16 %v1173, %v1171
      %v1640 = vpack.c.b16 %v1174, %v1172
      %v1641 = vpack.c.b16 %v1177, %v1175
      %v1642 = vpack.c.b16 %v1178, %v1176
      %v1643 = vpack.c.b16 %v1181, %v1179
      %v1644 = vpack.c.b16 %v1182, %v1180
      %v1645 = vpack.c.b16 %v1185, %v1183
      %v1646 = vpack.c.b16 %v1186, %v1184
      %v1647 = vpack.c.b16 %v1189, %v1187
      %v1648 = vpack.c.b16 %v1190, %v1188
      %v1649 = vpack.c.b16 %v1193, %v1191
      %v1650 = vpack.c.b16 %v1194, %v1192
      %v1651 = vpack.c.b16 %v1197, %v1195
      %v1652 = vpack.c.b16 %v1198, %v1196
      %v1653 = vpack.c.b16 %v1201, %v1199
      %v1654 = vpack.c.b16 %v1202, %v1200
      %v1655 = vpack.c.b16 %v1205, %v1203
      %v1656 = vpack.c.b16 %v1206, %v1204
      %v1657 = vpack.c.b16 %v1209, %v1207
      %v1658 = vpack.c.b16 %v1210, %v1208
      %v1659 = vpack.c.b16 %v1213, %v1211
      %v1660 = vpack.c.b16 %v1214, %v1212
      %v1661 = vpack.c.b16 %v1217, %v1215
      %v1662 = vpack.c.b16 %v1218, %v1216
      %v1663 = vpack.c.b16 %v1221, %v1219
      %v1664 = vpack.c.b16 %v1222, %v1220
      %v1665 = vpack.c.b16 %v1225, %v1223
      %v1666 = vpack.c.b16 %v1226, %v1224
      %v1667 = vpack.c.b16 %v1229, %v1227
      %v1668 = vpack.c.b16 %v1230, %v1228
      %v1669 = vpack.c.b16 %v1233, %v1231
      %v1670 = vpack.c.b16 %v1234, %v1232
      %v1671 = vpack.c.b16 %v1237, %v1235
      %v1672 = vpack.c.b16 %v1238, %v1236
      %v1673 = vpack.c.b16 %v1241, %v1239
      %v1674 = vpack.c.b16 %v1242, %v1240
      %v1675 = vpack.c.b16 %v1245, %v1243
      %v1676 = vpack.c.b16 %v1246, %v1244
      %v1677 = vpack.c.b16 %v1249, %v1247
      %v1678 = vpack.c.b16 %v1250, %v1248
      %v1679 = vpack.c.b16 %v1253, %v1251
      %v1680 = vpack.c.b16 %v1254, %v1252
      %v1681 = vpack.c.b16 %v1257, %v1255
      %v1682 = vpack.c.b16 %v1258, %v1256
      %v1683 = vpack.c.b16 %v1261, %v1259
      %v1684 = vpack.c.b16 %v1262, %v1260
      %v1685 = vpack.c.b16 %v1265, %v1263
      %v1686 = vpack.c.b16 %v1266, %v1264
      %v1687 = vpack.c.b16 %v1269, %v1267
      %v1688 = vpack.c.b16 %v1270, %v1268
      %v1689 = vpack.c.b16 %v1273, %v1271
      %v1690 = vpack.c.b16 %v1274, %v1272
      %v1691 = vpack.c.b16 %v1277, %v1275
      %v1692 = vpack.c.b16 %v1278, %v1276
      %v1693 = vpack.c.b16 %v1281, %v1279
      %v1694 = vpack.c.b16 %v1282, %v1280
      %v1695 = vpack.c.b16 %v1285, %v1283
      %v1696 = vpack.c.b16 %v1286, %v1284
      %v1697 = vpack.c.b16 %v1289, %v1287
      %v1698 = vpack.c.b16 %v1290, %v1288
      %v1699 = vpack.c.b16 %v1293, %v1291
      %v1700 = vpack.c.b16 %v1294, %v1292
      %v1701 = vpack.c.b16 %v1297, %v1295
      %v1702 = vpack.c.b16 %v1298, %v1296
      %v1703 = vpack.c.b16 %v1301, %v1299
      %v1704 = vpack.c.b16 %v1302, %v1300
      %v1705 = vpack.c.b16 %v1305, %v1303
      %v1706 = vpack.c.b16 %v1306, %v1304
      %v1707 = vpack.c.b16 %v1309, %v1307
      %v1708 = vpack.c.b16 %v1310, %v1308
      %v1709 = vpack.c.b16 %v1313, %v1311
      %v1710 = vpack.c.b16 %v1314, %v1312
      %v1711 = vpack.c.b16 %v1317, %v1315
      %v1712 = vpack.c.b16 %v1318, %v1316
      %v1713 = vpack.c.b16 %v1321, %v1319
      %v1714 = vpack.c.b16 %v1322, %v1320
      %v1715 = vpack.c.b16 %v1325, %v1323
      %v1716 = vpack.c.b16 %v1326, %v1324
      %v1717 = vpack.c.b16 %v1329, %v1327
      %v1718 = vpack.c.b16 %v1330, %v1328
      %v1719 = vpack.c.b16 %v1333, %v1331
      %v1720 = vpack.c.b16 %v1334, %v1332
      %v1721 = vpack.c.b16 %v1337, %v1335
      %v1722 = vpack.c.b16 %v1338, %v1336
      %v1723 = vpack.c.b16 %v1341, %v1339
      %v1724 = vpack.c.b16 %v1342, %v1340
      %v1725 = vpack.c.b16 %v1345, %v1343
      %v1726 = vpack.c.b16 %v1346, %v1344
      %v1727 = vpack.c.b16 %v1349, %v1347
      %v1728 = vpack.c.b16 %v1350, %v1348
      %v1729 = vpack.c.b16 %v1353, %v1351
      %v1730 = vpack.c.b16 %v1354, %v1352
      %v1731 = vpack.c.b16 %v1357, %v1355
      %v1732 = vpack.c.b16 %v1358, %v1356
      %v1733 = vpack.c.b16 %v1361, %v1359
      %v1734 = vpack.c.b16 %v1362, %v1360
      %v1735 = vpack.c.b16 %v1365, %v1363
      %v1736 = vpack.c.b16 %v1366, %v1364
      %v1737 = vpack.c.b16 %v1369, %v1367
      %v1738 = vpack.c.b16 %v1370, %v1368
      %v1739 = vpack.c.b16 %v1373, %v1371
      %v1740 = vpack.c.b16 %v1374, %v1372
      %v1741 = vpack.c.b16 %v1377, %v1375
      %v1742 = vpack.c.b16 %v1378, %v1376
      %v1743 = vpack.c.b16 %v1381, %v1379
      %v1744 = vpack.c.b16 %v1382, %v1380
      %v1745 = vpack.c.b16 %v1385, %v1383
      %v1746 = vpack.c.b16 %v1386, %v1384
      %v1747 = vpack.c.b16 %v1389, %v1387
      %v1748 = vpack.c.b16 %v1390, %v1388
      %v1749 = vpack.c.b16 %v1393, %v1391
      %v1750 = vpack.c.b16 %v1394, %v1392
      %v1751 = vpack.c.b16 %v1397, %v1395
      %v1752 = vpack.c.b16 %v1398, %v1396
      %v1753 = vpack.c.b16 %v1401, %v1399
      %v1754 = vpack.c.b16 %v1402, %v1400
      %v1755 = vpack.c.b16 %v1405, %v1403
      %v1756 = vpack.c.b16 %v1406, %v1404
      %v1757 = vpack.c.b16 %v1409, %v1407
      %v1758 = vpack.c.b16 %v1410, %v1408
      %v1759 = vpack.c.b16 %v1413, %v1411
      %v1760 = vpack.c.b16 %v1414, %v1412
      %v1761 = vpack.c.b16 %v1417, %v1415
      %v1762 = vpack.c.b16 %v1418, %v1416
      %v1763 = vpack.c.b16 %v1421, %v1419
      %v1764 = vpack.c.b16 %v1422, %v1420
      %v1765 = vpack.c.b16 %v1425, %v1423
      %v1766 = vpack.c.b16 %v1426, %v1424
      %v1767 = vpack.c.b16 %v1429, %v1427
      %v1768 = vpack.c.b16 %v1430, %v1428
      %v1769 = vpack.c.b16 %v1433, %v1431
      %v1770 = vpack.c.b16 %v1434, %v1432
      %v1771 = vpack.c.b16 %v1437, %v1435
      %v1772 = vpack.c.b16 %v1438, %v1436
      %v1773 = vpack.c.b16 %v1441, %v1439
      %v1774 = vpack.c.b16 %v1442, %v1440
      %v1775 = vpack.c.b16 %v1445, %v1443
      %v1776 = vpack.c.b16 %v1446, %v1444
      %v1777 = vpack.c.b16 %v1449, %v1447
      %v1778 = vpack.c.b16 %v1450, %v1448
      %v1779 = vpack.c.b16 %v1453, %v1451
      %v1780 = vpack.c.b16 %v1454, %v1452
      %v1781 = vpack.c.b16 %v1457, %v1455
      %v1782 = vpack.c.b16 %v1458, %v1456
      %v1783 = vpack.c.b16 %v1461, %v1459
      %v1784 = vpack.c.b16 %v1462, %v1460
      %v1785 = vpack.c.b16 %v1465, %v1463
      %v1786 = vpack.c.b16 %v1466, %v1464
      %v1787 = vpack.c.b16 %v1469, %v1467
      %v1788 = vpack.c.b16 %v1470, %v1468
      %v1789 = vpack.c.b16 %v1473, %v1471
      %v1790 = vpack.c.b16 %v1474, %v1472
      %v1791 = vpack.c.b16 %v1477, %v1475
      %v1792 = vpack.c.b16 %v1478, %v1476
      %v1793 = vpack.c.b16 %v1481, %v1479
      %v1794 = vpack.c.b16 %v1482, %v1480
      %v1795 = vpack.c.b16 %v1485, %v1483
      %v1796 = vpack.c.b16 %v1486, %v1484
      %v1797 = vpack.c.b16 %v1489, %v1487
      %v1798 = vpack.c.b16 %v1490, %v1488
      %v1799 = vpack.c.b16 %v1493, %v1491
      %v1800 = vpack.c.b16 %v1494, %v1492
      %v1801 = vpack.c.b16 %v1497, %v1495
      %v1802 = vpack.c.b16 %v1498, %v1496
      %v1803 = vpack.c.b16 %v1501, %v1499
      %v1804 = vpack.c.b16 %v1502, %v1500
      %v1805 = vpack.c.b16 %v1505, %v1503
      %v1806 = vpack.c.b16 %v1506, %v1504
      %v1807 = vpack.c.b16 %v1509, %v1507
      %v1808 = vpack.c.b16 %v1510, %v1508
      %v1809 = vpack.c.b16 %v1513, %v1511
      %v1810 = vpack.c.b16 %v1514, %v1512
      %v1811 = vpack.c.b16 %v1517, %v1515
      %v1812 = vpack.c.b16 %v1518, %v1516
      %v1813 = vpack.c.b16 %v1521, %v1519
      %v1814 = vpack.c.b16 %v1522, %v1520
      %v1815 = vpack.c.b16 %v1525, %v1523
      %v1816 = vpack.c.b16 %v1526, %v1524
      %v1817 = vpack.c.b16 %v1529, %v1527
      %v1818 = vpack.c.b16 %v1530, %v1528
      %v1819 = vpack.c.b16 %v1533, %v1531
      %v1820 = vpack.c.b16 %v1534, %v1532
      %v1821 = vpack.c.b16 %v1537, %v1535
      %v1822 = vpack.c.b16 %v1538, %v1536
      %v1823 = vpack.c.b16 %v1541, %v1539
      %v1824 = vpack.c.b16 %v1542, %v1540
      %v1825 = vpack.c.b16 %v1545, %v1543
      %v1826 = vpack.c.b16 %v1546, %v1544
      %v1827 = vpack.c.b16 %v1549, %v1547
      %v1828 = vpack.c.b16 %v1550, %v1548
      %v1829 = vpack.c.b16 %v1553, %v1551
      %v1830 = vpack.c.b16 %v1554, %v1552
      %v1831 = vpack.c.b16 %v1557, %v1555
      %v1832 = vpack.c.b16 %v1558, %v1556
      %v1833 = vpack.c.b16 %v1561, %v1559
      %v1834 = vpack.c.b16 %v1562, %v1560
      %v1835 = vpack.c.b16 %v1565, %v1563
      %v1836 = vpack.c.b16 %v1566, %v1564
      %v1837 = vpack.c.b16 %v1569, %v1567
      %v1838 = vpack.c.b16 %v1570, %v1568
      %v1839 = vpack.c.b16 %v1573, %v1571
      %v1840 = vpack.c.b16 %v1574, %v1572
      %v1841 = vpack.c.b16 %v1577, %v1575
      %v1842 = vpack.c.b16 %v1578, %v1576
      %v1843 = vpack.c.b16 %v1581, %v1579
      %v1844 = vpack.c.b16 %v1582, %v1580
      %v1845 = vpack.c.b16 %v1585, %v1583
      %v1846 = vpack.c.b16 %v1586, %v1584
      %v1847 = vpack.c.b16 %v1589, %v1587
      %v1848 = vpack.c.b16 %v1590, %v1588
      %v1849 = vpack.c.b16 %v1593, %v1591
      %v1850 = vpack.c.b16 %v1594, %v1592
      %2107 = vmatprep.subr.bf16.mxu0 %v1596
      %2108 = vmatpush1.bf16.msra.mxu0 %v1595
      %2109 = vmatprep.subr.bf16.mxu0 %v1598
      %2110 = vmatpush1.bf16.msra.mxu0 %v1597
      %2111 = vmatprep.subr.bf16.mxu0 %v1600
      %2112 = vmatpush1.bf16.msra.mxu0 %v1599
      %2113 = vmatprep.subr.bf16.mxu0 %v1602
      %2114 = vmatpush1.bf16.msra.mxu0 %v1601
      %2115 = vmatprep.subr.bf16.mxu0 %v1604
      %2116 = vmatpush1.bf16.msra.mxu0 %v1603
      %2117 = vmatprep.subr.bf16.mxu0 %v1606
      %2118 = vmatpush1.bf16.msra.mxu0 %v1605
      %2119 = vmatprep.subr.bf16.mxu0 %v1608
      %2120 = vmatpush1.bf16.msra.mxu0 %v1607
      %2121 = vmatprep.subr.bf16.mxu0 %v1610
      %2122 = vmatpush1.bf16.msra.mxu0 %v1609
      %2123 = vmatprep.subr.bf16.mxu0 %v1612
      %2124 = vmatpush1.bf16.msra.mxu0 %v1611
      %2125 = vmatprep.subr.bf16.mxu0 %v1614
      %2126 = vmatpush1.bf16.msra.mxu0 %v1613
      %2127 = vmatprep.subr.bf16.mxu0 %v1616
      %2128 = vmatpush1.bf16.msra.mxu0 %v1615
      %2129 = vmatprep.subr.bf16.mxu0 %v1618
      %2130 = vmatpush1.bf16.msra.mxu0 %v1617
      %2131 = vmatprep.subr.bf16.mxu0 %v1620
      %2132 = vmatpush1.bf16.msra.mxu0 %v1619
      %2133 = vmatprep.subr.bf16.mxu0 %v1622
      %2134 = vmatpush1.bf16.msra.mxu0 %v1621
      %2135 = vmatprep.subr.bf16.mxu0 %v1624
      %2136 = vmatpush1.bf16.msra.mxu0 %v1623
      %2137 = vmatprep.subr.bf16.mxu0 %v1626
      %2138 = vmatpush1.bf16.msra.mxu0 %v1625
      %2139 = vmatprep.mubr.bf16.mxu0 %v700
      %2140 = vmatmul.mubr.bf16.gmra.mrb[0].mxu0 %v699
      %v2141 = vpop.f32.mrb[0].mxu0
      %v2142 = vadd.f32 0.0, %v2141
      %v2143 = vpop.f32.mrb[0].mxu0
      %v2144 = vadd.f32 0.0, %v2143
      %v2145 = vpop.f32.mrb[0].mxu0
      %v2146 = vadd.f32 0.0, %v2145
      %v2147 = vpop.f32.mrb[0].mxu0
      %v2148 = vadd.f32 0.0, %v2147
      %2149 = vmatprep.mubr.bf16.mxu0 %v716
      %2150 = vmatmul.mubr.bf16.gmra.mrb[0].mxu0 %v715
      %v2151 = vpop.f32.mrb[0].mxu0
      %v2152 = vadd.f32 0.0, %v2151
      %v2153 = vpop.f32.mrb[0].mxu0
      %v2154 = vadd.f32 0.0, %v2153
      %v2155 = vpop.f32.mrb[0].mxu0
      %v2156 = vadd.f32 0.0, %v2155
      %v2157 = vpop.f32.mrb[0].mxu0
      %v2158 = vadd.f32 0.0, %v2157
      %2159 = vmatprep.mubr.bf16.mxu0 %v732
      %2160 = vmatmul.mubr.bf16.gmra.mrb[0].mxu0 %v731
      %v2161 = vpop.f32.mrb[0].mxu0
      %v2162 = vadd.f32 0.0, %v2161
      %v2163 = vpop.f32.mrb[0].mxu0
      %v2164 = vadd.f32 0.0, %v2163
      %v2165 = vpop.f32.mrb[0].mxu0
      %v2166 = vadd.f32 0.0, %v2165
      %v2167 = vpop.f32.mrb[0].mxu0
      %v2168 = vadd.f32 0.0, %v2167
      %2169 = vmatprep.mubr.bf16.mxu0 %v748
      %2170 = vmatmul.mubr.bf16.gmra.mrb[0].mxu0 %v747
      %v2171 = vpop.f32.mrb[0].mxu0
      %v2172 = vadd.f32 0.0, %v2171
      %v2173 = vpop.f32.mrb[0].mxu0
      %v2174 = vadd.f32 0.0, %v2173
      %v2175 = vpop.f32.mrb[0].mxu0
      %v2176 = vpop.f32.mrb[0].mxu0
      %2177 = vdwg.mxu0
      %2178 = vmatprep.subr.bf16.mxu0 %v1628
      %2179 = vmatpush1.bf16.msra.mxu0 %v1627
      %2180 = vmatprep.subr.bf16.mxu0 %v1630
      %2181 = vmatpush1.bf16.msra.mxu0 %v1629
      %2182 = vmatprep.subr.bf16.mxu0 %v1632
      %2183 = vmatpush1.bf16.msra.mxu0 %v1631
      %2184 = vmatprep.subr.bf16.mxu0 %v1634
      %2185 = vmatpush1.bf16.msra.mxu0 %v1633
      %2186 = vmatprep.subr.bf16.mxu0 %v1636
      %2187 = vmatpush1.bf16.msra.mxu0 %v1635
      %2188 = vmatprep.subr.bf16.mxu0 %v1638
      %2189 = vmatpush1.bf16.msra.mxu0 %v1637
      %2190 = vmatprep.subr.bf16.mxu0 %v1640
      %2191 = vmatpush1.bf16.msra.mxu0 %v1639
      %2192 = vmatprep.subr.bf16.mxu0 %v1642
      %2193 = vmatpush1.bf16.msra.mxu0 %v1641
      %2194 = vmatprep.subr.bf16.mxu0 %v1644
      %2195 = vmatpush1.bf16.msra.mxu0 %v1643
      %2196 = vmatprep.subr.bf16.mxu0 %v1646
      %2197 = vmatpush1.bf16.msra.mxu0 %v1645
      %2198 = vmatprep.subr.bf16.mxu0 %v1648
      %2199 = vmatpush1.bf16.msra.mxu0 %v1647
      %2200 = vmatprep.subr.bf16.mxu0 %v1650
      %2201 = vmatpush1.bf16.msra.mxu0 %v1649
      %2202 = vmatprep.subr.bf16.mxu0 %v1652
      %2203 = vmatpush1.bf16.msra.mxu0 %v1651
      %2204 = vmatprep.subr.bf16.mxu0 %v1654
      %2205 = vmatpush1.bf16.msra.mxu0 %v1653
      %2206 = vmatprep.subr.bf16.mxu0 %v1656
      %2207 = vmatpush1.bf16.msra.mxu0 %v1655
      %2208 = vmatprep.subr.bf16.mxu0 %v1658
      %2209 = vmatpush1.bf16.msra.mxu0 %v1657
      %2210 = vmatprep.mubr.bf16.mxu0 %v702
      %2211 = vmatmul.mubr.bf16.gmra.mrb[0].mxu0 %v701
      %v2212 = vpop.f32.mrb[0].mxu0
      %v2213 = vadd.f32 %v2142, %v2212
      %v2214 = vpop.f32.mrb[0].mxu0
      %v2215 = vadd.f32 %v2144, %v2214
      %v2216 = vpop.f32.mrb[0].mxu0
      %v2217 = vadd.f32 %v2146, %v2216
      %v2218 = vpop.f32.mrb[0].mxu0
      %v2219 = vadd.f32 %v2148, %v2218
      %2220 = vmatprep.mubr.bf16.mxu0 %v718
      %2221 = vmatmul.mubr.bf16.gmra.mrb[0].mxu0 %v717
      %v2222 = vpop.f32.mrb[0].mxu0
      %v2223 = vadd.f32 %v2152, %v2222
      %v2224 = vpop.f32.mrb[0].mxu0
      %v2225 = vadd.f32 %v2154, %v2224
      %v2226 = vpop.f32.mrb[0].mxu0
      %v2227 = vadd.f32 %v2156, %v2226
      %v2228 = vpop.f32.mrb[0].mxu0
      %v2229 = vadd.f32 %v2158, %v2228
      %2230 = vmatprep.mubr.bf16.mxu0 %v734
      %2231 = vmatmul.mubr.bf16.gmra.mrb[0].mxu0 %v733
      %v2232 = vpop.f32.mrb[0].mxu0
      %v2233 = vadd.f32 %v2162, %v2232
      %v2234 = vpop.f32.mrb[0].mxu0
      %v2235 = vadd.f32 %v2164, %v2234
      %v2236 = vpop.f32.mrb[0].mxu0
      %v2237 = vadd.f32 %v2166, %v2236
      %v2238 = vpop.f32.mrb[0].mxu0
      %v2239 = vadd.f32 %v2168, %v2238
      %2240 = vmatprep.mubr.bf16.mxu0 %v750
      %2241 = vmatmul.mubr.bf16.gmra.mrb[0].mxu0 %v749
      %v2242 = vpop.f32.mrb[0].mxu0
      %v2243 = vadd.f32 %v2172, %v2242
      %v2244 = vpop.f32.mrb[0].mxu0
      %v2245 = vadd.f32 %v2174, %v2244
      %v2246 = vpop.f32.mrb[0].mxu0
      %v2247 = vpop.f32.mrb[0].mxu0
      %2248 = vdwg.mxu0
      %2249 = vmatprep.subr.bf16.mxu0 %v1660
      %2250 = vmatpush1.bf16.msra.mxu0 %v1659
      %2251 = vmatprep.subr.bf16.mxu0 %v1662
      %2252 = vmatpush1.bf16.msra.mxu0 %v1661
      %2253 = vmatprep.subr.bf16.mxu0 %v1664
      %2254 = vmatpush1.bf16.msra.mxu0 %v1663
      %2255 = vmatprep.subr.bf16.mxu0 %v1666
      %2256 = vmatpush1.bf16.msra.mxu0 %v1665
      %2257 = vmatprep.subr.bf16.mxu0 %v1668
      %2258 = vmatpush1.bf16.msra.mxu0 %v1667
      %2259 = vmatprep.subr.bf16.mxu0 %v1670
      %2260 = vmatpush1.bf16.msra.mxu0 %v1669
      %2261 = vmatprep.subr.bf16.mxu0 %v1672
      %2262 = vmatpush1.bf16.msra.mxu0 %v1671
      %2263 = vmatprep.subr.bf16.mxu0 %v1674
      %2264 = vmatpush1.bf16.msra.mxu0 %v1673
      %2265 = vmatprep.subr.bf16.mxu0 %v1676
      %2266 = vmatpush1.bf16.msra.mxu0 %v1675
      %2267 = vmatprep.subr.bf16.mxu0 %v1678
      %2268 = vmatpush1.bf16.msra.mxu0 %v1677
      %2269 = vmatprep.subr.bf16.mxu0 %v1680
      %2270 = vmatpush1.bf16.msra.mxu0 %v1679
      %2271 = vmatprep.subr.bf16.mxu0 %v1682
      %2272 = vmatpush1.bf16.msra.mxu0 %v1681
      %2273 = vmatprep.subr.bf16.mxu0 %v1684
      %2274 = vmatpush1.bf16.msra.mxu0 %v1683
      %2275 = vmatprep.subr.bf16.mxu0 %v1686
      %2276 = vmatpush1.bf16.msra.mxu0 %v1685
      %2277 = vmatprep.subr.bf16.mxu0 %v1688
      %2278 = vmatpush1.bf16.msra.mxu0 %v1687
      %2279 = vmatprep.subr.bf16.mxu0 %v1690
      %2280 = vmatpush1.bf16.msra.mxu0 %v1689
      %2281 = vmatprep.mubr.bf16.mxu0 %v704
      %2282 = vmatmul.mubr.bf16.gmra.mrb[0].mxu0 %v703
      %v2283 = vpop.f32.mrb[0].mxu0
      %v2284 = vadd.f32 %v2213, %v2283
      %v2285 = vpop.f32.mrb[0].mxu0
      %v2286 = vadd.f32 %v2215, %v2285
      %v2287 = vpop.f32.mrb[0].mxu0
      %v2288 = vadd.f32 %v2217, %v2287
      %v2289 = vpop.f32.mrb[0].mxu0
      %v2290 = vadd.f32 %v2219, %v2289
      %2291 = vmatprep.mubr.bf16.mxu0 %v720
      %2292 = vmatmul.mubr.bf16.gmra.mrb[0].mxu0 %v719
      %v2293 = vpop.f32.mrb[0].mxu0
      %v2294 = vadd.f32 %v2223, %v2293
      %v2295 = vpop.f32.mrb[0].mxu0
      %v2296 = vadd.f32 %v2225, %v2295
      %v2297 = vpop.f32.mrb[0].mxu0
      %v2298 = vadd.f32 %v2227, %v2297
      %v2299 = vpop.f32.mrb[0].mxu0
      %v2300 = vadd.f32 %v2229, %v2299
      %2301 = vmatprep.mubr.bf16.mxu0 %v736
      %2302 = vmatmul.mubr.bf16.gmra.mrb[0].mxu0 %v735
      %v2303 = vpop.f32.mrb[0].mxu0
      %v2304 = vadd.f32 %v2233, %v2303
      %v2305 = vpop.f32.mrb[0].mxu0
      %v2306 = vadd.f32 %v2235, %v2305
      %v2307 = vpop.f32.mrb[0].mxu0
      %v2308 = vadd.f32 %v2237, %v2307
      %v2309 = vpop.f32.mrb[0].mxu0
      %v2310 = vadd.f32 %v2239, %v2309
      %2311 = vmatprep.mubr.bf16.mxu0 %v752
      %2312 = vmatmul.mubr.bf16.gmra.mrb[0].mxu0 %v751
      %v2313 = vpop.f32.mrb[0].mxu0
      %v2314 = vadd.f32 %v2243, %v2313
      %v2315 = vpop.f32.mrb[0].mxu0
      %v2316 = vadd.f32 %v2245, %v2315
      %v2317 = vpop.f32.mrb[0].mxu0
      %v2318 = vpop.f32.mrb[0].mxu0
      %2319 = vdwg.mxu0
      %2320 = vmatprep.subr.bf16.mxu0 %v1692
      %2321 = vmatpush1.bf16.msra.mxu0 %v1691
      %2322 = vmatprep.subr.bf16.mxu0 %v1694
      %2323 = vmatpush1.bf16.msra.mxu0 %v1693
      %2324 = vmatprep.subr.bf16.mxu0 %v1696
      %2325 = vmatpush1.bf16.msra.mxu0 %v1695
      %2326 = vmatprep.subr.bf16.mxu0 %v1698
      %2327 = vmatpush1.bf16.msra.mxu0 %v1697
      %2328 = vmatprep.subr.bf16.mxu0 %v1700
      %2329 = vmatpush1.bf16.msra.mxu0 %v1699
      %2330 = vmatprep.subr.bf16.mxu0 %v1702
      %2331 = vmatpush1.bf16.msra.mxu0 %v1701
      %2332 = vmatprep.subr.bf16.mxu0 %v1704
      %2333 = vmatpush1.bf16.msra.mxu0 %v1703
      %2334 = vmatprep.subr.bf16.mxu0 %v1706
      %2335 = vmatpush1.bf16.msra.mxu0 %v1705
      %2336 = vmatprep.subr.bf16.mxu0 %v1708
      %2337 = vmatpush1.bf16.msra.mxu0 %v1707
      %2338 = vmatprep.subr.bf16.mxu0 %v1710
      %2339 = vmatpush1.bf16.msra.mxu0 %v1709
      %2340 = vmatprep.subr.bf16.mxu0 %v1712
      %2341 = vmatpush1.bf16.msra.mxu0 %v1711
      %2342 = vmatprep.subr.bf16.mxu0 %v1714
      %2343 = vmatpush1.bf16.msra.mxu0 %v1713
      %2344 = vmatprep.subr.bf16.mxu0 %v1716
      %2345 = vmatpush1.bf16.msra.mxu0 %v1715
      %2346 = vmatprep.subr.bf16.mxu0 %v1718
      %2347 = vmatpush1.bf16.msra.mxu0 %v1717
      %2348 = vmatprep.subr.bf16.mxu0 %v1720
      %2349 = vmatpush1.bf16.msra.mxu0 %v1719
      %2350 = vmatprep.subr.bf16.mxu0 %v1722
      %2351 = vmatpush1.bf16.msra.mxu0 %v1721
      %2352 = vmatprep.mubr.bf16.mxu0 %v706
      %2353 = vmatmul.mubr.bf16.gmra.mrb[0].mxu0 %v705
      %v2354 = vpop.f32.mrb[0].mxu0
      %v2355 = vadd.f32 %v2284, %v2354
      %v2356 = vpop.f32.mrb[0].mxu0
      %v2357 = vadd.f32 %v2286, %v2356
      %v2358 = vpop.f32.mrb[0].mxu0
      %v2359 = vadd.f32 %v2288, %v2358
      %v2360 = vpop.f32.mrb[0].mxu0
      %v2361 = vadd.f32 %v2290, %v2360
      %2362 = vmatprep.mubr.bf16.mxu0 %v722
      %2363 = vmatmul.mubr.bf16.gmra.mrb[0].mxu0 %v721
      %v2364 = vpop.f32.mrb[0].mxu0
      %v2365 = vadd.f32 %v2294, %v2364
      %v2366 = vpop.f32.mrb[0].mxu0
      %v2367 = vadd.f32 %v2296, %v2366
      %v2368 = vpop.f32.mrb[0].mxu0
      %v2369 = vadd.f32 %v2298, %v2368
      %v2370 = vpop.f32.mrb[0].mxu0
      %v2371 = vadd.f32 %v2300, %v2370
      %2372 = vmatprep.mubr.bf16.mxu0 %v738
      %2373 = vmatmul.mubr.bf16.gmra.mrb[0].mxu0 %v737
      %v2374 = vpop.f32.mrb[0].mxu0
      %v2375 = vadd.f32 %v2304, %v2374
      %v2376 = vpop.f32.mrb[0].mxu0
      %v2377 = vadd.f32 %v2306, %v2376
      %v2378 = vpop.f32.mrb[0].mxu0
      %v2379 = vadd.f32 %v2308, %v2378
      %v2380 = vpop.f32.mrb[0].mxu0
      %v2381 = vadd.f32 %v2310, %v2380
      %2382 = vmatprep.mubr.bf16.mxu0 %v754
      %2383 = vmatmul.mubr.bf16.gmra.mrb[0].mxu0 %v753
      %v2384 = vpop.f32.mrb[0].mxu0
      %v2385 = vadd.f32 %v2314, %v2384
      %v2386 = vpop.f32.mrb[0].mxu0
      %v2387 = vadd.f32 %v2316, %v2386
      %v2388 = vpop.f32.mrb[0].mxu0
      %v2389 = vpop.f32.mrb[0].mxu0
      %2390 = vdwg.mxu0
      %2391 = vmatprep.subr.bf16.mxu0 %v1724
      %2392 = vmatpush1.bf16.msra.mxu0 %v1723
      %2393 = vmatprep.subr.bf16.mxu0 %v1726
      %2394 = vmatpush1.bf16.msra.mxu0 %v1725
      %2395 = vmatprep.subr.bf16.mxu0 %v1728
      %2396 = vmatpush1.bf16.msra.mxu0 %v1727
      %2397 = vmatprep.subr.bf16.mxu0 %v1730
      %2398 = vmatpush1.bf16.msra.mxu0 %v1729
      %2399 = vmatprep.subr.bf16.mxu0 %v1732
      %2400 = vmatpush1.bf16.msra.mxu0 %v1731
      %2401 = vmatprep.subr.bf16.mxu0 %v1734
      %2402 = vmatpush1.bf16.msra.mxu0 %v1733
      %2403 = vmatprep.subr.bf16.mxu0 %v1736
      %2404 = vmatpush1.bf16.msra.mxu0 %v1735
      %2405 = vmatprep.subr.bf16.mxu0 %v1738
      %2406 = vmatpush1.bf16.msra.mxu0 %v1737
      %2407 = vmatprep.subr.bf16.mxu0 %v1740
      %2408 = vmatpush1.bf16.msra.mxu0 %v1739
      %2409 = vmatprep.subr.bf16.mxu0 %v1742
      %2410 = vmatpush1.bf16.msra.mxu0 %v1741
      %2411 = vmatprep.subr.bf16.mxu0 %v1744
      %2412 = vmatpush1.bf16.msra.mxu0 %v1743
      %2413 = vmatprep.subr.bf16.mxu0 %v1746
      %2414 = vmatpush1.bf16.msra.mxu0 %v1745
      %2415 = vmatprep.subr.bf16.mxu0 %v1748
      %2416 = vmatpush1.bf16.msra.mxu0 %v1747
      %2417 = vmatprep.subr.bf16.mxu0 %v1750
      %2418 = vmatpush1.bf16.msra.mxu0 %v1749
      %2419 = vmatprep.subr.bf16.mxu0 %v1752
      %2420 = vmatpush1.bf16.msra.mxu0 %v1751
      %2421 = vmatprep.subr.bf16.mxu0 %v1754
      %2422 = vmatpush1.bf16.msra.mxu0 %v1753
      %2423 = vmatprep.mubr.bf16.mxu0 %v708
      %2424 = vmatmul.mubr.bf16.gmra.mrb[0].mxu0 %v707
      %v2425 = vpop.f32.mrb[0].mxu0
      %v2426 = vadd.f32 %v2355, %v2425
      %v2427 = vpop.f32.mrb[0].mxu0
      %v2428 = vadd.f32 %v2357, %v2427
      %v2429 = vpop.f32.mrb[0].mxu0
      %v2430 = vadd.f32 %v2359, %v2429
      %v2431 = vpop.f32.mrb[0].mxu0
      %v2432 = vadd.f32 %v2361, %v2431
      %2433 = vmatprep.mubr.bf16.mxu0 %v724
      %2434 = vmatmul.mubr.bf16.gmra.mrb[0].mxu0 %v723
      %v2435 = vpop.f32.mrb[0].mxu0
      %v2436 = vadd.f32 %v2365, %v2435
      %v2437 = vpop.f32.mrb[0].mxu0
      %v2438 = vadd.f32 %v2367, %v2437
      %v2439 = vpop.f32.mrb[0].mxu0
      %v2440 = vadd.f32 %v2369, %v2439
      %v2441 = vpop.f32.mrb[0].mxu0
      %v2442 = vadd.f32 %v2371, %v2441
      %2443 = vmatprep.mubr.bf16.mxu0 %v740
      %2444 = vmatmul.mubr.bf16.gmra.mrb[0].mxu0 %v739
      %v2445 = vpop.f32.mrb[0].mxu0
      %v2446 = vadd.f32 %v2375, %v2445
      %v2447 = vpop.f32.mrb[0].mxu0
      %v2448 = vadd.f32 %v2377, %v2447
      %v2449 = vpop.f32.mrb[0].mxu0
      %v2450 = vadd.f32 %v2379, %v2449
      %v2451 = vpop.f32.mrb[0].mxu0
      %v2452 = vadd.f32 %v2381, %v2451
      %2453 = vmatprep.mubr.bf16.mxu0 %v756
      %2454 = vmatmul.mubr.bf16.gmra.mrb[0].mxu0 %v755
      %v2455 = vpop.f32.mrb[0].mxu0
      %v2456 = vadd.f32 %v2385, %v2455
      %v2457 = vpop.f32.mrb[0].mxu0
      %v2458 = vadd.f32 %v2387, %v2457
      %v2459 = vpop.f32.mrb[0].mxu0
      %v2460 = vpop.f32.mrb[0].mxu0
      %2461 = vdwg.mxu0
      %2462 = vmatprep.subr.bf16.mxu0 %v1756
      %2463 = vmatpush1.bf16.msra.mxu0 %v1755
      %2464 = vmatprep.subr.bf16.mxu0 %v1758
      %2465 = vmatpush1.bf16.msra.mxu0 %v1757
      %2466 = vmatprep.subr.bf16.mxu0 %v1760
      %2467 = vmatpush1.bf16.msra.mxu0 %v1759
      %2468 = vmatprep.subr.bf16.mxu0 %v1762
      %2469 = vmatpush1.bf16.msra.mxu0 %v1761
      %2470 = vmatprep.subr.bf16.mxu0 %v1764
      %2471 = vmatpush1.bf16.msra.mxu0 %v1763
      %2472 = vmatprep.subr.bf16.mxu0 %v1766
      %2473 = vmatpush1.bf16.msra.mxu0 %v1765
      %2474 = vmatprep.subr.bf16.mxu0 %v1768
      %2475 = vmatpush1.bf16.msra.mxu0 %v1767
      %2476 = vmatprep.subr.bf16.mxu0 %v1770
      %2477 = vmatpush1.bf16.msra.mxu0 %v1769
      %2478 = vmatprep.subr.bf16.mxu0 %v1772
      %2479 = vmatpush1.bf16.msra.mxu0 %v1771
      %2480 = vmatprep.subr.bf16.mxu0 %v1774
      %2481 = vmatpush1.bf16.msra.mxu0 %v1773
      %2482 = vmatprep.subr.bf16.mxu0 %v1776
      %2483 = vmatpush1.bf16.msra.mxu0 %v1775
      %2484 = vmatprep.subr.bf16.mxu0 %v1778
      %2485 = vmatpush1.bf16.msra.mxu0 %v1777
      %2486 = vmatprep.subr.bf16.mxu0 %v1780
      %2487 = vmatpush1.bf16.msra.mxu0 %v1779
      %2488 = vmatprep.subr.bf16.mxu0 %v1782
      %2489 = vmatpush1.bf16.msra.mxu0 %v1781
      %2490 = vmatprep.subr.bf16.mxu0 %v1784
      %2491 = vmatpush1.bf16.msra.mxu0 %v1783
      %2492 = vmatprep.subr.bf16.mxu0 %v1786
      %2493 = vmatpush1.bf16.msra.mxu0 %v1785
      %2494 = vmatprep.mubr.bf16.mxu0 %v710
      %2495 = vmatmul.mubr.bf16.gmra.mrb[0].mxu0 %v709
      %v2496 = vpop.f32.mrb[0].mxu0
      %v2497 = vadd.f32 %v2426, %v2496
      %v2498 = vpop.f32.mrb[0].mxu0
      %v2499 = vadd.f32 %v2428, %v2498
      %v2500 = vpop.f32.mrb[0].mxu0
      %v2501 = vadd.f32 %v2430, %v2500
      %v2502 = vpop.f32.mrb[0].mxu0
      %v2503 = vadd.f32 %v2432, %v2502
      %2504 = vmatprep.mubr.bf16.mxu0 %v726
      %2505 = vmatmul.mubr.bf16.gmra.mrb[0].mxu0 %v725
      %v2506 = vpop.f32.mrb[0].mxu0
      %v2507 = vadd.f32 %v2436, %v2506
      %v2508 = vpop.f32.mrb[0].mxu0
      %v2509 = vadd.f32 %v2438, %v2508
      %v2510 = vpop.f32.mrb[0].mxu0
      %v2511 = vadd.f32 %v2440, %v2510
      %v2512 = vpop.f32.mrb[0].mxu0
      %v2513 = vadd.f32 %v2442, %v2512
      %2514 = vmatprep.mubr.bf16.mxu0 %v742
      %2515 = vmatmul.mubr.bf16.gmra.mrb[0].mxu0 %v741
      %v2516 = vpop.f32.mrb[0].mxu0
      %v2517 = vadd.f32 %v2446, %v2516
      %v2518 = vpop.f32.mrb[0].mxu0
      %v2519 = vadd.f32 %v2448, %v2518
      %v2520 = vpop.f32.mrb[0].mxu0
      %v2521 = vadd.f32 %v2450, %v2520
      %v2522 = vpop.f32.mrb[0].mxu0
      %v2523 = vadd.f32 %v2452, %v2522
      %2524 = vmatprep.mubr.bf16.mxu0 %v758
      %2525 = vmatmul.mubr.bf16.gmra.mrb[0].mxu0 %v757
      %v2526 = vpop.f32.mrb[0].mxu0
      %v2527 = vadd.f32 %v2456, %v2526
      %v2528 = vpop.f32.mrb[0].mxu0
      %v2529 = vadd.f32 %v2458, %v2528
      %v2530 = vpop.f32.mrb[0].mxu0
      %v2531 = vpop.f32.mrb[0].mxu0
      %2532 = vdwg.mxu0
      %2533 = vmatprep.subr.bf16.mxu0 %v1788
      %2534 = vmatpush1.bf16.msra.mxu0 %v1787
      %2535 = vmatprep.subr.bf16.mxu0 %v1790
      %2536 = vmatpush1.bf16.msra.mxu0 %v1789
      %2537 = vmatprep.subr.bf16.mxu0 %v1792
      %2538 = vmatpush1.bf16.msra.mxu0 %v1791
      %2539 = vmatprep.subr.bf16.mxu0 %v1794
      %2540 = vmatpush1.bf16.msra.mxu0 %v1793
      %2541 = vmatprep.subr.bf16.mxu0 %v1796
      %2542 = vmatpush1.bf16.msra.mxu0 %v1795
      %2543 = vmatprep.subr.bf16.mxu0 %v1798
      %2544 = vmatpush1.bf16.msra.mxu0 %v1797
      %2545 = vmatprep.subr.bf16.mxu0 %v1800
      %2546 = vmatpush1.bf16.msra.mxu0 %v1799
      %2547 = vmatprep.subr.bf16.mxu0 %v1802
      %2548 = vmatpush1.bf16.msra.mxu0 %v1801
      %2549 = vmatprep.subr.bf16.mxu0 %v1804
      %2550 = vmatpush1.bf16.msra.mxu0 %v1803
      %2551 = vmatprep.subr.bf16.mxu0 %v1806
      %2552 = vmatpush1.bf16.msra.mxu0 %v1805
      %2553 = vmatprep.subr.bf16.mxu0 %v1808
      %2554 = vmatpush1.bf16.msra.mxu0 %v1807
      %2555 = vmatprep.subr.bf16.mxu0 %v1810
      %2556 = vmatpush1.bf16.msra.mxu0 %v1809
      %2557 = vmatprep.subr.bf16.mxu0 %v1812
      %2558 = vmatpush1.bf16.msra.mxu0 %v1811
      %2559 = vmatprep.subr.bf16.mxu0 %v1814
      %2560 = vmatpush1.bf16.msra.mxu0 %v1813
      %2561 = vmatprep.subr.bf16.mxu0 %v1816
      %2562 = vmatpush1.bf16.msra.mxu0 %v1815
      %2563 = vmatprep.subr.bf16.mxu0 %v1818
      %2564 = vmatpush1.bf16.msra.mxu0 %v1817
      %2565 = vmatprep.mubr.bf16.mxu0 %v712
      %2566 = vmatmul.mubr.bf16.gmra.mrb[0].mxu0 %v711
      %v2567 = vpop.f32.mrb[0].mxu0
      %v2568 = vadd.f32 %v2497, %v2567
      %v2569 = vpop.f32.mrb[0].mxu0
      %v2570 = vadd.f32 %v2499, %v2569
      %v2571 = vpop.f32.mrb[0].mxu0
      %v2572 = vadd.f32 %v2501, %v2571
      %v2573 = vpop.f32.mrb[0].mxu0
      %v2574 = vadd.f32 %v2503, %v2573
      %2575 = vmatprep.mubr.bf16.mxu0 %v728
      %2576 = vmatmul.mubr.bf16.gmra.mrb[0].mxu0 %v727
      %v2577 = vpop.f32.mrb[0].mxu0
      %v2578 = vadd.f32 %v2507, %v2577
      %v2579 = vpop.f32.mrb[0].mxu0
      %v2580 = vadd.f32 %v2509, %v2579
      %v2581 = vpop.f32.mrb[0].mxu0
      %v2582 = vadd.f32 %v2511, %v2581
      %v2583 = vpop.f32.mrb[0].mxu0
      %v2584 = vadd.f32 %v2513, %v2583
      %2585 = vmatprep.mubr.bf16.mxu0 %v744
      %2586 = vmatmul.mubr.bf16.gmra.mrb[0].mxu0 %v743
      %v2587 = vpop.f32.mrb[0].mxu0
      %v2588 = vadd.f32 %v2517, %v2587
      %v2589 = vpop.f32.mrb[0].mxu0
      %v2590 = vadd.f32 %v2519, %v2589
      %v2591 = vpop.f32.mrb[0].mxu0
      %v2592 = vadd.f32 %v2521, %v2591
      %v2593 = vpop.f32.mrb[0].mxu0
      %v2594 = vadd.f32 %v2523, %v2593
      %2595 = vmatprep.mubr.bf16.mxu0 %v760
      %2596 = vmatmul.mubr.bf16.gmra.mrb[0].mxu0 %v759
      %v2597 = vpop.f32.mrb[0].mxu0
      %v2598 = vadd.f32 %v2527, %v2597
      %v2599 = vpop.f32.mrb[0].mxu0
      %v2600 = vadd.f32 %v2529, %v2599
      %v2601 = vpop.f32.mrb[0].mxu0
      %v2602 = vpop.f32.mrb[0].mxu0
      %2603 = vdwg.mxu0
      %2604 = vmatprep.subr.bf16.mxu0 %v1820
      %2605 = vmatpush1.bf16.msra.mxu0 %v1819
      %2606 = vmatprep.subr.bf16.mxu0 %v1822
      %2607 = vmatpush1.bf16.msra.mxu0 %v1821
      %2608 = vmatprep.subr.bf16.mxu0 %v1824
      %2609 = vmatpush1.bf16.msra.mxu0 %v1823
      %2610 = vmatprep.subr.bf16.mxu0 %v1826
      %2611 = vmatpush1.bf16.msra.mxu0 %v1825
      %2612 = vmatprep.subr.bf16.mxu0 %v1828
      %2613 = vmatpush1.bf16.msra.mxu0 %v1827
      %2614 = vmatprep.subr.bf16.mxu0 %v1830
      %2615 = vmatpush1.bf16.msra.mxu0 %v1829
      %2616 = vmatprep.subr.bf16.mxu0 %v1832
      %2617 = vmatpush1.bf16.msra.mxu0 %v1831
      %2618 = vmatprep.subr.bf16.mxu0 %v1834
      %2619 = vmatpush1.bf16.msra.mxu0 %v1833
      %2620 = vmatprep.subr.bf16.mxu0 %v1836
      %2621 = vmatpush1.bf16.msra.mxu0 %v1835
      %2622 = vmatprep.subr.bf16.mxu0 %v1838
      %2623 = vmatpush1.bf16.msra.mxu0 %v1837
      %2624 = vmatprep.subr.bf16.mxu0 %v1840
      %2625 = vmatpush1.bf16.msra.mxu0 %v1839
      %2626 = vmatprep.subr.bf16.mxu0 %v1842
      %2627 = vmatpush1.bf16.msra.mxu0 %v1841
      %2628 = vmatprep.subr.bf16.mxu0 %v1844
      %2629 = vmatpush1.bf16.msra.mxu0 %v1843
      %2630 = vmatprep.subr.bf16.mxu0 %v1846
      %2631 = vmatpush1.bf16.msra.mxu0 %v1845
      %2632 = vmatprep.subr.bf16.mxu0 %v1848
      %2633 = vmatpush1.bf16.msra.mxu0 %v1847
      %2634 = vmatprep.subr.bf16.mxu0 %v1850
      %2635 = vmatpush1.bf16.msra.mxu0 %v1849
      %2636 = vmatprep.mubr.bf16.mxu0 %v714
      %2637 = vmatmul.mubr.bf16.gmra.mrb[0].mxu0 %v713
      %v2638 = vpop.f32.mrb[0].mxu0
      %v2639 = vadd.f32 %v2568, %v2638
      %v2640 = vpop.f32.mrb[0].mxu0
      %v2641 = vadd.f32 %v2570, %v2640
      %v2642 = vpop.f32.mrb[0].mxu0
      %v2643 = vadd.f32 %v2572, %v2642
      %v2644 = vpop.f32.mrb[0].mxu0
      %v2645 = vadd.f32 %v2574, %v2644
      %2646 = vmatprep.mubr.bf16.mxu0 %v730
      %2647 = vmatmul.mubr.bf16.gmra.mrb[0].mxu0 %v729
      %v2648 = vpop.f32.mrb[0].mxu0
      %v2649 = vadd.f32 %v2578, %v2648
      %v2650 = vpop.f32.mrb[0].mxu0
      %v2651 = vadd.f32 %v2580, %v2650
      %v2652 = vpop.f32.mrb[0].mxu0
      %v2653 = vadd.f32 %v2582, %v2652
      %v2654 = vpop.f32.mrb[0].mxu0
      %v2655 = vadd.f32 %v2584, %v2654
      %2656 = vmatprep.mubr.bf16.mxu0 %v746
      %2657 = vmatmul.mubr.bf16.gmra.mrb[0].mxu0 %v745
      %v2658 = vpop.f32.mrb[0].mxu0
      %v2659 = vadd.f32 %v2588, %v2658
      %v2660 = vpop.f32.mrb[0].mxu0
      %v2661 = vadd.f32 %v2590, %v2660
      %v2662 = vpop.f32.mrb[0].mxu0
      %v2663 = vadd.f32 %v2592, %v2662
      %v2664 = vpop.f32.mrb[0].mxu0
      %v2665 = vadd.f32 %v2594, %v2664
      %2666 = vmatprep.mubr.bf16.mxu0 %v762
      %2667 = vmatmul.mubr.bf16.gmra.mrb[0].mxu0 %v761
      %v2668 = vpop.f32.mrb[0].mxu0
      %v2669 = vadd.f32 %v2598, %v2668
      %v2670 = vpop.f32.mrb[0].mxu0
      %v2671 = vadd.f32 %v2600, %v2670
      %v2672 = vpop.f32.mrb[0].mxu0
      %v2673 = vpop.f32.mrb[0].mxu0
      %2674 = vdwg.mxu0
      %2675 = vst [vmem:[%s210] sm:$0xff] %v2639
      %2676 = vst [vmem:[%s210 + $0x8] sm:$0xff] %v2641
      %2677 = vst [vmem:[%s210 + $0x10] sm:$0xff] %v2643
      %2678 = vst [vmem:[%s210 + $0x18] sm:$0xff] %v2645
      %2679 = vst [vmem:[%s210 + $0x20] sm:$0xff] %v2649
      %2680 = vst [vmem:[%s210 + $0x28] sm:$0xff] %v2651
      %2681 = vst [vmem:[%s210 + $0x30] sm:$0xff] %v2653
      %2682 = vst [vmem:[%s210 + $0x38] sm:$0xff] %v2655
      %2683 = vst [vmem:[%s210 + $0x40] sm:$0xff] %v2659
      %2684 = vst [vmem:[%s210 + $0x48] sm:$0xff] %v2661
      %2685 = vst [vmem:[%s210 + $0x50] sm:$0xff] %v2663
      %2686 = vst [vmem:[%s210 + $0x58] sm:$0xff] %v2665
      %2687 = vst [vmem:[%s210 + $0x60] sm:$0x1] %v2669
      %2688 = vst [vmem:[%s210 + $0x68] sm:$0x1] %v2671
      %v2689 = vadd.f32 %v2639, %v2643
      %v2690 = vadd.f32 %v2689, %v2649
      %v2691 = vadd.f32 %v2690, %v2653
      %v2692 = vadd.f32 %v2691, %v2659
      %v2693 = vadd.f32 %v2692, %v2663
      %vm2694 = vcmask 1040384
      %v2695 = vsel %vm2694, %v2669, 0.0
      %v2696 = vadd.f32 %v2693, %v2695
      %v2697 = vrot.slane %v2696, 4
      %v2698 = vadd.f32 %v2696, %v2697
      %v2699 = vrot.slane %v2698, 2
      %v2700 = vadd.f32 %v2698, %v2699
      %v2701 = vrot.slane %v2700, 1
      %v2702 = vadd.f32 %v2700, %v2701
      %v2703 = vadd.f32 %v2641, %v2645
      %v2704 = vadd.f32 %v2703, %v2651
      %v2705 = vadd.f32 %v2704, %v2655
      %v2706 = vadd.f32 %v2705, %v2661
      %v2707 = vadd.f32 %v2706, %v2665
      %v2708 = vsel %vm2694, %v2671, 0.0
      %v2709 = vadd.f32 %v2707, %v2708
      %v2710 = vrot.slane %v2709, 4
      %v2711 = vadd.f32 %v2709, %v2710
      %v2712 = vrot.slane %v2711, 2
      %v2713 = vadd.f32 %v2711, %v2712
      %v2714 = vrot.slane %v2713, 1
      %v2715 = vadd.f32 %v2713, %v2714
      %v2718 = vcombine.low %v2702, %v2715
      %v2720 = vunpack.c.l.s4 1966171168
      %v2721 = vunpack.c.0.s8 %v2720
      %v2722 = vlaneseq
      %v2723 = vshrl.u32 %v2722, 7
      %v2724 = vsub.s32 %v2721, %v2723
      %v2725 = vrot.slane %v2718, %v2724
      %v2727 = vunpack.c.l.s4 1966171168
      %v2728 = vunpack.c.0.s8 %v2727
      %v2729 = vlaneseq
      %v2730 = vshrl.u32 %v2729, 7
      %v2731 = vsub.s32 %v2728, %v2730
      %v2732 = vrot.slane %v2725, %v2731
      %v2734 = vlaneseq
      %vm2735 = vcmp.ge.s32.totalorder %v2734, 0
      %vm2736 = vcmp.lt.s32.totalorder %v2734, 256
      %vm2737 = vmand %vm2735, %vm2736
      %2738 = vst.msk [vmem:[%s214] sm:$0x3] %vm2737, %v2732
      %v2739 = vmul.f32 %v2639, %v2639
      %v2740 = vmul.f32 %v2641, %v2641
      %v2741 = vmul.f32 %v2643, %v2643
      %v2742 = vmul.f32 %v2645, %v2645
      %v2743 = vmul.f32 %v2649, %v2649
      %v2744 = vmul.f32 %v2651, %v2651
      %v2745 = vmul.f32 %v2653, %v2653
      %v2746 = vmul.f32 %v2655, %v2655
      %v2747 = vmul.f32 %v2659, %v2659
      %v2748 = vmul.f32 %v2661, %v2661
      %v2749 = vmul.f32 %v2663, %v2663
      %v2750 = vmul.f32 %v2665, %v2665
      %v2751 = vmul.f32 %v2669, %v2669
      %v2752 = vmul.f32 %v2671, %v2671
      %v2753 = vadd.f32 %v2739, %v2741
      %v2754 = vadd.f32 %v2753, %v2743
      %v2755 = vadd.f32 %v2754, %v2745
      %v2756 = vadd.f32 %v2755, %v2747
      %v2757 = vadd.f32 %v2756, %v2749
      %v2758 = vsel %vm2694, %v2751, 0.0
      %v2759 = vadd.f32 %v2757, %v2758
      %v2760 = vrot.slane %v2759, 4
      %v2761 = vadd.f32 %v2759, %v2760
      %v2762 = vrot.slane %v2761, 2
      %v2763 = vadd.f32 %v2761, %v2762
      %v2764 = vrot.slane %v2763, 1
      %v2765 = vadd.f32 %v2763, %v2764
      %v2766 = vadd.f32 %v2740, %v2742
      %v2767 = vadd.f32 %v2766, %v2744
      %v2768 = vadd.f32 %v2767, %v2746
      %v2769 = vadd.f32 %v2768, %v2748
      %v2770 = vadd.f32 %v2769, %v2750
      %v2771 = vsel %vm2694, %v2752, 0.0
      %v2772 = vadd.f32 %v2770, %v2771
      %v2773 = vrot.slane %v2772, 4
      %v2774 = vadd.f32 %v2772, %v2773
      %v2775 = vrot.slane %v2774, 2
      %v2776 = vadd.f32 %v2774, %v2775
      %v2777 = vrot.slane %v2776, 1
      %v2778 = vadd.f32 %v2776, %v2777
      %v2781 = vcombine.low %v2765, %v2778
      %v2783 = vunpack.c.l.s4 1966171168
      %v2784 = vunpack.c.0.s8 %v2783
      %v2785 = vlaneseq
      %v2786 = vshrl.u32 %v2785, 7
      %v2787 = vsub.s32 %v2784, %v2786
      %v2788 = vrot.slane %v2781, %v2787
      %v2790 = vunpack.c.l.s4 1966171168
      %v2791 = vunpack.c.0.s8 %v2790
      %v2792 = vlaneseq
      %v2793 = vshrl.u32 %v2792, 7
      %v2794 = vsub.s32 %v2791, %v2793
      %v2795 = vrot.slane %v2788, %v2794
      %2797 = vst.msk [vmem:[%s218] sm:$0x3] %vm2737, %v2795
      %p2798 = scmp.lt.s32.totalorder %s16, 1
      %s2799 = scalar_select %p2798, %s16, 1
      %s2800 = smul.addr %s2799, 14
      %s2801 = smul.addr %s2800, 8
      %s2802 = scalar_lea.vmem %s2, %s2801
      %p2803 = scmp.lt.s32.totalorder %s16, 1
      %s2804 = scalar_select %p2803, %s16, 1
      %s2805 = smul.addr %s2804, 2
      %s2806 = scalar_lea.vmem %s3, %s2805
      %p2807 = scmp.lt.s32.totalorder %s16, 1
      %s2808 = scalar_select %p2807, %s16, 1
      %s2809 = smul.addr %s2808, 2
      %s2810 = scalar_lea.vmem %s4, %s2809
      // Predicated region
      $region29: #{discriminator_forward.4} parent=27 // pred_check
        %p2811 = pneg %p81
      $region30: #{discriminator_forward.4} parent=27 // pred_check_branch
        %2813 = sbr.rel (%p2811) target = $region32
      $region31: #{discriminator_forward.4} parent=27 // pred_region
        _
      $region32: #{discriminator_forward.4} parent=27 // pred_fallthru
        _
      // Predicated region
      $region33: #{discriminator_forward.4} parent=27 // pred_check
        %p2814 = pneg %p107
      $region34: #{discriminator_forward.4} parent=27 // pred_check_branch
        %2816 = sbr.rel (%p2814) target = $region36
      $region35: #{discriminator_forward.4} parent=27 // pred_region
        _
      $region36: #{discriminator_forward.4} parent=27 // pred_fallthru
        _
      // Predicated region
      $region37: #{discriminator_forward.4} parent=27 // pred_check
        %p2817 = pneg %p133
      $region38: #{discriminator_forward.4} parent=27 // pred_check_branch
        %2819 = sbr.rel (%p2817) target = $region40
      $region39: #{discriminator_forward.4} parent=27 // pred_region
        _
      $region40: #{discriminator_forward.4} parent=27 // pred_fallthru
        _
    $region28: #{discriminator_forward.4} parent=5 // pred_fallthru
      _
    %p2820 = scmp.le.s32.totalorder 2, %s11
    // Predicated region
    $region41: #{discriminator_forward.4} parent=5 // pred_check
      %p2821 = pneg %p2820
    $region42: #{discriminator_forward.4} parent=5 // pred_check_branch
      %2823 = sbr.rel (%p2821) target = $region44
    $region43: #{discriminator_forward.4} parent=5 // pred_region
      %s2824 = ssub.s32 %s11, 2
      // Predicated region
      $region45: #{discriminator_forward.4} parent=43 // pred_check
        %p2825 = pneg %p87
      $region46: #{discriminator_forward.4} parent=43 // pred_check_branch
        %2827 = sbr.rel (%p2825) target = $region48
      $region47: #{discriminator_forward.4} parent=43 // pred_region
        %p2828 = scmp.lt.s32.totalorder %s17, 1
        %s2829 = scalar_select %p2828, %s17, 1
        %s2830 = smul.addr %s2829, 14
        %s2831 = smul.addr %s2830, 8
        %s2832 = scalar_lea.vmem %s2, %s2831
      $region48: #{discriminator_forward.4} parent=43 // pred_fallthru
        _
      // Predicated region
      $region49: #{discriminator_forward.4} parent=43 // pred_check
        %p2833 = pneg %p113
      $region50: #{discriminator_forward.4} parent=43 // pred_check_branch
        %2835 = sbr.rel (%p2833) target = $region52
      $region51: #{discriminator_forward.4} parent=43 // pred_region
        %p2836 = scmp.lt.s32.totalorder %s17, 1
        %s2837 = scalar_select %p2836, %s17, 1
        %s2838 = smul.addr %s2837, 2
        %s2839 = scalar_lea.vmem %s3, %s2838
      $region52: #{discriminator_forward.4} parent=43 // pred_fallthru
        _
      // Predicated region
      $region53: #{discriminator_forward.4} parent=43 // pred_check
        %p2840 = pneg %p139
      $region54: #{discriminator_forward.4} parent=43 // pred_check_branch
        %2842 = sbr.rel (%p2840) target = $region56
      $region55: #{discriminator_forward.4} parent=43 // pred_region
        %p2843 = scmp.lt.s32.totalorder %s17, 1
        %s2844 = scalar_select %p2843, %s17, 1
        %s2845 = smul.addr %s2844, 2
        %s2846 = scalar_lea.vmem %s4, %s2845
      $region56: #{discriminator_forward.4} parent=43 // pred_fallthru
        _
    $region44: #{discriminator_forward.4} parent=5 // pred_fallthru
      _
  $region6: #{discriminator_forward.4} parent=0 // loop_footer
    %s15 = sadd.s32 1, %s11
  $region7: #{discriminator_forward.4} parent=0 // loop_footer_branch
    %10 = sbr.rel target = $region3
  $region8: #{discriminator_forward.4} parent=0 // loop_exit
    _

</llo_original>
